<compile_context>
chip_gen: v6e
topology: v6e:2x2x1
jax: 0.10.0
libtpu: 0.0.40
codegen_flags: <defaults>
</compile_context>

<pallas_src>
import functools
import math

import jax
import jax.numpy as jnp
from jax.experimental import pallas as pl
from jax.experimental.pallas import tpu as pltpu

LN_EPS = 1e-5
NEG_INF = -1e9
SEQ_ALIGN = 128   # lane-dense key/score axis (padded keys are masked via kbias)
Q_TILE = 128      # query-row tile for attention + FFN


def _layer_norm(v, g, b):
    m = jnp.mean(v, axis=-1, keepdims=True)
    var = jnp.mean(jnp.square(v - m), axis=-1, keepdims=True)
    return (v - m) * jax.lax.rsqrt(var + LN_EPS) * g + b


# -----------------------------------------------------------------------------
# Fused kernel: one grid step = one encoder layer applied to a batch tile.
# Grid = (B // B_TILE, num_layers); layer axis is innermost ("arbitrary").
# -----------------------------------------------------------------------------
def _encoder_kernel(
    x_ref,       # (Bt, S, D)   layer-0 input activations
    pos_ref,     # (Bt, S, D)   positional embedding, bf16 (added to q/k only)
    kbias_ref,   # (Bt, 1, S)   additive key-padding bias (0 or -1e9), f32
    wq_ref, wk_ref, wv_ref,      # (1, D, D)   bf16, pre-transposed (scale folded into wq)
    bq_ref, bk_ref, bv_ref,      # (1, 1, D)   f32 (scale folded into bq)
    wo_ref,                      # (1, D, D)   bf16, pre-transposed
    bo_ref,                      # (1, 1, D)   f32
    ln1g_ref, ln1b_ref,          # (1, 1, D)   f32
    w1_ref,                      # (1, D, Dff) bf16, pre-transposed
    b1_ref,                      # (1, 1, Dff) f32
    w2_ref,                      # (1, Dff, D) bf16, pre-transposed
    b2_ref,                      # (1, 1, D)   f32
    ln2g_ref, ln2b_ref,          # (1, 1, D)   f32
    o_ref,       # (Bt, S, D)   output (block resident across the layer axis)
    act_ref,     # (Bt, S, D)   f32 VMEM scratch carrying activations across layers
    *,
    num_heads: int,
    q_tile: int,
):
    layer = pl.program_id(1)
    num_layers = pl.num_programs(1)

    @pl.when(layer == 0)
    def _():
        act_ref[...] = x_ref[...].astype(jnp.float32)

    Bt, S, D = act_ref.shape
    H = num_heads
    dh = D // H
    bf16 = jnp.bfloat16

    x = act_ref[...]                                     # (Bt, S, D) f32 snapshot
    pos = pos_ref[...].astype(jnp.float32)
    kbias = kbias_ref[...]                               # (Bt, 1, S) f32

    xf = x.reshape(Bt * S, D)
    qk_in = (xf + pos.reshape(Bt * S, D)).astype(bf16)
    x_bf = xf.astype(bf16)

    # Full-sequence q / k / v projections: (Bt*S, D) @ (D, D) bf16 MXU matmuls,
    # f32 accumulation.  1/sqrt(dh) is already folded into wq / bq host-side.
    q = jnp.dot(qk_in, wq_ref[0], preferred_element_type=jnp.float32) + bq_ref[0]
    k = jnp.dot(qk_in, wk_ref[0], preferred_element_type=jnp.float32) + bk_ref[0]
    v = jnp.dot(x_bf, wv_ref[0], preferred_element_type=jnp.float32) + bv_ref[0]
    q = q.reshape(Bt, S, D).astype(bf16)
    k = k.reshape(Bt, S, D).astype(bf16)
    v = v.reshape(Bt, S, D).astype(bf16)

    wo = wo_ref[0]                                       # (D, D) bf16
    w1 = w1_ref[0]                                       # (D, Dff) bf16
    w2 = w2_ref[0]                                       # (Dff, D) bf16

    # Query tiling: the full key axis is held per tile (so no online softmax is
    # needed) but scores are only (TQ, S) and the FFN hidden only (TQ, Dff),
    # bounding live VMEM at real DETR sizes.  act_ref rows are overwritten
    # tile-by-tile; k/v/q/x were snapshotted above so later tiles are unaffected.
    n_q_tiles = S // q_tile
    for qi in range(n_q_tiles):
        rows = slice(qi * q_tile, (qi + 1) * q_tile)
        x_t = x[:, rows, :].reshape(Bt * q_tile, D)      # residual input, f32
        q_t = q[:, rows, :]                              # (Bt, TQ, D) bf16

        # Per-head attention against ALL keys.
        # TODO(synk): Mosaic has no clean multi-batch dot_general / mid-axis
        # transpose, so heads stay a static Python loop with lane slices; the
        # big MXU win (full-depth W_o) is recovered by the single projection
        # matmul below.
        head_outs = []
        for h in range(H):
            sl = slice(h * dh, (h + 1) * dh)
            s = jnp.einsum("bqd,bkd->bqk", q_t[:, :, sl], k[:, :, sl],
                           preferred_element_type=jnp.float32)   # (Bt, TQ, S)
            s = s + kbias                                         # key-padding mask
            s = s - jnp.max(s, axis=-1, keepdims=True)
            p = jnp.exp(s)
            p = p * pl.reciprocal(jnp.sum(p, axis=-1, keepdims=True), approx=True)
            head_outs.append(
                jnp.einsum("bqk,bkd->bqd", p.astype(bf16), v[:, :, sl],
                           preferred_element_type=jnp.float32))   # (Bt, TQ, dh)

        # ONE full-depth output projection (contraction K = D on the MXU),
        # instead of H small K=dh matmuls.
        attn = jnp.concatenate(head_outs, axis=-1).reshape(Bt * q_tile, D)
        attn = jnp.dot(attn.astype(bf16), wo,
                       preferred_element_type=jnp.float32) + bo_ref[0]

        # residual + LayerNorm 1 (post-norm, DETR normalize_before=False)
        src = _layer_norm(x_t + attn, ln1g_ref[0], ln1b_ref[0])

        # feed-forward: linear1 -> relu -> linear2 (row-tiled with the queries)
        h1 = jnp.dot(src.astype(bf16), w1,
                     preferred_element_type=jnp.float32) + b1_ref[0]
        h1 = jnp.maximum(h1, 0.0)
        ff = jnp.dot(h1.astype(bf16), w2,
                     preferred_element_type=jnp.float32) + b2_ref[0]

        # residual + LayerNorm 2
        y_t = _layer_norm(src + ff, ln2g_ref[0], ln2b_ref[0])
        act_ref[:, rows, :] = y_t.reshape(Bt, q_tile, D)   # carried to next layer

    # Only the last layer's activations survive; gate the store so the (L-1)
    # earlier layers skip the full-tile cast + vector store entirely.
    @pl.when(layer == num_layers - 1)
    def _():
        o_ref[...] = act_ref[...].astype(o_ref.dtype)


# -----------------------------------------------------------------------------
# Host-side parameter prep: stack over layers, pre-transpose, bf16 matmul
# weights, fold the softmax scale into W_q / b_q.
# -----------------------------------------------------------------------------
def _stack_layer_params(params, num_heads):
    D = params[0]["out_w"].shape[0]
    dh = D // num_heads
    scale = 1.0 / math.sqrt(dh)
    bf16 = jnp.bfloat16

    def stack(fn):
        return jnp.stack([fn(p) for p in params], axis=0)

    return [
        stack(lambda p: (p["in_w"][0:D] * scale).T.astype(bf16)),  # wq  (L, D, D)
        stack(lambda p: p["in_w"][D:2 * D].T.astype(bf16)),        # wk
        stack(lambda p: p["in_w"][2 * D:].T.astype(bf16)),         # wv
        stack(lambda p: p["in_b"][:, 0:D] * scale),                # bq  (L, 1, D)
        stack(lambda p: p["in_b"][:, D:2 * D]),                    # bk
        stack(lambda p: p["in_b"][:, 2 * D:]),                     # bv
        stack(lambda p: p["out_w"].T.astype(bf16)),                # wo  (L, D, D)
        stack(lambda p: p["out_b"]),                               # bo  (L, 1, D)
        stack(lambda p: p["ln1_g"]),
        stack(lambda p: p["ln1_b"]),
        stack(lambda p: p["w1"].T.astype(bf16)),                   # w1t (L, D, Dff)
        stack(lambda p: p["b1"]),
        stack(lambda p: p["w2"].T.astype(bf16)),                   # w2t (L, Dff, D)
        stack(lambda p: p["b2"]),
        stack(lambda p: p["ln2_g"]),
        stack(lambda p: p["ln2_b"]),
    ]


def _vmem_capacity_bytes():
    try:
        info = pltpu.get_tpu_info()
        cap = getattr(info, "vmem_capacity_bytes", None)
        if cap:
            return int(cap)
    except Exception:
        pass
    return 64 * 1024 * 1024   # conservative (v7x per-core) fallback


def _layer_weight_bytes(D, dff):
    mm = (4 * D * D + 2 * D * dff) * 2               # bf16 matmul weights
    vec = (9 * D + dff) * 4                          # f32 biases + LN params
    return mm + vec


def _pick_b_tile(B, S_pad, D, dff, q_tile, vmem_budget):
    """Largest batch tile that (a) keeps >= 2 parallel grid steps (v7x has two
    TensorCores over the 'parallel' axis) and (b) fits the VMEM estimate."""
    min_steps = 2 if B >= 2 else 1
    wbytes = _layer_weight_bytes(D, dff)
    best = 1
    for t in range(1, B + 1):
        if B % t or B // t < min_steps:
            continue
        est = (t * S_pad * D * 4                               # act scratch (f32)
               + 2 * t * S_pad * (4 * D + 2 * D + 4 * D + 4)   # x/pos/out/kbias dbl-buffered
               + 2 * wbytes                                     # layer weights dbl-buffered
               + t * S_pad * D * (4 + 3 * 2)                    # x + q/k/v live values
               + 2 * t * q_tile * S_pad * 4                     # score tiles
               + 2 * t * q_tile * dff * 4)                      # FFN hidden tile
        if est <= vmem_budget:
            best = max(best, t)
    return best


def transformer_encoder(x_sbd, pos_sbd, key_padding_mask, params, num_heads):
    """x_sbd, pos_sbd: (S, B, D); key_padding_mask: (B, S) bool or None. Returns (S, B, D)."""
    S, B, D = x_sbd.shape
    assert D % num_heads == 0
    L = len(params)

    x = jnp.transpose(x_sbd, (1, 0, 2))                       # (B, S, D)
    # pos only feeds bf16 matmuls -> ship it as bf16 (halves its DMA / VMEM).
    pos = jnp.transpose(pos_sbd, (1, 0, 2)).astype(jnp.bfloat16)

    if key_padding_mask is None:
        kpm = jnp.zeros((B, S), dtype=bool)
    else:
        kpm = key_padding_mask

    # pad S up to a full lane multiple; padded keys are masked out via kbias.
    S_pad = ((S + SEQ_ALIGN - 1) // SEQ_ALIGN) * SEQ_ALIGN
    if S_pad != S:
        pad3 = ((0, 0), (0, S_pad - S), (0, 0))
        x = jnp.pad(x, pad3)
        pos = jnp.pad(pos, pad3)
        kpm = jnp.pad(kpm, ((0, 0), (0, S_pad - S)), constant_values=True)
    kbias = jnp.where(kpm, NEG_INF, 0.0).astype(jnp.float32).reshape(B, 1, S_pad)

    weights = _stack_layer_params(params, num_heads)
    dff = params[0]["w1"].shape[0]

    q_tile = min(S_pad, Q_TILE)
    vmem_cap = _vmem_capacity_bytes()
    b_tile = _pick_b_tile(B, S_pad, D, dff, q_tile, vmem_budget=vmem_cap // 2)
    grid = (B // b_tile, L)

    def act_spec(block_shape):
        return pl.BlockSpec(block_shape, lambda b, l: (b, 0, 0))

    def w_spec(arr):
        # TODO(synk): on v5e with B//b_tile > 1, hold all L layers' weights
        # resident (block (L, ...)) instead of refetching per batch tile.
        return pl.BlockSpec((1,) + arr.shape[1:], lambda b, l: (l, 0, 0))

    in_specs = [
        act_spec((b_tile, S_pad, D)),      # x
        act_spec((b_tile, S_pad, D)),      # pos (bf16)
        act_spec((b_tile, 1, S_pad)),      # key-padding bias
    ] + [w_spec(w) for w in weights]

    out = pl.pallas_call(
        functools.partial(_encoder_kernel, num_heads=num_heads, q_tile=q_tile),
        grid=grid,
        in_specs=in_specs,
        out_specs=pl.BlockSpec((b_tile, S_pad, D), lambda b, l: (b, 0, 0)),
        out_shape=jax.ShapeDtypeStruct((B, S_pad, D), x_sbd.dtype),
        scratch_shapes=[pltpu.VMEM((b_tile, S_pad, D), jnp.float32)],
        compiler_params=pltpu.CompilerParams(
            dimension_semantics=("parallel", "arbitrary"),
            # explicit VMEM budget: ~3/4 of physical (48 MiB on v7x's 64 MiB,
            # 96 MiB on v5e/v6e's 128 MiB), well above v5e's 16 MiB default.
            vmem_limit_bytes=int(min(vmem_cap * 3 // 4, 112 * 1024 * 1024))),
    )(x, pos, kbias, *weights)

    out = out[:, :S, :]
    return jnp.transpose(out, (1, 0, 2))                      # back to (S, B, D)


# -----------------------------------------------------------------------------
# Deterministic parameter init (synthetic, torch-convention shapes)
# -----------------------------------------------------------------------------
def init_params(key, num_layers, d_model, num_heads, dim_ff):
    params = []
    for layer_idx in range(num_layers):
        keys = jax.random.split(jax.random.fold_in(key, layer_idx), 8)
        p = {
            "in_w": 0.1 * jax.random.normal(keys[0], (3 * d_model, d_model), jnp.float32),
            "in_b": 0.1 * jax.random.normal(keys[1], (1, 3 * d_model), jnp.float32),
            "out_w": 0.1 * jax.random.normal(keys[2], (d_model, d_model), jnp.float32),
            "out_b": 0.1 * jax.random.normal(keys[3], (1, d_model), jnp.float32),
            "ln1_g": jnp.ones((1, d_model), jnp.float32),
            "ln1_b": jnp.zeros((1, d_model), jnp.float32),
            "w1": 0.1 * jax.random.normal(keys[4], (dim_ff, d_model), jnp.float32),
            "b1": 0.1 * jax.random.normal(keys[5], (1, dim_ff), jnp.float32),
            "w2": 0.1 * jax.random.normal(keys[6], (d_model, dim_ff), jnp.float32),
            "b2": 0.1 * jax.random.normal(keys[7], (1, d_model), jnp.float32),
            "ln2_g": jnp.ones((1, d_model), jnp.float32),
            "ln2_b": jnp.zeros((1, d_model), jnp.float32),
        }
        params.append(p)
    return params


# -----------------------------------------------------------------------------
# Pure-JAX reference (mirrors torch semantics and the kernel's numeric choices:
# bf16 matmul casts, bf16 pos, scale folded into W_q before the bf16 cast).
# -----------------------------------------------------------------------------
def _reference(x_sbd, pos_sbd, key_padding_mask, params, num_heads):
    S, B, D = x_sbd.shape
    H = num_heads
    dh = D // H
    scale = 1.0 / math.sqrt(dh)
    bf = jnp.bfloat16

    x = jnp.transpose(x_sbd, (1, 0, 2)).astype(jnp.float32)
    pos = jnp.transpose(pos_sbd, (1, 0, 2)).astype(bf).astype(jnp.float32)
    if key_padding_mask is None:
        kbias = jnp.zeros((B, S), jnp.float32)
    else:
        kbias = jnp.where(key_padding_mask, NEG_INF, 0.0).astype(jnp.float32)

    out = x
    for p in params:
        qk_in = (out + pos).astype(bf)
        in_w, in_b = p["in_w"], p["in_b"][0]
        q = jnp.dot(qk_in, (in_w[0:D] * scale).T.astype(bf),
                    preferred_element_type=jnp.float32) + in_b[0:D] * scale
        k = jnp.dot(qk_in, in_w[D:2 * D].T.astype(bf),
                    preferred_element_type=jnp.float32) + in_b[D:2 * D]
        v = jnp.dot(out.astype(bf), in_w[2 * D:].T.astype(bf),
                    preferred_element_type=jnp.float32) + in_b[2 * D:]
        q = q.reshape(B, S, H, dh).transpose(0, 2, 1, 3).astype(bf)
        k = k.reshape(B, S, H, dh).transpose(0, 2, 1, 3).astype(bf)
        v = v.reshape(B, S, H, dh).transpose(0, 2, 1, 3).astype(bf)
        s = jnp.einsum("bhqd,bhkd->bhqk", q, k,
                       preferred_element_type=jnp.float32) + kbias[:, None, None, :]
        a = jax.nn.softmax(s, axis=-1)
        attn = jnp.einsum("bhqk,bhkd->bhqd", a.astype(bf), v,
                          preferred_element_type=jnp.float32)
        attn = attn.transpose(0, 2, 1, 3).reshape(B, S, D)
        attn = jnp.dot(attn.astype(bf), p["out_w"].T.astype(bf),
                       preferred_element_type=jnp.float32) + p["out_b"]
        src = _layer_norm(out + attn, p["ln1_g"], p["ln1_b"])
        h1 = jnp.maximum(jnp.dot(src.astype(bf), p["w1"].T.astype(bf),
                                 preferred_element_type=jnp.float32) + p["b1"], 0.0)
        ff = jnp.dot(h1.astype(bf), p["w2"].T.astype(bf),
                     preferred_element_type=jnp.float32) + p["b2"]
        out = _layer_norm(src + ff, p["ln2_g"], p["ln2_b"])
    return jnp.transpose(out, (1, 0, 2))


# -----------------------------------------------------------------------------
if __name__ == "__main__":
    S_TOK, B, D = 16, 2, 32            # 16 tokens (4x4 feature map), batch 2, d_model 32
    NHEAD, DFF, NLAYERS = 4, 64, 2

    key = jax.random.PRNGKey(0)
    kx, kp, kparam = jax.random.split(key, 3)
    x = jax.random.normal(kx, (S_TOK, B, D), jnp.float32)     # (S, B, D) DETR convention
    pos = jax.random.normal(kp, (S_TOK, B, D), jnp.float32)   # positional embedding
    # key padding mask: True = padded / ignored (last 2 tokens of each batch element)
    key_padding_mask = jnp.zeros((B, S_TOK), dtype=bool).at[:, -2:].set(True)

    params = init_params(kparam, NLAYERS, D, NHEAD, DFF)

    out = transformer_encoder(x, pos, key_padding_mask, params, NHEAD)
    out = jax.block_until_ready(out)

    ref = _reference(x, pos, key_padding_mask, params, NHEAD)
    assert out.shape == (S_TOK, B, D)
    assert jnp.allclose(out, ref, atol=2e-2, rtol=2e-2), "kernel does not match reference"

    print("KERNEL_OK")
</pallas_src>

<mosaic_0001>
module attributes {stable_mosaic.version = 11 : i64} {
  func.func @_encoder_kernel(%arg0: i32, %arg1: i32, %arg2: memref<1x128x32xf32, #tpu.memory_space<vmem>>, %arg3: memref<1x128x32xbf16, #tpu.memory_space<vmem>>, %arg4: memref<1x1x128xf32, #tpu.memory_space<vmem>>, %arg5: memref<1x32x32xbf16, #tpu.memory_space<vmem>>, %arg6: memref<1x32x32xbf16, #tpu.memory_space<vmem>>, %arg7: memref<1x32x32xbf16, #tpu.memory_space<vmem>>, %arg8: memref<1x1x32xf32, #tpu.memory_space<vmem>>, %arg9: memref<1x1x32xf32, #tpu.memory_space<vmem>>, %arg10: memref<1x1x32xf32, #tpu.memory_space<vmem>>, %arg11: memref<1x32x32xbf16, #tpu.memory_space<vmem>>, %arg12: memref<1x1x32xf32, #tpu.memory_space<vmem>>, %arg13: memref<1x1x32xf32, #tpu.memory_space<vmem>>, %arg14: memref<1x1x32xf32, #tpu.memory_space<vmem>>, %arg15: memref<1x32x64xbf16, #tpu.memory_space<vmem>>, %arg16: memref<1x1x64xf32, #tpu.memory_space<vmem>>, %arg17: memref<1x64x32xbf16, #tpu.memory_space<vmem>>, %arg18: memref<1x1x32xf32, #tpu.memory_space<vmem>>, %arg19: memref<1x1x32xf32, #tpu.memory_space<vmem>>, %arg20: memref<1x1x32xf32, #tpu.memory_space<vmem>>, %arg21: memref<1x128x32xf32, #tpu.memory_space<vmem>>, %arg22: memref<1x128x32xf32, #tpu.memory_space<vmem>>) attributes {dimension_semantics = [#tpu.dimension_semantics<parallel>, #tpu.dimension_semantics<arbitrary>], iteration_bounds = array<i64: 2, 2>, scalar_prefetch = 0 : i64, scratch_operands = 1 : i64, tpu.core_type = #tpu.core_type<tc>, window_params = [{transform_indices = @transform_0, window_bounds = array<i64: 1, 128, 32>}, {transform_indices = @transform_1, window_bounds = array<i64: 1, 128, 32>}, {transform_indices = @transform_2, window_bounds = array<i64: 1, 1, 128>}, {transform_indices = @transform_3, window_bounds = array<i64: 1, 32, 32>}, {transform_indices = @transform_4, window_bounds = array<i64: 1, 32, 32>}, {transform_indices = @transform_5, window_bounds = array<i64: 1, 32, 32>}, {transform_indices = @transform_6, window_bounds = array<i64: 1, 1, 32>}, {transform_indices = @transform_7, window_bounds = array<i64: 1, 1, 32>}, {transform_indices = @transform_8, window_bounds = array<i64: 1, 1, 32>}, {transform_indices = @transform_9, window_bounds = array<i64: 1, 32, 32>}, {transform_indices = @transform_10, window_bounds = array<i64: 1, 1, 32>}, {transform_indices = @transform_11, window_bounds = array<i64: 1, 1, 32>}, {transform_indices = @transform_12, window_bounds = array<i64: 1, 1, 32>}, {transform_indices = @transform_13, window_bounds = array<i64: 1, 32, 64>}, {transform_indices = @transform_14, window_bounds = array<i64: 1, 1, 64>}, {transform_indices = @transform_15, window_bounds = array<i64: 1, 64, 32>}, {transform_indices = @transform_16, window_bounds = array<i64: 1, 1, 32>}, {transform_indices = @transform_17, window_bounds = array<i64: 1, 1, 32>}, {transform_indices = @transform_18, window_bounds = array<i64: 1, 1, 32>}, {transform_indices = @transform_19, window_bounds = array<i64: 1, 128, 32>}]} {
    %c0_i32 = arith.constant 0 : i32
    %0 = arith.cmpi eq, %arg1, %c0_i32 : i32
    %1 = arith.extui %0 : i1 to i32
    %c0_i32_0 = arith.constant 0 : i32
    %2 = arith.cmpi ne, %1, %c0_i32_0 : i32
    scf.if %2 {
      %c0_93 = arith.constant 0 : index
      %c0_94 = arith.constant 0 : index
      %c0_95 = arith.constant 0 : index
      %199 = vector.load %arg2[%c0_93, %c0_94, %c0_95] : memref<1x128x32xf32, #tpu.memory_space<vmem>>, vector<1x128x32xf32>
      %c0_96 = arith.constant 0 : index
      %c0_97 = arith.constant 0 : index
      %c0_98 = arith.constant 0 : index
      %200 = vector.load %arg22[%c0_96, %c0_97, %c0_98] : memref<1x128x32xf32, #tpu.memory_space<vmem>>, vector<1x128x32xf32>
      tpu.vector_store %arg22[%c0_96, %c0_97, %c0_98], %199 {strides = array<i32>} : memref<1x128x32xf32, #tpu.memory_space<vmem>>, vector<1x128x32xf32>,
    } else {
    }
    %c0 = arith.constant 0 : index
    %c0_1 = arith.constant 0 : index
    %c0_2 = arith.constant 0 : index
    %3 = vector.load %arg22[%c0, %c0_1, %c0_2] : memref<1x128x32xf32, #tpu.memory_space<vmem>>, vector<1x128x32xf32>
    %c0_3 = arith.constant 0 : index
    %c0_4 = arith.constant 0 : index
    %c0_5 = arith.constant 0 : index
    %4 = vector.load %arg3[%c0_3, %c0_4, %c0_5] : memref<1x128x32xbf16, #tpu.memory_space<vmem>>, vector<1x128x32xbf16>
    %5 = arith.extf %4 : vector<1x128x32xbf16> to vector<1x128x32xf32>
    %c0_6 = arith.constant 0 : index
    %c0_7 = arith.constant 0 : index
    %c0_8 = arith.constant 0 : index
    %6 = vector.load %arg4[%c0_6, %c0_7, %c0_8] : memref<1x1x128xf32, #tpu.memory_space<vmem>>, vector<1x1x128xf32>
    %7 = vector.shape_cast %3 : vector<1x128x32xf32> to vector<128x32xf32>
    %8 = vector.shape_cast %5 : vector<1x128x32xf32> to vector<128x32xf32>
    %9 = arith.addf %7, %8 : vector<128x32xf32>
    %10 = arith.truncf %9 : vector<128x32xf32> to vector<128x32xbf16>
    %11 = arith.truncf %7 : vector<128x32xf32> to vector<128x32xbf16>
    %c0_9 = arith.constant 0 : index
    %c0_10 = arith.constant 0 : index
    %c0_11 = arith.constant 0 : index
    %12 = vector.load %arg5[%c0_9, %c0_10, %c0_11] : memref<1x32x32xbf16, #tpu.memory_space<vmem>>, vector<1x32x32xbf16>
    %13 = vector.shape_cast %12 : vector<1x32x32xbf16> to vector<32x32xbf16>
    %cst = arith.constant dense<0.000000e+00> : vector<128x32xf32>
    %14 = tpu.matmul %10, %13, %cst {dimension_numbers = #tpu.dot_dimension_numbers<[1], [0], [0], [1], [0, 0, 1, 1], [], []>} : vector<128x32xbf16>, vector<32x32xbf16>, vector<128x32xf32> -> vector<128x32xf32>
    %c0_12 = arith.constant 0 : index
    %c0_13 = arith.constant 0 : index
    %c0_14 = arith.constant 0 : index
    %15 = vector.load %arg8[%c0_12, %c0_13, %c0_14] : memref<1x1x32xf32, #tpu.memory_space<vmem>>, vector<1x1x32xf32>
    %16 = vector.shape_cast %15 : vector<1x1x32xf32> to vector<1x32xf32>
    %17 = vector.broadcast %16 : vector<1x32xf32> to vector<128x32xf32>
    %18 = arith.addf %14, %17 : vector<128x32xf32>
    %c0_15 = arith.constant 0 : index
    %c0_16 = arith.constant 0 : index
    %c0_17 = arith.constant 0 : index
    %19 = vector.load %arg6[%c0_15, %c0_16, %c0_17] : memref<1x32x32xbf16, #tpu.memory_space<vmem>>, vector<1x32x32xbf16>
    %20 = vector.shape_cast %19 : vector<1x32x32xbf16> to vector<32x32xbf16>
    %cst_18 = arith.constant dense<0.000000e+00> : vector<128x32xf32>
    %21 = tpu.matmul %10, %20, %cst_18 {dimension_numbers = #tpu.dot_dimension_numbers<[1], [0], [0], [1], [0, 0, 1, 1], [], []>} : vector<128x32xbf16>, vector<32x32xbf16>, vector<128x32xf32> -> vector<128x32xf32>
    %c0_19 = arith.constant 0 : index
    %c0_20 = arith.constant 0 : index
    %c0_21 = arith.constant 0 : index
    %22 = vector.load %arg9[%c0_19, %c0_20, %c0_21] : memref<1x1x32xf32, #tpu.memory_space<vmem>>, vector<1x1x32xf32>
    %23 = vector.shape_cast %22 : vector<1x1x32xf32> to vector<1x32xf32>
    %24 = vector.broadcast %23 : vector<1x32xf32> to vector<128x32xf32>
    %25 = arith.addf %21, %24 : vector<128x32xf32>
    %c0_22 = arith.constant 0 : index
    %c0_23 = arith.constant 0 : index
    %c0_24 = arith.constant 0 : index
    %26 = vector.load %arg7[%c0_22, %c0_23, %c0_24] : memref<1x32x32xbf16, #tpu.memory_space<vmem>>, vector<1x32x32xbf16>
    %27 = vector.shape_cast %26 : vector<1x32x32xbf16> to vector<32x32xbf16>
    %cst_25 = arith.constant dense<0.000000e+00> : vector<128x32xf32>
    %28 = tpu.matmul %11, %27, %cst_25 {dimension_numbers = #tpu.dot_dimension_numbers<[1], [0], [0], [1], [0, 0, 1, 1], [], []>} : vector<128x32xbf16>, vector<32x32xbf16>, vector<128x32xf32> -> vector<128x32xf32>
    %c0_26 = arith.constant 0 : index
    %c0_27 = arith.constant 0 : index
    %c0_28 = arith.constant 0 : index
    %29 = vector.load %arg10[%c0_26, %c0_27, %c0_28] : memref<1x1x32xf32, #tpu.memory_space<vmem>>, vector<1x1x32xf32>
    %30 = vector.shape_cast %29 : vector<1x1x32xf32> to vector<1x32xf32>
    %31 = vector.broadcast %30 : vector<1x32xf32> to vector<128x32xf32>
    %32 = arith.addf %28, %31 : vector<128x32xf32>
    %33 = vector.shape_cast %18 : vector<128x32xf32> to vector<1x128x32xf32>
    %34 = arith.truncf %33 : vector<1x128x32xf32> to vector<1x128x32xbf16>
    %35 = vector.shape_cast %25 : vector<128x32xf32> to vector<1x128x32xf32>
    %36 = arith.truncf %35 : vector<1x128x32xf32> to vector<1x128x32xbf16>
    %37 = vector.shape_cast %32 : vector<128x32xf32> to vector<1x128x32xf32>
    %38 = arith.truncf %37 : vector<1x128x32xf32> to vector<1x128x32xbf16>
    %c0_29 = arith.constant 0 : index
    %c0_30 = arith.constant 0 : index
    %c0_31 = arith.constant 0 : index
    %39 = vector.load %arg11[%c0_29, %c0_30, %c0_31] : memref<1x32x32xbf16, #tpu.memory_space<vmem>>, vector<1x32x32xbf16>
    %40 = vector.shape_cast %39 : vector<1x32x32xbf16> to vector<32x32xbf16>
    %c0_32 = arith.constant 0 : index
    %c0_33 = arith.constant 0 : index
    %c0_34 = arith.constant 0 : index
    %41 = vector.load %arg15[%c0_32, %c0_33, %c0_34] : memref<1x32x64xbf16, #tpu.memory_space<vmem>>, vector<1x32x64xbf16>
    %42 = vector.shape_cast %41 : vector<1x32x64xbf16> to vector<32x64xbf16>
    %c0_35 = arith.constant 0 : index
    %c0_36 = arith.constant 0 : index
    %c0_37 = arith.constant 0 : index
    %43 = vector.load %arg17[%c0_35, %c0_36, %c0_37] : memref<1x64x32xbf16, #tpu.memory_space<vmem>>, vector<1x64x32xbf16>
    %44 = vector.shape_cast %43 : vector<1x64x32xbf16> to vector<64x32xbf16>
    %45 = vector.shape_cast %3 : vector<1x128x32xf32> to vector<128x32xf32>
    %46 = vector.extract_strided_slice %34 {offsets = [0, 0, 0], sizes = [1, 128, 8], strides = [1, 1, 1]} : vector<1x128x32xbf16> to vector<1x128x8xbf16>
    %47 = vector.extract_strided_slice %36 {offsets = [0, 0, 0], sizes = [1, 128, 8], strides = [1, 1, 1]} : vector<1x128x32xbf16> to vector<1x128x8xbf16>
    "tpu.trace_start"() <{level = 10 : i32, message = "bqd,bkd->bqk"}> : () -> ()
    %cst_38 = arith.constant dense<0.000000e+00> : vector<1x128x128xf32>
    %48 = tpu.matmul %46, %47, %cst_38 {dimension_numbers = #tpu.dot_dimension_numbers<[2], [2], [1], [1], [0, 0, 0, 1, 1, 1], [0], [0]>} : vector<1x128x8xbf16>, vector<1x128x8xbf16>, vector<1x128x128xf32> -> vector<1x128x128xf32>
    "tpu.trace_stop"() : () -> ()
    %49 = vector.broadcast %6 : vector<1x1x128xf32> to vector<1x128x128xf32>
    %50 = arith.addf %48, %49 : vector<1x128x128xf32>
    %cst_39 = arith.constant dense<0xFF800000> : vector<1x128xf32>
    %51 = vector.multi_reduction <maximumf>, %50, %cst_39 [2] : vector<1x128x128xf32> to vector<1x128xf32>
    %52 = vector.shape_cast %51 : vector<1x128xf32> to vector<1x128x1xf32>
    %53 = vector.broadcast %52 : vector<1x128x1xf32> to vector<1x128x128xf32>
    %54 = arith.subf %50, %53 : vector<1x128x128xf32>
    %55 = math.exp %54 : vector<1x128x128xf32>
    %cst_40 = arith.constant dense<0.000000e+00> : vector<1x128xf32>
    %56 = vector.multi_reduction <add>, %55, %cst_40 [2] : vector<1x128x128xf32> to vector<1x128xf32>
    %57 = vector.shape_cast %56 : vector<1x128xf32> to vector<1x128x1xf32>
    %58 = tpu.reciprocal %57 {approx = true} : vector<1x128x1xf32> -> vector<1x128x1xf32>
    %59 = vector.broadcast %58 : vector<1x128x1xf32> to vector<1x128x128xf32>
    %60 = arith.mulf %55, %59 : vector<1x128x128xf32>
    %61 = arith.truncf %60 : vector<1x128x128xf32> to vector<1x128x128xbf16>
    %62 = vector.extract_strided_slice %38 {offsets = [0, 0, 0], sizes = [1, 128, 8], strides = [1, 1, 1]} : vector<1x128x32xbf16> to vector<1x128x8xbf16>
    "tpu.trace_start"() <{level = 10 : i32, message = "bqk,bkd->bqd"}> : () -> ()
    %cst_41 = arith.constant dense<0.000000e+00> : vector<1x128x8xf32>
    %63 = tpu.matmul %61, %62, %cst_41 {dimension_numbers = #tpu.dot_dimension_numbers<[2], [1], [1], [2], [0, 0, 0, 1, 1, 2], [0], [0]>} : vector<1x128x128xbf16>, vector<1x128x8xbf16>, vector<1x128x8xf32> -> vector<1x128x8xf32>
    "tpu.trace_stop"() : () -> ()
    %64 = vector.extract_strided_slice %34 {offsets = [0, 0, 8], sizes = [1, 128, 8], strides = [1, 1, 1]} : vector<1x128x32xbf16> to vector<1x128x8xbf16>
    %65 = vector.extract_strided_slice %36 {offsets = [0, 0, 8], sizes = [1, 128, 8], strides = [1, 1, 1]} : vector<1x128x32xbf16> to vector<1x128x8xbf16>
    "tpu.trace_start"() <{level = 10 : i32, message = "bqd,bkd->bqk"}> : () -> ()
    %cst_42 = arith.constant dense<0.000000e+00> : vector<1x128x128xf32>
    %66 = tpu.matmul %64, %65, %cst_42 {dimension_numbers = #tpu.dot_dimension_numbers<[2], [2], [1], [1], [0, 0, 0, 1, 1, 1], [0], [0]>} : vector<1x128x8xbf16>, vector<1x128x8xbf16>, vector<1x128x128xf32> -> vector<1x128x128xf32>
    "tpu.trace_stop"() : () -> ()
    %67 = vector.broadcast %6 : vector<1x1x128xf32> to vector<1x128x128xf32>
    %68 = arith.addf %66, %67 : vector<1x128x128xf32>
    %cst_43 = arith.constant dense<0xFF800000> : vector<1x128xf32>
    %69 = vector.multi_reduction <maximumf>, %68, %cst_43 [2] : vector<1x128x128xf32> to vector<1x128xf32>
    %70 = vector.shape_cast %69 : vector<1x128xf32> to vector<1x128x1xf32>
    %71 = vector.broadcast %70 : vector<1x128x1xf32> to vector<1x128x128xf32>
    %72 = arith.subf %68, %71 : vector<1x128x128xf32>
    %73 = math.exp %72 : vector<1x128x128xf32>
    %cst_44 = arith.constant dense<0.000000e+00> : vector<1x128xf32>
    %74 = vector.multi_reduction <add>, %73, %cst_44 [2] : vector<1x128x128xf32> to vector<1x128xf32>
    %75 = vector.shape_cast %74 : vector<1x128xf32> to vector<1x128x1xf32>
    %76 = tpu.reciprocal %75 {approx = true} : vector<1x128x1xf32> -> vector<1x128x1xf32>
    %77 = vector.broadcast %76 : vector<1x128x1xf32> to vector<1x128x128xf32>
    %78 = arith.mulf %73, %77 : vector<1x128x128xf32>
    %79 = arith.truncf %78 : vector<1x128x128xf32> to vector<1x128x128xbf16>
    %80 = vector.extract_strided_slice %38 {offsets = [0, 0, 8], sizes = [1, 128, 8], strides = [1, 1, 1]} : vector<1x128x32xbf16> to vector<1x128x8xbf16>
    "tpu.trace_start"() <{level = 10 : i32, message = "bqk,bkd->bqd"}> : () -> ()
    %cst_45 = arith.constant dense<0.000000e+00> : vector<1x128x8xf32>
    %81 = tpu.matmul %79, %80, %cst_45 {dimension_numbers = #tpu.dot_dimension_numbers<[2], [1], [1], [2], [0, 0, 0, 1, 1, 2], [0], [0]>} : vector<1x128x128xbf16>, vector<1x128x8xbf16>, vector<1x128x8xf32> -> vector<1x128x8xf32>
    "tpu.trace_stop"() : () -> ()
    %82 = vector.extract_strided_slice %34 {offsets = [0, 0, 16], sizes = [1, 128, 8], strides = [1, 1, 1]} : vector<1x128x32xbf16> to vector<1x128x8xbf16>
    %83 = vector.extract_strided_slice %36 {offsets = [0, 0, 16], sizes = [1, 128, 8], strides = [1, 1, 1]} : vector<1x128x32xbf16> to vector<1x128x8xbf16>
    "tpu.trace_start"() <{level = 10 : i32, message = "bqd,bkd->bqk"}> : () -> ()
    %cst_46 = arith.constant dense<0.000000e+00> : vector<1x128x128xf32>
    %84 = tpu.matmul %82, %83, %cst_46 {dimension_numbers = #tpu.dot_dimension_numbers<[2], [2], [1], [1], [0, 0, 0, 1, 1, 1], [0], [0]>} : vector<1x128x8xbf16>, vector<1x128x8xbf16>, vector<1x128x128xf32> -> vector<1x128x128xf32>
    "tpu.trace_stop"() : () -> ()
    %85 = vector.broadcast %6 : vector<1x1x128xf32> to vector<1x128x128xf32>
    %86 = arith.addf %84, %85 : vector<1x128x128xf32>
    %cst_47 = arith.constant dense<0xFF800000> : vector<1x128xf32>
    %87 = vector.multi_reduction <maximumf>, %86, %cst_47 [2] : vector<1x128x128xf32> to vector<1x128xf32>
    %88 = vector.shape_cast %87 : vector<1x128xf32> to vector<1x128x1xf32>
    %89 = vector.broadcast %88 : vector<1x128x1xf32> to vector<1x128x128xf32>
    %90 = arith.subf %86, %89 : vector<1x128x128xf32>
    %91 = math.exp %90 : vector<1x128x128xf32>
    %cst_48 = arith.constant dense<0.000000e+00> : vector<1x128xf32>
    %92 = vector.multi_reduction <add>, %91, %cst_48 [2] : vector<1x128x128xf32> to vector<1x128xf32>
    %93 = vector.shape_cast %92 : vector<1x128xf32> to vector<1x128x1xf32>
    %94 = tpu.reciprocal %93 {approx = true} : vector<1x128x1xf32> -> vector<1x128x1xf32>
    %95 = vector.broadcast %94 : vector<1x128x1xf32> to vector<1x128x128xf32>
    %96 = arith.mulf %91, %95 : vector<1x128x128xf32>
    %97 = arith.truncf %96 : vector<1x128x128xf32> to vector<1x128x128xbf16>
    %98 = vector.extract_strided_slice %38 {offsets = [0, 0, 16], sizes = [1, 128, 8], strides = [1, 1, 1]} : vector<1x128x32xbf16> to vector<1x128x8xbf16>
    "tpu.trace_start"() <{level = 10 : i32, message = "bqk,bkd->bqd"}> : () -> ()
    %cst_49 = arith.constant dense<0.000000e+00> : vector<1x128x8xf32>
    %99 = tpu.matmul %97, %98, %cst_49 {dimension_numbers = #tpu.dot_dimension_numbers<[2], [1], [1], [2], [0, 0, 0, 1, 1, 2], [0], [0]>} : vector<1x128x128xbf16>, vector<1x128x8xbf16>, vector<1x128x8xf32> -> vector<1x128x8xf32>
    "tpu.trace_stop"() : () -> ()
    %100 = vector.extract_strided_slice %34 {offsets = [0, 0, 24], sizes = [1, 128, 8], strides = [1, 1, 1]} : vector<1x128x32xbf16> to vector<1x128x8xbf16>
    %101 = vector.extract_strided_slice %36 {offsets = [0, 0, 24], sizes = [1, 128, 8], strides = [1, 1, 1]} : vector<1x128x32xbf16> to vector<1x128x8xbf16>
    "tpu.trace_start"() <{level = 10 : i32, message = "bqd,bkd->bqk"}> : () -> ()
    %cst_50 = arith.constant dense<0.000000e+00> : vector<1x128x128xf32>
    %102 = tpu.matmul %100, %101, %cst_50 {dimension_numbers = #tpu.dot_dimension_numbers<[2], [2], [1], [1], [0, 0, 0, 1, 1, 1], [0], [0]>} : vector<1x128x8xbf16>, vector<1x128x8xbf16>, vector<1x128x128xf32> -> vector<1x128x128xf32>
    "tpu.trace_stop"() : () -> ()
    %103 = vector.broadcast %6 : vector<1x1x128xf32> to vector<1x128x128xf32>
    %104 = arith.addf %102, %103 : vector<1x128x128xf32>
    %cst_51 = arith.constant dense<0xFF800000> : vector<1x128xf32>
    %105 = vector.multi_reduction <maximumf>, %104, %cst_51 [2] : vector<1x128x128xf32> to vector<1x128xf32>
    %106 = vector.shape_cast %105 : vector<1x128xf32> to vector<1x128x1xf32>
    %107 = vector.broadcast %106 : vector<1x128x1xf32> to vector<1x128x128xf32>
    %108 = arith.subf %104, %107 : vector<1x128x128xf32>
    %109 = math.exp %108 : vector<1x128x128xf32>
    %cst_52 = arith.constant dense<0.000000e+00> : vector<1x128xf32>
    %110 = vector.multi_reduction <add>, %109, %cst_52 [2] : vector<1x128x128xf32> to vector<1x128xf32>
    %111 = vector.shape_cast %110 : vector<1x128xf32> to vector<1x128x1xf32>
    %112 = tpu.reciprocal %111 {approx = true} : vector<1x128x1xf32> -> vector<1x128x1xf32>
    %113 = vector.broadcast %112 : vector<1x128x1xf32> to vector<1x128x128xf32>
    %114 = arith.mulf %109, %113 : vector<1x128x128xf32>
    %115 = arith.truncf %114 : vector<1x128x128xf32> to vector<1x128x128xbf16>
    %116 = vector.extract_strided_slice %38 {offsets = [0, 0, 24], sizes = [1, 128, 8], strides = [1, 1, 1]} : vector<1x128x32xbf16> to vector<1x128x8xbf16>
    "tpu.trace_start"() <{level = 10 : i32, message = "bqk,bkd->bqd"}> : () -> ()
    %cst_53 = arith.constant dense<0.000000e+00> : vector<1x128x8xf32>
    %117 = tpu.matmul %115, %116, %cst_53 {dimension_numbers = #tpu.dot_dimension_numbers<[2], [1], [1], [2], [0, 0, 0, 1, 1, 2], [0], [0]>} : vector<1x128x128xbf16>, vector<1x128x8xbf16>, vector<1x128x8xf32> -> vector<1x128x8xf32>
    "tpu.trace_stop"() : () -> ()
    %118 = tpu.concatenate %63, %81, %99, %117 in 2 : vector<1x128x8xf32>, vector<1x128x8xf32>, vector<1x128x8xf32>, vector<1x128x8xf32> -> vector<1x128x32xf32>
    %119 = vector.shape_cast %118 : vector<1x128x32xf32> to vector<128x32xf32>
    %120 = arith.truncf %119 : vector<128x32xf32> to vector<128x32xbf16>
    %cst_54 = arith.constant dense<0.000000e+00> : vector<128x32xf32>
    %121 = tpu.matmul %120, %40, %cst_54 {dimension_numbers = #tpu.dot_dimension_numbers<[1], [0], [0], [1], [0, 0, 1, 1], [], []>} : vector<128x32xbf16>, vector<32x32xbf16>, vector<128x32xf32> -> vector<128x32xf32>
    %c0_55 = arith.constant 0 : index
    %c0_56 = arith.constant 0 : index
    %c0_57 = arith.constant 0 : index
    %122 = vector.load %arg12[%c0_55, %c0_56, %c0_57] : memref<1x1x32xf32, #tpu.memory_space<vmem>>, vector<1x1x32xf32>
    %123 = vector.shape_cast %122 : vector<1x1x32xf32> to vector<1x32xf32>
    %124 = vector.broadcast %123 : vector<1x32xf32> to vector<128x32xf32>
    %125 = arith.addf %121, %124 : vector<128x32xf32>
    %126 = arith.addf %45, %125 : vector<128x32xf32>
    %c0_58 = arith.constant 0 : index
    %c0_59 = arith.constant 0 : index
    %c0_60 = arith.constant 0 : index
    %127 = vector.load %arg13[%c0_58, %c0_59, %c0_60] : memref<1x1x32xf32, #tpu.memory_space<vmem>>, vector<1x1x32xf32>
    %128 = vector.shape_cast %127 : vector<1x1x32xf32> to vector<1x32xf32>
    %c0_61 = arith.constant 0 : index
    %c0_62 = arith.constant 0 : index
    %c0_63 = arith.constant 0 : index
    %129 = vector.load %arg14[%c0_61, %c0_62, %c0_63] : memref<1x1x32xf32, #tpu.memory_space<vmem>>, vector<1x1x32xf32>
    %130 = vector.shape_cast %129 : vector<1x1x32xf32> to vector<1x32xf32>
    %cst_64 = arith.constant dense<0.000000e+00> : vector<128xf32>
    %131 = vector.multi_reduction <add>, %126, %cst_64 [1] : vector<128x32xf32> to vector<128xf32>
    %132 = vector.shape_cast %131 : vector<128xf32> to vector<128x1xf32>
    %cst_65 = arith.constant 3.200000e+01 : f32
    %133 = vector.broadcast %cst_65 : f32 to vector<128x1xf32>
    %134 = arith.divf %132, %133 : vector<128x1xf32>
    %135 = vector.broadcast %134 : vector<128x1xf32> to vector<128x32xf32>
    %136 = arith.subf %126, %135 : vector<128x32xf32>
    %137 = arith.mulf %136, %136 : vector<128x32xf32>
    %cst_66 = arith.constant dense<0.000000e+00> : vector<128xf32>
    %138 = vector.multi_reduction <add>, %137, %cst_66 [1] : vector<128x32xf32> to vector<128xf32>
    %139 = vector.shape_cast %138 : vector<128xf32> to vector<128x1xf32>
    %cst_67 = arith.constant 3.200000e+01 : f32
    %140 = vector.broadcast %cst_67 : f32 to vector<128x1xf32>
    %141 = arith.divf %139, %140 : vector<128x1xf32>
    %142 = vector.broadcast %134 : vector<128x1xf32> to vector<128x32xf32>
    %143 = arith.subf %126, %142 : vector<128x32xf32>
    %cst_68 = arith.constant 9.99999974E-6 : f32
    %144 = vector.broadcast %cst_68 : f32 to vector<128x1xf32>
    %145 = arith.addf %141, %144 : vector<128x1xf32>
    %146 = math.rsqrt %145 : vector<128x1xf32>
    %147 = vector.broadcast %146 : vector<128x1xf32> to vector<128x32xf32>
    %148 = arith.mulf %143, %147 : vector<128x32xf32>
    %149 = vector.broadcast %128 : vector<1x32xf32> to vector<128x32xf32>
    %150 = arith.mulf %148, %149 : vector<128x32xf32>
    %151 = vector.broadcast %130 : vector<1x32xf32> to vector<128x32xf32>
    %152 = arith.addf %150, %151 : vector<128x32xf32>
    %153 = arith.truncf %152 : vector<128x32xf32> to vector<128x32xbf16>
    %cst_69 = arith.constant dense<0.000000e+00> : vector<128x64xf32>
    %154 = tpu.matmul %153, %42, %cst_69 {dimension_numbers = #tpu.dot_dimension_numbers<[1], [0], [0], [1], [0, 0, 1, 1], [], []>} : vector<128x32xbf16>, vector<32x64xbf16>, vector<128x64xf32> -> vector<128x64xf32>
    %c0_70 = arith.constant 0 : index
    %c0_71 = arith.constant 0 : index
    %c0_72 = arith.constant 0 : index
    %155 = vector.load %arg16[%c0_70, %c0_71, %c0_72] : memref<1x1x64xf32, #tpu.memory_space<vmem>>, vector<1x1x64xf32>
    %156 = vector.shape_cast %155 : vector<1x1x64xf32> to vector<1x64xf32>
    %157 = vector.broadcast %156 : vector<1x64xf32> to vector<128x64xf32>
    %158 = arith.addf %154, %157 : vector<128x64xf32>
    %cst_73 = arith.constant 0.000000e+00 : f32
    %159 = vector.broadcast %cst_73 : f32 to vector<128x64xf32>
    %160 = arith.maximumf %158, %159 : vector<128x64xf32>
    %161 = arith.truncf %160 : vector<128x64xf32> to vector<128x64xbf16>
    %cst_74 = arith.constant dense<0.000000e+00> : vector<128x32xf32>
    %162 = tpu.matmul %161, %44, %cst_74 {dimension_numbers = #tpu.dot_dimension_numbers<[1], [0], [0], [1], [0, 0, 1, 1], [], []>} : vector<128x64xbf16>, vector<64x32xbf16>, vector<128x32xf32> -> vector<128x32xf32>
    %c0_75 = arith.constant 0 : index
    %c0_76 = arith.constant 0 : index
    %c0_77 = arith.constant 0 : index
    %163 = vector.load %arg18[%c0_75, %c0_76, %c0_77] : memref<1x1x32xf32, #tpu.memory_space<vmem>>, vector<1x1x32xf32>
    %164 = vector.shape_cast %163 : vector<1x1x32xf32> to vector<1x32xf32>
    %165 = vector.broadcast %164 : vector<1x32xf32> to vector<128x32xf32>
    %166 = arith.addf %162, %165 : vector<128x32xf32>
    %167 = arith.addf %152, %166 : vector<128x32xf32>
    %c0_78 = arith.constant 0 : index
    %c0_79 = arith.constant 0 : index
    %c0_80 = arith.constant 0 : index
    %168 = vector.load %arg19[%c0_78, %c0_79, %c0_80] : memref<1x1x32xf32, #tpu.memory_space<vmem>>, vector<1x1x32xf32>
    %169 = vector.shape_cast %168 : vector<1x1x32xf32> to vector<1x32xf32>
    %c0_81 = arith.constant 0 : index
    %c0_82 = arith.constant 0 : index
    %c0_83 = arith.constant 0 : index
    %170 = vector.load %arg20[%c0_81, %c0_82, %c0_83] : memref<1x1x32xf32, #tpu.memory_space<vmem>>, vector<1x1x32xf32>
    %171 = vector.shape_cast %170 : vector<1x1x32xf32> to vector<1x32xf32>
    %cst_84 = arith.constant dense<0.000000e+00> : vector<128xf32>
    %172 = vector.multi_reduction <add>, %167, %cst_84 [1] : vector<128x32xf32> to vector<128xf32>
    %173 = vector.shape_cast %172 : vector<128xf32> to vector<128x1xf32>
    %cst_85 = arith.constant 3.200000e+01 : f32
    %174 = vector.broadcast %cst_85 : f32 to vector<128x1xf32>
    %175 = arith.divf %173, %174 : vector<128x1xf32>
    %176 = vector.broadcast %175 : vector<128x1xf32> to vector<128x32xf32>
    %177 = arith.subf %167, %176 : vector<128x32xf32>
    %178 = arith.mulf %177, %177 : vector<128x32xf32>
    %cst_86 = arith.constant dense<0.000000e+00> : vector<128xf32>
    %179 = vector.multi_reduction <add>, %178, %cst_86 [1] : vector<128x32xf32> to vector<128xf32>
    %180 = vector.shape_cast %179 : vector<128xf32> to vector<128x1xf32>
    %cst_87 = arith.constant 3.200000e+01 : f32
    %181 = vector.broadcast %cst_87 : f32 to vector<128x1xf32>
    %182 = arith.divf %180, %181 : vector<128x1xf32>
    %183 = vector.broadcast %175 : vector<128x1xf32> to vector<128x32xf32>
    %184 = arith.subf %167, %183 : vector<128x32xf32>
    %cst_88 = arith.constant 9.99999974E-6 : f32
    %185 = vector.broadcast %cst_88 : f32 to vector<128x1xf32>
    %186 = arith.addf %182, %185 : vector<128x1xf32>
    %187 = math.rsqrt %186 : vector<128x1xf32>
    %188 = vector.broadcast %187 : vector<128x1xf32> to vector<128x32xf32>
    %189 = arith.mulf %184, %188 : vector<128x32xf32>
    %190 = vector.broadcast %169 : vector<1x32xf32> to vector<128x32xf32>
    %191 = arith.mulf %189, %190 : vector<128x32xf32>
    %192 = vector.broadcast %171 : vector<1x32xf32> to vector<128x32xf32>
    %193 = arith.addf %191, %192 : vector<128x32xf32>
    %194 = vector.shape_cast %193 : vector<128x32xf32> to vector<1x128x32xf32>
    %c0_89 = arith.constant 0 : index
    %c0_90 = arith.constant 0 : index
    %c0_91 = arith.constant 0 : index
    %195 = vector.load %arg22[%c0_89, %c0_90, %c0_91] : memref<1x128x32xf32, #tpu.memory_space<vmem>>, vector<1x128x32xf32>
    tpu.vector_store %arg22[%c0_89, %c0_90, %c0_91], %194 {strides = array<i32>} : memref<1x128x32xf32, #tpu.memory_space<vmem>>, vector<1x128x32xf32>,
    %c1_i32 = arith.constant 1 : i32
    %196 = arith.cmpi eq, %arg1, %c1_i32 : i32
    %197 = arith.extui %196 : i1 to i32
    %c0_i32_92 = arith.constant 0 : i32
    %198 = arith.cmpi ne, %197, %c0_i32_92 : i32
    scf.if %198 {
      %c0_93 = arith.constant 0 : index
      %c0_94 = arith.constant 0 : index
      %c0_95 = arith.constant 0 : index
      %199 = vector.load %arg22[%c0_93, %c0_94, %c0_95] : memref<1x128x32xf32, #tpu.memory_space<vmem>>, vector<1x128x32xf32>
      %c0_96 = arith.constant 0 : index
      %c0_97 = arith.constant 0 : index
      %c0_98 = arith.constant 0 : index
      %200 = vector.load %arg21[%c0_96, %c0_97, %c0_98] : memref<1x128x32xf32, #tpu.memory_space<vmem>>, vector<1x128x32xf32>
      tpu.vector_store %arg21[%c0_96, %c0_97, %c0_98], %199 {strides = array<i32>} : memref<1x128x32xf32, #tpu.memory_space<vmem>>, vector<1x128x32xf32>,
    } else {
    }
    return
  }
  func.func @transform_0(%arg0: i32, %arg1: i32) -> (i32, i32, i32) {
    %c0_i32 = arith.constant 0 : i32
    %c0_i32_0 = arith.constant 0 : i32
    %c0_i32_1 = arith.constant 0 : i32
    return %arg0, %c0_i32, %c0_i32_0 : i32, i32, i32
  }
  func.func @transform_1(%arg0: i32, %arg1: i32) -> (i32, i32, i32) {
    %c0_i32 = arith.constant 0 : i32
    %c0_i32_0 = arith.constant 0 : i32
    %c0_i32_1 = arith.constant 0 : i32
    return %arg0, %c0_i32, %c0_i32_0 : i32, i32, i32
  }
  func.func @transform_2(%arg0: i32, %arg1: i32) -> (i32, i32, i32) {
    %c0_i32 = arith.constant 0 : i32
    %c0_i32_0 = arith.constant 0 : i32
    %c0_i32_1 = arith.constant 0 : i32
    return %arg0, %c0_i32, %c0_i32_0 : i32, i32, i32
  }
  func.func @transform_3(%arg0: i32, %arg1: i32) -> (i32, i32, i32) {
    %c0_i32 = arith.constant 0 : i32
    %c0_i32_0 = arith.constant 0 : i32
    %c0_i32_1 = arith.constant 0 : i32
    return %arg1, %c0_i32, %c0_i32_0 : i32, i32, i32
  }
  func.func @transform_4(%arg0: i32, %arg1: i32) -> (i32, i32, i32) {
    %c0_i32 = arith.constant 0 : i32
    %c0_i32_0 = arith.constant 0 : i32
    %c0_i32_1 = arith.constant 0 : i32
    return %arg1, %c0_i32, %c0_i32_0 : i32, i32, i32
  }
  func.func @transform_5(%arg0: i32, %arg1: i32) -> (i32, i32, i32) {
    %c0_i32 = arith.constant 0 : i32
    %c0_i32_0 = arith.constant 0 : i32
    %c0_i32_1 = arith.constant 0 : i32
    return %arg1, %c0_i32, %c0_i32_0 : i32, i32, i32
  }
  func.func @transform_6(%arg0: i32, %arg1: i32) -> (i32, i32, i32) {
    %c0_i32 = arith.constant 0 : i32
    %c0_i32_0 = arith.constant 0 : i32
    %c0_i32_1 = arith.constant 0 : i32
    return %arg1, %c0_i32, %c0_i32_0 : i32, i32, i32
  }
  func.func @transform_7(%arg0: i32, %arg1: i32) -> (i32, i32, i32) {
    %c0_i32 = arith.constant 0 : i32
    %c0_i32_0 = arith.constant 0 : i32
    %c0_i32_1 = arith.constant 0 : i32
    return %arg1, %c0_i32, %c0_i32_0 : i32, i32, i32
  }
  func.func @transform_8(%arg0: i32, %arg1: i32) -> (i32, i32, i32) {
    %c0_i32 = arith.constant 0 : i32
    %c0_i32_0 = arith.constant 0 : i32
    %c0_i32_1 = arith.constant 0 : i32
    return %arg1, %c0_i32, %c0_i32_0 : i32, i32, i32
  }
  func.func @transform_9(%arg0: i32, %arg1: i32) -> (i32, i32, i32) {
    %c0_i32 = arith.constant 0 : i32
    %c0_i32_0 = arith.constant 0 : i32
    %c0_i32_1 = arith.constant 0 : i32
    return %arg1, %c0_i32, %c0_i32_0 : i32, i32, i32
  }
  func.func @transform_10(%arg0: i32, %arg1: i32) -> (i32, i32, i32) {
    %c0_i32 = arith.constant 0 : i32
    %c0_i32_0 = arith.constant 0 : i32
    %c0_i32_1 = arith.constant 0 : i32
    return %arg1, %c0_i32, %c0_i32_0 : i32, i32, i32
  }
  func.func @transform_11(%arg0: i32, %arg1: i32) -> (i32, i32, i32) {
    %c0_i32 = arith.constant 0 : i32
    %c0_i32_0 = arith.constant 0 : i32
    %c0_i32_1 = arith.constant 0 : i32
    return %arg1, %c0_i32, %c0_i32_0 : i32, i32, i32
  }
  func.func @transform_12(%arg0: i32, %arg1: i32) -> (i32, i32, i32) {
    %c0_i32 = arith.constant 0 : i32
    %c0_i32_0 = arith.constant 0 : i32
    %c0_i32_1 = arith.constant 0 : i32
    return %arg1, %c0_i32, %c0_i32_0 : i32, i32, i32
  }
  func.func @transform_13(%arg0: i32, %arg1: i32) -> (i32, i32, i32) {
    %c0_i32 = arith.constant 0 : i32
    %c0_i32_0 = arith.constant 0 : i32
    %c0_i32_1 = arith.constant 0 : i32
    return %arg1, %c0_i32, %c0_i32_0 : i32, i32, i32
  }
  func.func @transform_14(%arg0: i32, %arg1: i32) -> (i32, i32, i32) {
    %c0_i32 = arith.constant 0 : i32
    %c0_i32_0 = arith.constant 0 : i32
    %c0_i32_1 = arith.constant 0 : i32
    return %arg1, %c0_i32, %c0_i32_0 : i32, i32, i32
  }
  func.func @transform_15(%arg0: i32, %arg1: i32) -> (i32, i32, i32) {
    %c0_i32 = arith.constant 0 : i32
    %c0_i32_0 = arith.constant 0 : i32
    %c0_i32_1 = arith.constant 0 : i32
    return %arg1, %c0_i32, %c0_i32_0 : i32, i32, i32
  }
  func.func @transform_16(%arg0: i32, %arg1: i32) -> (i32, i32, i32) {
    %c0_i32 = arith.constant 0 : i32
    %c0_i32_0 = arith.constant 0 : i32
    %c0_i32_1 = arith.constant 0 : i32
    return %arg1, %c0_i32, %c0_i32_0 : i32, i32, i32
  }
  func.func @transform_17(%arg0: i32, %arg1: i32) -> (i32, i32, i32) {
    %c0_i32 = arith.constant 0 : i32
    %c0_i32_0 = arith.constant 0 : i32
    %c0_i32_1 = arith.constant 0 : i32
    return %arg1, %c0_i32, %c0_i32_0 : i32, i32, i32
  }
  func.func @transform_18(%arg0: i32, %arg1: i32) -> (i32, i32, i32) {
    %c0_i32 = arith.constant 0 : i32
    %c0_i32_0 = arith.constant 0 : i32
    %c0_i32_1 = arith.constant 0 : i32
    return %arg1, %c0_i32, %c0_i32_0 : i32, i32, i32
  }
  func.func @transform_19(%arg0: i32, %arg1: i32) -> (i32, i32, i32) {
    %c0_i32 = arith.constant 0 : i32
    %c0_i32_0 = arith.constant 0 : i32
    %c0_i32_1 = arith.constant 0 : i32
    return %arg0, %c0_i32, %c0_i32_0 : i32, i32, i32
  }
}

</mosaic_0001>

<llo_original>
// kernel: tpu_custom_call.1
$region0: #{tpu_custom_call.1}
  #allocation0 [shape = 'u32[]', space=smem, size = 0x4, offset = 0x4, fixed_abs, tag = 'smem constant byte address 0x4 - core index']
  #allocation1 [shape = 'u32[144,128]{1,0:T(1,128)}', space=vmem, size = 0x12000, scoped, tag = 'internal scratch']
  #allocation2 [shape = 'f32[1,128,32]{2,1,0:T(8,128)}', space=vmem, size = 0x10000, scoped, tag = 'scratch operand']
  %s0 = inlined_call_operand.vmem [shape: f32[2,128,32], index: 0, kind: input, shape index: {}]
  %s1 = inlined_call_operand.vmem [shape: bf16[2,128,32], index: 1, kind: input, shape index: {}]
  %s2 = inlined_call_operand.vmem [shape: f32[2,1,128], index: 2, kind: input, shape index: {}]
  %s3 = inlined_call_operand.vmem [shape: bf16[2,32,32], index: 3, kind: input, shape index: {}]
  %s4 = inlined_call_operand.vmem [shape: bf16[2,32,32], index: 4, kind: input, shape index: {}]
  %s5 = inlined_call_operand.vmem [shape: bf16[2,32,32], index: 5, kind: input, shape index: {}]
  %s6 = inlined_call_operand.vmem [shape: f32[2,1,32], index: 6, kind: input, shape index: {}]
  %s7 = inlined_call_operand.vmem [shape: f32[2,1,32], index: 7, kind: input, shape index: {}]
  %s8 = inlined_call_operand.vmem [shape: f32[2,1,32], index: 8, kind: input, shape index: {}]
  %s9 = inlined_call_operand.vmem [shape: bf16[2,32,32], index: 9, kind: input, shape index: {}]
  %s10 = inlined_call_operand.vmem [shape: f32[2,1,32], index: 10, kind: input, shape index: {}]
  %s11 = inlined_call_operand.vmem [shape: f32[2,1,32], index: 11, kind: input, shape index: {}]
  %s12 = inlined_call_operand.vmem [shape: f32[2,1,32], index: 12, kind: input, shape index: {}]
  %s13 = inlined_call_operand.vmem [shape: bf16[2,32,64], index: 13, kind: input, shape index: {}]
  %s14 = inlined_call_operand.vmem [shape: f32[2,1,64], index: 14, kind: input, shape index: {}]
  %s15 = inlined_call_operand.vmem [shape: bf16[2,64,32], index: 15, kind: input, shape index: {}]
  %s16 = inlined_call_operand.vmem [shape: f32[2,1,32], index: 16, kind: input, shape index: {}]
  %s17 = inlined_call_operand.vmem [shape: f32[2,1,32], index: 17, kind: input, shape index: {}]
  %s18 = inlined_call_operand.vmem [shape: f32[2,1,32], index: 18, kind: input, shape index: {}]
  %s19 = inlined_call_operand.vmem [shape: f32[2,128,32], index: 19, kind: output, shape index: {}]
  %s20 = sld [smem:[#allocation0]]
  $region117: #{tpu_custom_call.1} parent=0
    _
  %s22 = ssub.s32 1, %s20
  %s23 = scalar_select 0, %s22, %s20
  loop: start=0, step=1, limit=6
  $region2: #{tpu_custom_call.1} parent=0 // loop_pre_header
    _
  $region3: #{tpu_custom_call.1} parent=0 // loop_header
    %s25 = sphi 0, %s29
    %p26 = scmp.ge.s32.totalorder %s25, 6
    %s32 = sphi 0, %s44
    %s33 = sphi 0, %s40
    %s34 = sphi 0, %s32
    %s35 = sphi 0, %s33
    %s36 = sphi 0, %s34
    %s37 = sphi 0, %s35
    %s47 = sphi 0, %s49
    %s50 = sphi 0, %s47
    %s51 = sphi 0, %s50
    %s67 = sphi 0, %s51
    %s73 = sphi 0, %s75
    %s76 = sphi 0, %s73
    %s77 = sphi 0, %s76
    %s93 = sphi 0, %s77
    %s99 = sphi 0, %s101
    %s102 = sphi 0, %s99
    %s103 = sphi 0, %s102
    %s119 = sphi 0, %s103
    %s125 = sphi 0, %s127
    %s128 = sphi 0, %s125
    %s129 = sphi 0, %s128
    %s145 = sphi 0, %s129
    %s151 = sphi 0, %s153
    %s154 = sphi 0, %s151
    %s155 = sphi 0, %s154
    %s171 = sphi 0, %s155
    %s177 = sphi 0, %s179
    %s180 = sphi 0, %s177
    %s181 = sphi 0, %s180
    %s197 = sphi 0, %s181
    %s203 = sphi 0, %s205
    %s206 = sphi 0, %s203
    %s207 = sphi 0, %s206
    %s223 = sphi 0, %s207
    %s229 = sphi 0, %s231
    %s232 = sphi 0, %s229
    %s233 = sphi 0, %s232
    %s249 = sphi 0, %s233
    %s255 = sphi 0, %s257
    %s258 = sphi 0, %s255
    %s259 = sphi 0, %s258
    %s275 = sphi 0, %s259
    %s281 = sphi 0, %s283
    %s284 = sphi 0, %s281
    %s285 = sphi 0, %s284
    %s301 = sphi 0, %s285
    %s307 = sphi 0, %s309
    %s310 = sphi 0, %s307
    %s311 = sphi 0, %s310
    %s327 = sphi 0, %s311
    %s333 = sphi 0, %s335
    %s336 = sphi 0, %s333
    %s337 = sphi 0, %s336
    %s353 = sphi 0, %s337
    %s359 = sphi 0, %s361
    %s362 = sphi 0, %s359
    %s363 = sphi 0, %s362
    %s379 = sphi 0, %s363
    %s385 = sphi 0, %s387
    %s388 = sphi 0, %s385
    %s389 = sphi 0, %s388
    %s405 = sphi 0, %s389
    %s411 = sphi 0, %s413
    %s414 = sphi 0, %s411
    %s415 = sphi 0, %s414
    %s431 = sphi 0, %s415
    %s437 = sphi 0, %s439
    %s440 = sphi 0, %s437
    %s441 = sphi 0, %s440
    %s457 = sphi 0, %s441
    %s463 = sphi 0, %s465
    %s466 = sphi 0, %s463
    %s467 = sphi 0, %s466
    %s483 = sphi 0, %s467
    %s489 = sphi 0, %s491
    %s492 = sphi 0, %s489
    %s493 = sphi 0, %s492
    %s509 = sphi 0, %s493
    %s515 = sphi 0, %s517
    %s518 = sphi 0, %s515
    %s519 = sphi 0, %s518
    %s535 = sphi 0, %s519
    %s541 = sphi 0, %s543
    %s544 = sphi 0, %s541
    %s545 = sphi 0, %s544
    %s561 = sphi 0, %s545
  $region4: #{tpu_custom_call.1} parent=0 // loop_header_branch
    %28 = sbr.rel (%p26) target = $region8
  $region5: #{tpu_custom_call.1} parent=0 // loop_body
    %s30 = ssub.s32 %s25, 1
    %s31 = ssub.s32 %s25, 2
    %s38 = sadd.s32 1, %s33
    %p39 = scmp.ge.s32.totalorder %s38, 2
    %s40 = scalar_select %p39, 0, %s38
    %s41 = sadd.s32 1, %s32
    %s42 = scalar_select %p39, %s41, %s32
    %p43 = scmp.ge.s32.totalorder %s42, 2
    %s44 = scalar_select %p43, 0, %s42
    %s45 = ssub.s32 %s32, %s44
    %p46 = scmp.eq.s32.totalorder %s45, 0
    %s48 = sadd.s32 %s47, 1
    %s49 = scalar_select %p46, %s47, %s48
    %p52 = pneg %p46
    %p53 = scmp.eq.s32.totalorder %s25, 3
    %p54 = por %p52, %p53
    %p55 = scmp.ne.s32.totalorder %s47, %s50
    %p56 = scmp.eq.s32.totalorder %s25, 0
    %p57 = por %p55, %p56
    %p58 = scmp.ne.s32.totalorder %s47, %s50
    %p59 = scmp.eq.s32.totalorder %s30, 3
    %p60 = por %p58, %p59
    %p61 = scmp.ne.s32.totalorder %s50, %s51
    %p62 = scmp.eq.s32.totalorder %s30, 0
    %p63 = por %p61, %p62
    %p64 = scmp.ne.s32.totalorder %s50, %s51
    %p65 = scmp.eq.s32.totalorder %s31, 3
    %p66 = por %p64, %p65
    %p68 = scmp.ne.s32.totalorder %s51, %s67
    %p69 = scmp.eq.s32.totalorder %s31, 0
    %p70 = por %p68, %p69
    %s71 = ssub.s32 %s32, %s44
    %p72 = scmp.eq.s32.totalorder %s71, 0
    %s74 = sadd.s32 %s73, 1
    %s75 = scalar_select %p72, %s73, %s74
    %p78 = pneg %p72
    %p79 = scmp.eq.s32.totalorder %s25, 3
    %p80 = por %p78, %p79
    %p81 = scmp.ne.s32.totalorder %s73, %s76
    %p82 = scmp.eq.s32.totalorder %s25, 0
    %p83 = por %p81, %p82
    %p84 = scmp.ne.s32.totalorder %s73, %s76
    %p85 = scmp.eq.s32.totalorder %s30, 3
    %p86 = por %p84, %p85
    %p87 = scmp.ne.s32.totalorder %s76, %s77
    %p88 = scmp.eq.s32.totalorder %s30, 0
    %p89 = por %p87, %p88
    %p90 = scmp.ne.s32.totalorder %s76, %s77
    %p91 = scmp.eq.s32.totalorder %s31, 3
    %p92 = por %p90, %p91
    %p94 = scmp.ne.s32.totalorder %s77, %s93
    %p95 = scmp.eq.s32.totalorder %s31, 0
    %p96 = por %p94, %p95
    %s97 = ssub.s32 %s32, %s44
    %p98 = scmp.eq.s32.totalorder %s97, 0
    %s100 = sadd.s32 %s99, 1
    %s101 = scalar_select %p98, %s99, %s100
    %p104 = pneg %p98
    %p105 = scmp.eq.s32.totalorder %s25, 3
    %p106 = por %p104, %p105
    %p107 = scmp.ne.s32.totalorder %s99, %s102
    %p108 = scmp.eq.s32.totalorder %s25, 0
    %p109 = por %p107, %p108
    %p110 = scmp.ne.s32.totalorder %s99, %s102
    %p111 = scmp.eq.s32.totalorder %s30, 3
    %p112 = por %p110, %p111
    %p113 = scmp.ne.s32.totalorder %s102, %s103
    %p114 = scmp.eq.s32.totalorder %s30, 0
    %p115 = por %p113, %p114
    %p116 = scmp.ne.s32.totalorder %s102, %s103
    %p117 = scmp.eq.s32.totalorder %s31, 3
    %p118 = por %p116, %p117
    %p120 = scmp.ne.s32.totalorder %s103, %s119
    %p121 = scmp.eq.s32.totalorder %s31, 0
    %p122 = por %p120, %p121
    %s123 = ssub.s32 %s33, %s40
    %p124 = scmp.eq.s32.totalorder %s123, 0
    %s126 = sadd.s32 %s125, 1
    %s127 = scalar_select %p124, %s125, %s126
    %p130 = pneg %p124
    %p131 = scmp.eq.s32.totalorder %s25, 3
    %p132 = por %p130, %p131
    %p133 = scmp.ne.s32.totalorder %s125, %s128
    %p134 = scmp.eq.s32.totalorder %s25, 0
    %p135 = por %p133, %p134
    %p136 = scmp.ne.s32.totalorder %s125, %s128
    %p137 = scmp.eq.s32.totalorder %s30, 3
    %p138 = por %p136, %p137
    %p139 = scmp.ne.s32.totalorder %s128, %s129
    %p140 = scmp.eq.s32.totalorder %s30, 0
    %p141 = por %p139, %p140
    %p142 = scmp.ne.s32.totalorder %s128, %s129
    %p143 = scmp.eq.s32.totalorder %s31, 3
    %p144 = por %p142, %p143
    %p146 = scmp.ne.s32.totalorder %s129, %s145
    %p147 = scmp.eq.s32.totalorder %s31, 0
    %p148 = por %p146, %p147
    %s149 = ssub.s32 %s33, %s40
    %p150 = scmp.eq.s32.totalorder %s149, 0
    %s152 = sadd.s32 %s151, 1
    %s153 = scalar_select %p150, %s151, %s152
    %p156 = pneg %p150
    %p157 = scmp.eq.s32.totalorder %s25, 3
    %p158 = por %p156, %p157
    %p159 = scmp.ne.s32.totalorder %s151, %s154
    %p160 = scmp.eq.s32.totalorder %s25, 0
    %p161 = por %p159, %p160
    %p162 = scmp.ne.s32.totalorder %s151, %s154
    %p163 = scmp.eq.s32.totalorder %s30, 3
    %p164 = por %p162, %p163
    %p165 = scmp.ne.s32.totalorder %s154, %s155
    %p166 = scmp.eq.s32.totalorder %s30, 0
    %p167 = por %p165, %p166
    %p168 = scmp.ne.s32.totalorder %s154, %s155
    %p169 = scmp.eq.s32.totalorder %s31, 3
    %p170 = por %p168, %p169
    %p172 = scmp.ne.s32.totalorder %s155, %s171
    %p173 = scmp.eq.s32.totalorder %s31, 0
    %p174 = por %p172, %p173
    %s175 = ssub.s32 %s33, %s40
    %p176 = scmp.eq.s32.totalorder %s175, 0
    %s178 = sadd.s32 %s177, 1
    %s179 = scalar_select %p176, %s177, %s178
    %p182 = pneg %p176
    %p183 = scmp.eq.s32.totalorder %s25, 3
    %p184 = por %p182, %p183
    %p185 = scmp.ne.s32.totalorder %s177, %s180
    %p186 = scmp.eq.s32.totalorder %s25, 0
    %p187 = por %p185, %p186
    %p188 = scmp.ne.s32.totalorder %s177, %s180
    %p189 = scmp.eq.s32.totalorder %s30, 3
    %p190 = por %p188, %p189
    %p191 = scmp.ne.s32.totalorder %s180, %s181
    %p192 = scmp.eq.s32.totalorder %s30, 0
    %p193 = por %p191, %p192
    %p194 = scmp.ne.s32.totalorder %s180, %s181
    %p195 = scmp.eq.s32.totalorder %s31, 3
    %p196 = por %p194, %p195
    %p198 = scmp.ne.s32.totalorder %s181, %s197
    %p199 = scmp.eq.s32.totalorder %s31, 0
    %p200 = por %p198, %p199
    %s201 = ssub.s32 %s33, %s40
    %p202 = scmp.eq.s32.totalorder %s201, 0
    %s204 = sadd.s32 %s203, 1
    %s205 = scalar_select %p202, %s203, %s204
    %p208 = pneg %p202
    %p209 = scmp.eq.s32.totalorder %s25, 3
    %p210 = por %p208, %p209
    %p211 = scmp.ne.s32.totalorder %s203, %s206
    %p212 = scmp.eq.s32.totalorder %s25, 0
    %p213 = por %p211, %p212
    %p214 = scmp.ne.s32.totalorder %s203, %s206
    %p215 = scmp.eq.s32.totalorder %s30, 3
    %p216 = por %p214, %p215
    %p217 = scmp.ne.s32.totalorder %s206, %s207
    %p218 = scmp.eq.s32.totalorder %s30, 0
    %p219 = por %p217, %p218
    %p220 = scmp.ne.s32.totalorder %s206, %s207
    %p221 = scmp.eq.s32.totalorder %s31, 3
    %p222 = por %p220, %p221
    %p224 = scmp.ne.s32.totalorder %s207, %s223
    %p225 = scmp.eq.s32.totalorder %s31, 0
    %p226 = por %p224, %p225
    %s227 = ssub.s32 %s33, %s40
    %p228 = scmp.eq.s32.totalorder %s227, 0
    %s230 = sadd.s32 %s229, 1
    %s231 = scalar_select %p228, %s229, %s230
    %p234 = pneg %p228
    %p235 = scmp.eq.s32.totalorder %s25, 3
    %p236 = por %p234, %p235
    %p237 = scmp.ne.s32.totalorder %s229, %s232
    %p238 = scmp.eq.s32.totalorder %s25, 0
    %p239 = por %p237, %p238
    %p240 = scmp.ne.s32.totalorder %s229, %s232
    %p241 = scmp.eq.s32.totalorder %s30, 3
    %p242 = por %p240, %p241
    %p243 = scmp.ne.s32.totalorder %s232, %s233
    %p244 = scmp.eq.s32.totalorder %s30, 0
    %p245 = por %p243, %p244
    %p246 = scmp.ne.s32.totalorder %s232, %s233
    %p247 = scmp.eq.s32.totalorder %s31, 3
    %p248 = por %p246, %p247
    %p250 = scmp.ne.s32.totalorder %s233, %s249
    %p251 = scmp.eq.s32.totalorder %s31, 0
    %p252 = por %p250, %p251
    %s253 = ssub.s32 %s33, %s40
    %p254 = scmp.eq.s32.totalorder %s253, 0
    %s256 = sadd.s32 %s255, 1
    %s257 = scalar_select %p254, %s255, %s256
    %p260 = pneg %p254
    %p261 = scmp.eq.s32.totalorder %s25, 3
    %p262 = por %p260, %p261
    %p263 = scmp.ne.s32.totalorder %s255, %s258
    %p264 = scmp.eq.s32.totalorder %s25, 0
    %p265 = por %p263, %p264
    %p266 = scmp.ne.s32.totalorder %s255, %s258
    %p267 = scmp.eq.s32.totalorder %s30, 3
    %p268 = por %p266, %p267
    %p269 = scmp.ne.s32.totalorder %s258, %s259
    %p270 = scmp.eq.s32.totalorder %s30, 0
    %p271 = por %p269, %p270
    %p272 = scmp.ne.s32.totalorder %s258, %s259
    %p273 = scmp.eq.s32.totalorder %s31, 3
    %p274 = por %p272, %p273
    %p276 = scmp.ne.s32.totalorder %s259, %s275
    %p277 = scmp.eq.s32.totalorder %s31, 0
    %p278 = por %p276, %p277
    %s279 = ssub.s32 %s33, %s40
    %p280 = scmp.eq.s32.totalorder %s279, 0
    %s282 = sadd.s32 %s281, 1
    %s283 = scalar_select %p280, %s281, %s282
    %p286 = pneg %p280
    %p287 = scmp.eq.s32.totalorder %s25, 3
    %p288 = por %p286, %p287
    %p289 = scmp.ne.s32.totalorder %s281, %s284
    %p290 = scmp.eq.s32.totalorder %s25, 0
    %p291 = por %p289, %p290
    %p292 = scmp.ne.s32.totalorder %s281, %s284
    %p293 = scmp.eq.s32.totalorder %s30, 3
    %p294 = por %p292, %p293
    %p295 = scmp.ne.s32.totalorder %s284, %s285
    %p296 = scmp.eq.s32.totalorder %s30, 0
    %p297 = por %p295, %p296
    %p298 = scmp.ne.s32.totalorder %s284, %s285
    %p299 = scmp.eq.s32.totalorder %s31, 3
    %p300 = por %p298, %p299
    %p302 = scmp.ne.s32.totalorder %s285, %s301
    %p303 = scmp.eq.s32.totalorder %s31, 0
    %p304 = por %p302, %p303
    %s305 = ssub.s32 %s33, %s40
    %p306 = scmp.eq.s32.totalorder %s305, 0
    %s308 = sadd.s32 %s307, 1
    %s309 = scalar_select %p306, %s307, %s308
    %p312 = pneg %p306
    %p313 = scmp.eq.s32.totalorder %s25, 3
    %p314 = por %p312, %p313
    %p315 = scmp.ne.s32.totalorder %s307, %s310
    %p316 = scmp.eq.s32.totalorder %s25, 0
    %p317 = por %p315, %p316
    %p318 = scmp.ne.s32.totalorder %s307, %s310
    %p319 = scmp.eq.s32.totalorder %s30, 3
    %p320 = por %p318, %p319
    %p321 = scmp.ne.s32.totalorder %s310, %s311
    %p322 = scmp.eq.s32.totalorder %s30, 0
    %p323 = por %p321, %p322
    %p324 = scmp.ne.s32.totalorder %s310, %s311
    %p325 = scmp.eq.s32.totalorder %s31, 3
    %p326 = por %p324, %p325
    %p328 = scmp.ne.s32.totalorder %s311, %s327
    %p329 = scmp.eq.s32.totalorder %s31, 0
    %p330 = por %p328, %p329
    %s331 = ssub.s32 %s33, %s40
    %p332 = scmp.eq.s32.totalorder %s331, 0
    %s334 = sadd.s32 %s333, 1
    %s335 = scalar_select %p332, %s333, %s334
    %p338 = pneg %p332
    %p339 = scmp.eq.s32.totalorder %s25, 3
    %p340 = por %p338, %p339
    %p341 = scmp.ne.s32.totalorder %s333, %s336
    %p342 = scmp.eq.s32.totalorder %s25, 0
    %p343 = por %p341, %p342
    %p344 = scmp.ne.s32.totalorder %s333, %s336
    %p345 = scmp.eq.s32.totalorder %s30, 3
    %p346 = por %p344, %p345
    %p347 = scmp.ne.s32.totalorder %s336, %s337
    %p348 = scmp.eq.s32.totalorder %s30, 0
    %p349 = por %p347, %p348
    %p350 = scmp.ne.s32.totalorder %s336, %s337
    %p351 = scmp.eq.s32.totalorder %s31, 3
    %p352 = por %p350, %p351
    %p354 = scmp.ne.s32.totalorder %s337, %s353
    %p355 = scmp.eq.s32.totalorder %s31, 0
    %p356 = por %p354, %p355
    %s357 = ssub.s32 %s33, %s40
    %p358 = scmp.eq.s32.totalorder %s357, 0
    %s360 = sadd.s32 %s359, 1
    %s361 = scalar_select %p358, %s359, %s360
    %p364 = pneg %p358
    %p365 = scmp.eq.s32.totalorder %s25, 3
    %p366 = por %p364, %p365
    %p367 = scmp.ne.s32.totalorder %s359, %s362
    %p368 = scmp.eq.s32.totalorder %s25, 0
    %p369 = por %p367, %p368
    %p370 = scmp.ne.s32.totalorder %s359, %s362
    %p371 = scmp.eq.s32.totalorder %s30, 3
    %p372 = por %p370, %p371
    %p373 = scmp.ne.s32.totalorder %s362, %s363
    %p374 = scmp.eq.s32.totalorder %s30, 0
    %p375 = por %p373, %p374
    %p376 = scmp.ne.s32.totalorder %s362, %s363
    %p377 = scmp.eq.s32.totalorder %s31, 3
    %p378 = por %p376, %p377
    %p380 = scmp.ne.s32.totalorder %s363, %s379
    %p381 = scmp.eq.s32.totalorder %s31, 0
    %p382 = por %p380, %p381
    %s383 = ssub.s32 %s33, %s40
    %p384 = scmp.eq.s32.totalorder %s383, 0
    %s386 = sadd.s32 %s385, 1
    %s387 = scalar_select %p384, %s385, %s386
    %p390 = pneg %p384
    %p391 = scmp.eq.s32.totalorder %s25, 3
    %p392 = por %p390, %p391
    %p393 = scmp.ne.s32.totalorder %s385, %s388
    %p394 = scmp.eq.s32.totalorder %s25, 0
    %p395 = por %p393, %p394
    %p396 = scmp.ne.s32.totalorder %s385, %s388
    %p397 = scmp.eq.s32.totalorder %s30, 3
    %p398 = por %p396, %p397
    %p399 = scmp.ne.s32.totalorder %s388, %s389
    %p400 = scmp.eq.s32.totalorder %s30, 0
    %p401 = por %p399, %p400
    %p402 = scmp.ne.s32.totalorder %s388, %s389
    %p403 = scmp.eq.s32.totalorder %s31, 3
    %p404 = por %p402, %p403
    %p406 = scmp.ne.s32.totalorder %s389, %s405
    %p407 = scmp.eq.s32.totalorder %s31, 0
    %p408 = por %p406, %p407
    %s409 = ssub.s32 %s33, %s40
    %p410 = scmp.eq.s32.totalorder %s409, 0
    %s412 = sadd.s32 %s411, 1
    %s413 = scalar_select %p410, %s411, %s412
    %p416 = pneg %p410
    %p417 = scmp.eq.s32.totalorder %s25, 3
    %p418 = por %p416, %p417
    %p419 = scmp.ne.s32.totalorder %s411, %s414
    %p420 = scmp.eq.s32.totalorder %s25, 0
    %p421 = por %p419, %p420
    %p422 = scmp.ne.s32.totalorder %s411, %s414
    %p423 = scmp.eq.s32.totalorder %s30, 3
    %p424 = por %p422, %p423
    %p425 = scmp.ne.s32.totalorder %s414, %s415
    %p426 = scmp.eq.s32.totalorder %s30, 0
    %p427 = por %p425, %p426
    %p428 = scmp.ne.s32.totalorder %s414, %s415
    %p429 = scmp.eq.s32.totalorder %s31, 3
    %p430 = por %p428, %p429
    %p432 = scmp.ne.s32.totalorder %s415, %s431
    %p433 = scmp.eq.s32.totalorder %s31, 0
    %p434 = por %p432, %p433
    %s435 = ssub.s32 %s33, %s40
    %p436 = scmp.eq.s32.totalorder %s435, 0
    %s438 = sadd.s32 %s437, 1
    %s439 = scalar_select %p436, %s437, %s438
    %p442 = pneg %p436
    %p443 = scmp.eq.s32.totalorder %s25, 3
    %p444 = por %p442, %p443
    %p445 = scmp.ne.s32.totalorder %s437, %s440
    %p446 = scmp.eq.s32.totalorder %s25, 0
    %p447 = por %p445, %p446
    %p448 = scmp.ne.s32.totalorder %s437, %s440
    %p449 = scmp.eq.s32.totalorder %s30, 3
    %p450 = por %p448, %p449
    %p451 = scmp.ne.s32.totalorder %s440, %s441
    %p452 = scmp.eq.s32.totalorder %s30, 0
    %p453 = por %p451, %p452
    %p454 = scmp.ne.s32.totalorder %s440, %s441
    %p455 = scmp.eq.s32.totalorder %s31, 3
    %p456 = por %p454, %p455
    %p458 = scmp.ne.s32.totalorder %s441, %s457
    %p459 = scmp.eq.s32.totalorder %s31, 0
    %p460 = por %p458, %p459
    %s461 = ssub.s32 %s33, %s40
    %p462 = scmp.eq.s32.totalorder %s461, 0
    %s464 = sadd.s32 %s463, 1
    %s465 = scalar_select %p462, %s463, %s464
    %p468 = pneg %p462
    %p469 = scmp.eq.s32.totalorder %s25, 3
    %p470 = por %p468, %p469
    %p471 = scmp.ne.s32.totalorder %s463, %s466
    %p472 = scmp.eq.s32.totalorder %s25, 0
    %p473 = por %p471, %p472
    %p474 = scmp.ne.s32.totalorder %s463, %s466
    %p475 = scmp.eq.s32.totalorder %s30, 3
    %p476 = por %p474, %p475
    %p477 = scmp.ne.s32.totalorder %s466, %s467
    %p478 = scmp.eq.s32.totalorder %s30, 0
    %p479 = por %p477, %p478
    %p480 = scmp.ne.s32.totalorder %s466, %s467
    %p481 = scmp.eq.s32.totalorder %s31, 3
    %p482 = por %p480, %p481
    %p484 = scmp.ne.s32.totalorder %s467, %s483
    %p485 = scmp.eq.s32.totalorder %s31, 0
    %p486 = por %p484, %p485
    %s487 = ssub.s32 %s33, %s40
    %p488 = scmp.eq.s32.totalorder %s487, 0
    %s490 = sadd.s32 %s489, 1
    %s491 = scalar_select %p488, %s489, %s490
    %p494 = pneg %p488
    %p495 = scmp.eq.s32.totalorder %s25, 3
    %p496 = por %p494, %p495
    %p497 = scmp.ne.s32.totalorder %s489, %s492
    %p498 = scmp.eq.s32.totalorder %s25, 0
    %p499 = por %p497, %p498
    %p500 = scmp.ne.s32.totalorder %s489, %s492
    %p501 = scmp.eq.s32.totalorder %s30, 3
    %p502 = por %p500, %p501
    %p503 = scmp.ne.s32.totalorder %s492, %s493
    %p504 = scmp.eq.s32.totalorder %s30, 0
    %p505 = por %p503, %p504
    %p506 = scmp.ne.s32.totalorder %s492, %s493
    %p507 = scmp.eq.s32.totalorder %s31, 3
    %p508 = por %p506, %p507
    %p510 = scmp.ne.s32.totalorder %s493, %s509
    %p511 = scmp.eq.s32.totalorder %s31, 0
    %p512 = por %p510, %p511
    %s513 = ssub.s32 %s33, %s40
    %p514 = scmp.eq.s32.totalorder %s513, 0
    %s516 = sadd.s32 %s515, 1
    %s517 = scalar_select %p514, %s515, %s516
    %p520 = pneg %p514
    %p521 = scmp.eq.s32.totalorder %s25, 3
    %p522 = por %p520, %p521
    %p523 = scmp.ne.s32.totalorder %s515, %s518
    %p524 = scmp.eq.s32.totalorder %s25, 0
    %p525 = por %p523, %p524
    %p526 = scmp.ne.s32.totalorder %s515, %s518
    %p527 = scmp.eq.s32.totalorder %s30, 3
    %p528 = por %p526, %p527
    %p529 = scmp.ne.s32.totalorder %s518, %s519
    %p530 = scmp.eq.s32.totalorder %s30, 0
    %p531 = por %p529, %p530
    %p532 = scmp.ne.s32.totalorder %s518, %s519
    %p533 = scmp.eq.s32.totalorder %s31, 3
    %p534 = por %p532, %p533
    %p536 = scmp.ne.s32.totalorder %s519, %s535
    %p537 = scmp.eq.s32.totalorder %s31, 0
    %p538 = por %p536, %p537
    %s539 = ssub.s32 %s32, %s44
    %p540 = scmp.eq.s32.totalorder %s539, 0
    %s542 = sadd.s32 %s541, 1
    %s543 = scalar_select %p540, %s541, %s542
    %p546 = pneg %p540
    %p547 = scmp.eq.s32.totalorder %s25, 3
    %p548 = por %p546, %p547
    %p549 = scmp.ne.s32.totalorder %s541, %s544
    %p550 = scmp.eq.s32.totalorder %s25, 0
    %p551 = por %p549, %p550
    %p552 = scmp.ne.s32.totalorder %s541, %s544
    %p553 = scmp.eq.s32.totalorder %s30, 3
    %p554 = por %p552, %p553
    %p555 = scmp.ne.s32.totalorder %s544, %s545
    %p556 = scmp.eq.s32.totalorder %s30, 0
    %p557 = por %p555, %p556
    %p558 = scmp.ne.s32.totalorder %s544, %s545
    %p559 = scmp.eq.s32.totalorder %s31, 3
    %p560 = por %p558, %p559
    %p562 = scmp.ne.s32.totalorder %s545, %s561
    %p563 = scmp.eq.s32.totalorder %s31, 0
    %p564 = por %p562, %p563
    %p565 = scmp.le.s32.totalorder 1, %s25
    %p566 = scmp.lt.s32.totalorder %s25, 5
    %p567 = pnand %p565, %p566
    %p568 = pneg %p567
    // Predicated region
    $region9: #{tpu_custom_call.1} parent=5 // pred_check
      _
    $region10: #{tpu_custom_call.1} parent=5 // pred_check_branch
      %570 = sbr.rel (%p567) target = $region12
    $region11: #{tpu_custom_call.1} parent=5 // pred_region
      %s571 = ssub.s32 %s25, 1
    $region12: #{tpu_custom_call.1} parent=5 // pred_fallthru
      _
    %p572 = scmp.lt.s32.totalorder %s25, 4
    // Predicated region
    $region13: #{tpu_custom_call.1} parent=5 // pred_check
      %p573 = pneg %p572
    $region14: #{tpu_custom_call.1} parent=5 // pred_check_branch
      %575 = sbr.rel (%p573) target = $region16
    $region15: #{tpu_custom_call.1} parent=5 // pred_region
      // Predicated region
      $region17: #{tpu_custom_call.1} parent=15 // pred_check
        %p576 = pneg %p57
      $region18: #{tpu_custom_call.1} parent=15 // pred_check_branch
        %578 = sbr.rel (%p576) target = $region20
      $region19: #{tpu_custom_call.1} parent=15 // pred_region
        %p579 = scmp.lt.s32.totalorder %s32, 1
        %s580 = scalar_select %p579, %s32, 1
        %s581 = smul.addr %s580, 16
        %s582 = smul.addr %s581, 8
        %s583 = scalar_lea.vmem %s0, %s582
      $region20: #{tpu_custom_call.1} parent=15 // pred_fallthru
        _
      // Predicated region
      $region21: #{tpu_custom_call.1} parent=15 // pred_check
        %p584 = pneg %p83
      $region22: #{tpu_custom_call.1} parent=15 // pred_check_branch
        %586 = sbr.rel (%p584) target = $region24
      $region23: #{tpu_custom_call.1} parent=15 // pred_region
        %p587 = scmp.lt.s32.totalorder %s32, 1
        %s588 = scalar_select %p587, %s32, 1
        %s589 = smul.addr %s588, 16
        %s590 = smul.addr %s589, 4
        %s591 = scalar_lea.vmem %s1, %s590
      $region24: #{tpu_custom_call.1} parent=15 // pred_fallthru
        _
      // Predicated region
      $region25: #{tpu_custom_call.1} parent=15 // pred_check
        %p592 = pneg %p109
      $region26: #{tpu_custom_call.1} parent=15 // pred_check_branch
        %594 = sbr.rel (%p592) target = $region28
      $region27: #{tpu_custom_call.1} parent=15 // pred_region
        %p595 = scmp.lt.s32.totalorder %s32, 1
        %s596 = scalar_select %p595, %s32, 1
        %s597 = scalar_lea.vmem %s2, %s596
      $region28: #{tpu_custom_call.1} parent=15 // pred_fallthru
        _
      // Predicated region
      $region29: #{tpu_custom_call.1} parent=15 // pred_check
        %p598 = pneg %p135
      $region30: #{tpu_custom_call.1} parent=15 // pred_check_branch
        %600 = sbr.rel (%p598) target = $region32
      $region31: #{tpu_custom_call.1} parent=15 // pred_region
        %p601 = scmp.lt.s32.totalorder %s33, 1
        %s602 = scalar_select %p601, %s33, 1
        %s603 = smul.addr %s602, 4
        %s604 = smul.addr %s603, 4
        %s605 = scalar_lea.vmem %s3, %s604
      $region32: #{tpu_custom_call.1} parent=15 // pred_fallthru
        _
      // Predicated region
      $region33: #{tpu_custom_call.1} parent=15 // pred_check
        %p606 = pneg %p161
      $region34: #{tpu_custom_call.1} parent=15 // pred_check_branch
        %608 = sbr.rel (%p606) target = $region36
      $region35: #{tpu_custom_call.1} parent=15 // pred_region
        %p609 = scmp.lt.s32.totalorder %s33, 1
        %s610 = scalar_select %p609, %s33, 1
        %s611 = smul.addr %s610, 4
        %s612 = smul.addr %s611, 4
        %s613 = scalar_lea.vmem %s4, %s612
      $region36: #{tpu_custom_call.1} parent=15 // pred_fallthru
        _
      // Predicated region
      $region37: #{tpu_custom_call.1} parent=15 // pred_check
        %p614 = pneg %p187
      $region38: #{tpu_custom_call.1} parent=15 // pred_check_branch
        %616 = sbr.rel (%p614) target = $region40
      $region39: #{tpu_custom_call.1} parent=15 // pred_region
        %p617 = scmp.lt.s32.totalorder %s33, 1
        %s618 = scalar_select %p617, %s33, 1
        %s619 = smul.addr %s618, 4
        %s620 = smul.addr %s619, 4
        %s621 = scalar_lea.vmem %s5, %s620
      $region40: #{tpu_custom_call.1} parent=15 // pred_fallthru
        _
      // Predicated region
      $region41: #{tpu_custom_call.1} parent=15 // pred_check
        %p622 = pneg %p213
      $region42: #{tpu_custom_call.1} parent=15 // pred_check_branch
        %624 = sbr.rel (%p622) target = $region44
      $region43: #{tpu_custom_call.1} parent=15 // pred_region
        %p625 = scmp.lt.s32.totalorder %s33, 1
        %s626 = scalar_select %p625, %s33, 1
        %s627 = scalar_lea.vmem %s6, %s626
      $region44: #{tpu_custom_call.1} parent=15 // pred_fallthru
        _
      // Predicated region
      $region45: #{tpu_custom_call.1} parent=15 // pred_check
        %p628 = pneg %p239
      $region46: #{tpu_custom_call.1} parent=15 // pred_check_branch
        %630 = sbr.rel (%p628) target = $region48
      $region47: #{tpu_custom_call.1} parent=15 // pred_region
        %p631 = scmp.lt.s32.totalorder %s33, 1
        %s632 = scalar_select %p631, %s33, 1
        %s633 = scalar_lea.vmem %s7, %s632
      $region48: #{tpu_custom_call.1} parent=15 // pred_fallthru
        _
      // Predicated region
      $region49: #{tpu_custom_call.1} parent=15 // pred_check
        %p634 = pneg %p265
      $region50: #{tpu_custom_call.1} parent=15 // pred_check_branch
        %636 = sbr.rel (%p634) target = $region52
      $region51: #{tpu_custom_call.1} parent=15 // pred_region
        %p637 = scmp.lt.s32.totalorder %s33, 1
        %s638 = scalar_select %p637, %s33, 1
        %s639 = scalar_lea.vmem %s8, %s638
      $region52: #{tpu_custom_call.1} parent=15 // pred_fallthru
        _
      // Predicated region
      $region53: #{tpu_custom_call.1} parent=15 // pred_check
        %p640 = pneg %p291
      $region54: #{tpu_custom_call.1} parent=15 // pred_check_branch
        %642 = sbr.rel (%p640) target = $region56
      $region55: #{tpu_custom_call.1} parent=15 // pred_region
        %p643 = scmp.lt.s32.totalorder %s33, 1
        %s644 = scalar_select %p643, %s33, 1
        %s645 = smul.addr %s644, 4
        %s646 = smul.addr %s645, 4
        %s647 = scalar_lea.vmem %s9, %s646
      $region56: #{tpu_custom_call.1} parent=15 // pred_fallthru
        _
      // Predicated region
      $region57: #{tpu_custom_call.1} parent=15 // pred_check
        %p648 = pneg %p317
      $region58: #{tpu_custom_call.1} parent=15 // pred_check_branch
        %650 = sbr.rel (%p648) target = $region60
      $region59: #{tpu_custom_call.1} parent=15 // pred_region
        %p651 = scmp.lt.s32.totalorder %s33, 1
        %s652 = scalar_select %p651, %s33, 1
        %s653 = scalar_lea.vmem %s10, %s652
      $region60: #{tpu_custom_call.1} parent=15 // pred_fallthru
        _
      // Predicated region
      $region61: #{tpu_custom_call.1} parent=15 // pred_check
        %p654 = pneg %p343
      $region62: #{tpu_custom_call.1} parent=15 // pred_check_branch
        %656 = sbr.rel (%p654) target = $region64
      $region63: #{tpu_custom_call.1} parent=15 // pred_region
        %p657 = scmp.lt.s32.totalorder %s33, 1
        %s658 = scalar_select %p657, %s33, 1
        %s659 = scalar_lea.vmem %s11, %s658
      $region64: #{tpu_custom_call.1} parent=15 // pred_fallthru
        _
      // Predicated region
      $region65: #{tpu_custom_call.1} parent=15 // pred_check
        %p660 = pneg %p369
      $region66: #{tpu_custom_call.1} parent=15 // pred_check_branch
        %662 = sbr.rel (%p660) target = $region68
      $region67: #{tpu_custom_call.1} parent=15 // pred_region
        %p663 = scmp.lt.s32.totalorder %s33, 1
        %s664 = scalar_select %p663, %s33, 1
        %s665 = scalar_lea.vmem %s12, %s664
      $region68: #{tpu_custom_call.1} parent=15 // pred_fallthru
        _
      // Predicated region
      $region69: #{tpu_custom_call.1} parent=15 // pred_check
        %p666 = pneg %p395
      $region70: #{tpu_custom_call.1} parent=15 // pred_check_branch
        %668 = sbr.rel (%p666) target = $region72
      $region71: #{tpu_custom_call.1} parent=15 // pred_region
        %p669 = scmp.lt.s32.totalorder %s33, 1
        %s670 = scalar_select %p669, %s33, 1
        %s671 = smul.addr %s670, 4
        %s672 = smul.addr %s671, 4
        %s673 = scalar_lea.vmem %s13, %s672
      $region72: #{tpu_custom_call.1} parent=15 // pred_fallthru
        _
      // Predicated region
      $region73: #{tpu_custom_call.1} parent=15 // pred_check
        %p674 = pneg %p421
      $region74: #{tpu_custom_call.1} parent=15 // pred_check_branch
        %676 = sbr.rel (%p674) target = $region76
      $region75: #{tpu_custom_call.1} parent=15 // pred_region
        %p677 = scmp.lt.s32.totalorder %s33, 1
        %s678 = scalar_select %p677, %s33, 1
        %s679 = scalar_lea.vmem %s14, %s678
      $region76: #{tpu_custom_call.1} parent=15 // pred_fallthru
        _
      // Predicated region
      $region77: #{tpu_custom_call.1} parent=15 // pred_check
        %p680 = pneg %p447
      $region78: #{tpu_custom_call.1} parent=15 // pred_check_branch
        %682 = sbr.rel (%p680) target = $region80
      $region79: #{tpu_custom_call.1} parent=15 // pred_region
        %p683 = scmp.lt.s32.totalorder %s33, 1
        %s684 = scalar_select %p683, %s33, 1
        %s685 = smul.addr %s684, 8
        %s686 = smul.addr %s685, 4
        %s687 = scalar_lea.vmem %s15, %s686
      $region80: #{tpu_custom_call.1} parent=15 // pred_fallthru
        _
      // Predicated region
      $region81: #{tpu_custom_call.1} parent=15 // pred_check
        %p688 = pneg %p473
      $region82: #{tpu_custom_call.1} parent=15 // pred_check_branch
        %690 = sbr.rel (%p688) target = $region84
      $region83: #{tpu_custom_call.1} parent=15 // pred_region
        %p691 = scmp.lt.s32.totalorder %s33, 1
        %s692 = scalar_select %p691, %s33, 1
        %s693 = scalar_lea.vmem %s16, %s692
      $region84: #{tpu_custom_call.1} parent=15 // pred_fallthru
        _
      // Predicated region
      $region85: #{tpu_custom_call.1} parent=15 // pred_check
        %p694 = pneg %p499
      $region86: #{tpu_custom_call.1} parent=15 // pred_check_branch
        %696 = sbr.rel (%p694) target = $region88
      $region87: #{tpu_custom_call.1} parent=15 // pred_region
        %p697 = scmp.lt.s32.totalorder %s33, 1
        %s698 = scalar_select %p697, %s33, 1
        %s699 = scalar_lea.vmem %s17, %s698
      $region88: #{tpu_custom_call.1} parent=15 // pred_fallthru
        _
      // Predicated region
      $region89: #{tpu_custom_call.1} parent=15 // pred_check
        %p700 = pneg %p525
      $region90: #{tpu_custom_call.1} parent=15 // pred_check_branch
        %702 = sbr.rel (%p700) target = $region92
      $region91: #{tpu_custom_call.1} parent=15 // pred_region
        %p703 = scmp.lt.s32.totalorder %s33, 1
        %s704 = scalar_select %p703, %s33, 1
        %s705 = scalar_lea.vmem %s18, %s704
      $region92: #{tpu_custom_call.1} parent=15 // pred_fallthru
        _
    $region16: #{tpu_custom_call.1} parent=5 // pred_fallthru
      _
    %p706 = scmp.le.s32.totalorder 1, %s25
    %p707 = scmp.lt.s32.totalorder %s25, 5
    %p708 = pnand %p706, %p707
    %p709 = pneg %p708
    // Predicated region
    $region93: #{tpu_custom_call.1} parent=5 // pred_check
      _
    $region94: #{tpu_custom_call.1} parent=5 // pred_check_branch
      %711 = sbr.rel (%p708) target = $region96
    $region95: #{tpu_custom_call.1} parent=5 // pred_region
      %s712 = ssub.s32 %s25, 1
      %p713 = scmp.lt.s32.totalorder %s34, 1
      %s714 = scalar_select %p713, %s34, 1
      %s715 = smul.addr %s714, 16
      %s716 = smul.addr %s715, 8
      %s717 = scalar_lea.vmem %s0, %s716
      %p718 = pneg %p63
      %p719 = pneg %p60
      %p720 = scmp.lt.s32.totalorder %s34, 1
      %s721 = scalar_select %p720, %s34, 1
      %s722 = smul.addr %s721, 16
      %s723 = smul.addr %s722, 4
      %s724 = scalar_lea.vmem %s1, %s723
      %p725 = pneg %p89
      %p726 = pneg %p86
      %p727 = scmp.lt.s32.totalorder %s34, 1
      %s728 = scalar_select %p727, %s34, 1
      %s729 = scalar_lea.vmem %s2, %s728
      %p730 = pneg %p115
      %p731 = pneg %p112
      %p732 = scmp.lt.s32.totalorder %s35, 1
      %s733 = scalar_select %p732, %s35, 1
      %s734 = smul.addr %s733, 4
      %s735 = smul.addr %s734, 4
      %s736 = scalar_lea.vmem %s3, %s735
      %p737 = pneg %p141
      %p738 = pneg %p138
      %p739 = scmp.lt.s32.totalorder %s35, 1
      %s740 = scalar_select %p739, %s35, 1
      %s741 = smul.addr %s740, 4
      %s742 = smul.addr %s741, 4
      %s743 = scalar_lea.vmem %s4, %s742
      %p744 = pneg %p167
      %p745 = pneg %p164
      %p746 = scmp.lt.s32.totalorder %s35, 1
      %s747 = scalar_select %p746, %s35, 1
      %s748 = smul.addr %s747, 4
      %s749 = smul.addr %s748, 4
      %s750 = scalar_lea.vmem %s5, %s749
      %p751 = pneg %p193
      %p752 = pneg %p190
      %p753 = scmp.lt.s32.totalorder %s35, 1
      %s754 = scalar_select %p753, %s35, 1
      %s755 = scalar_lea.vmem %s6, %s754
      %p756 = pneg %p219
      %p757 = pneg %p216
      %p758 = scmp.lt.s32.totalorder %s35, 1
      %s759 = scalar_select %p758, %s35, 1
      %s760 = scalar_lea.vmem %s7, %s759
      %p761 = pneg %p245
      %p762 = pneg %p242
      %p763 = scmp.lt.s32.totalorder %s35, 1
      %s764 = scalar_select %p763, %s35, 1
      %s765 = scalar_lea.vmem %s8, %s764
      %p766 = pneg %p271
      %p767 = pneg %p268
      %p768 = scmp.lt.s32.totalorder %s35, 1
      %s769 = scalar_select %p768, %s35, 1
      %s770 = smul.addr %s769, 4
      %s771 = smul.addr %s770, 4
      %s772 = scalar_lea.vmem %s9, %s771
      %p773 = pneg %p297
      %p774 = pneg %p294
      %p775 = scmp.lt.s32.totalorder %s35, 1
      %s776 = scalar_select %p775, %s35, 1
      %s777 = scalar_lea.vmem %s10, %s776
      %p778 = pneg %p323
      %p779 = pneg %p320
      %p780 = scmp.lt.s32.totalorder %s35, 1
      %s781 = scalar_select %p780, %s35, 1
      %s782 = scalar_lea.vmem %s11, %s781
      %p783 = pneg %p349
      %p784 = pneg %p346
      %p785 = scmp.lt.s32.totalorder %s35, 1
      %s786 = scalar_select %p785, %s35, 1
      %s787 = scalar_lea.vmem %s12, %s786
      %p788 = pneg %p375
      %p789 = pneg %p372
      %p790 = scmp.lt.s32.totalorder %s35, 1
      %s791 = scalar_select %p790, %s35, 1
      %s792 = smul.addr %s791, 4
      %s793 = smul.addr %s792, 4
      %s794 = scalar_lea.vmem %s13, %s793
      %p795 = pneg %p401
      %p796 = pneg %p398
      %p797 = scmp.lt.s32.totalorder %s35, 1
      %s798 = scalar_select %p797, %s35, 1
      %s799 = scalar_lea.vmem %s14, %s798
      %p800 = pneg %p427
      %p801 = pneg %p424
      %p802 = scmp.lt.s32.totalorder %s35, 1
      %s803 = scalar_select %p802, %s35, 1
      %s804 = smul.addr %s803, 8
      %s805 = smul.addr %s804, 4
      %s806 = scalar_lea.vmem %s15, %s805
      %p807 = pneg %p453
      %p808 = pneg %p450
      %p809 = scmp.lt.s32.totalorder %s35, 1
      %s810 = scalar_select %p809, %s35, 1
      %s811 = scalar_lea.vmem %s16, %s810
      %p812 = pneg %p479
      %p813 = pneg %p476
      %p814 = scmp.lt.s32.totalorder %s35, 1
      %s815 = scalar_select %p814, %s35, 1
      %s816 = scalar_lea.vmem %s17, %s815
      %p817 = pneg %p505
      %p818 = pneg %p502
      %p819 = scmp.lt.s32.totalorder %s35, 1
      %s820 = scalar_select %p819, %s35, 1
      %s821 = scalar_lea.vmem %s18, %s820
      %p822 = pneg %p531
      %p823 = pneg %p528
      %p824 = pneg %p557
      %p825 = pneg %p554
      %p826 = scmp.lt.s32.totalorder %s34, 1
      %s827 = scalar_select %p826, %s34, 1
      %s828 = smul.addr %s827, 16
      %s829 = smul.addr %s828, 8
      %s830 = scalar_lea.vmem %s19, %s829
      %p831 = scmp.lt.s32.totalorder %s34, 1
      %s832 = scalar_select %p831, %s34, 1
      %s833 = smul.addr %s832, 16
      %s834 = smul.addr %s833, 8
      %s835 = scalar_lea.vmem %s0, %s834
      %p836 = scmp.lt.s32.totalorder %s34, 1
      %s837 = scalar_select %p836, %s34, 1
      %s838 = smul.addr %s837, 16
      %s839 = smul.addr %s838, 4
      %s840 = scalar_lea.vmem %s1, %s839
      %p841 = scmp.lt.s32.totalorder %s34, 1
      %s842 = scalar_select %p841, %s34, 1
      %s843 = scalar_lea.vmem %s2, %s842
      %p844 = scmp.lt.s32.totalorder %s35, 1
      %s845 = scalar_select %p844, %s35, 1
      %s846 = smul.addr %s845, 4
      %s847 = smul.addr %s846, 4
      %s848 = scalar_lea.vmem %s3, %s847
      %p849 = scmp.lt.s32.totalorder %s35, 1
      %s850 = scalar_select %p849, %s35, 1
      %s851 = smul.addr %s850, 4
      %s852 = smul.addr %s851, 4
      %s853 = scalar_lea.vmem %s4, %s852
      %p854 = scmp.lt.s32.totalorder %s35, 1
      %s855 = scalar_select %p854, %s35, 1
      %s856 = smul.addr %s855, 4
      %s857 = smul.addr %s856, 4
      %s858 = scalar_lea.vmem %s5, %s857
      %p859 = scmp.lt.s32.totalorder %s35, 1
      %s860 = scalar_select %p859, %s35, 1
      %s861 = scalar_lea.vmem %s6, %s860
      %p862 = scmp.lt.s32.totalorder %s35, 1
      %s863 = scalar_select %p862, %s35, 1
      %s864 = scalar_lea.vmem %s7, %s863
      %p865 = scmp.lt.s32.totalorder %s35, 1
      %s866 = scalar_select %p865, %s35, 1
      %s867 = scalar_lea.vmem %s8, %s866
      %p868 = scmp.lt.s32.totalorder %s35, 1
      %s869 = scalar_select %p868, %s35, 1
      %s870 = smul.addr %s869, 4
      %s871 = smul.addr %s870, 4
      %s872 = scalar_lea.vmem %s9, %s871
      %p873 = scmp.lt.s32.totalorder %s35, 1
      %s874 = scalar_select %p873, %s35, 1
      %s875 = scalar_lea.vmem %s10, %s874
      %p876 = scmp.lt.s32.totalorder %s35, 1
      %s877 = scalar_select %p876, %s35, 1
      %s878 = scalar_lea.vmem %s11, %s877
      %p879 = scmp.lt.s32.totalorder %s35, 1
      %s880 = scalar_select %p879, %s35, 1
      %s881 = scalar_lea.vmem %s12, %s880
      %p882 = scmp.lt.s32.totalorder %s35, 1
      %s883 = scalar_select %p882, %s35, 1
      %s884 = smul.addr %s883, 4
      %s885 = smul.addr %s884, 4
      %s886 = scalar_lea.vmem %s13, %s885
      %p887 = scmp.lt.s32.totalorder %s35, 1
      %s888 = scalar_select %p887, %s35, 1
      %s889 = scalar_lea.vmem %s14, %s888
      %p890 = scmp.lt.s32.totalorder %s35, 1
      %s891 = scalar_select %p890, %s35, 1
      %s892 = smul.addr %s891, 8
      %s893 = smul.addr %s892, 4
      %s894 = scalar_lea.vmem %s15, %s893
      %p895 = scmp.lt.s32.totalorder %s35, 1
      %s896 = scalar_select %p895, %s35, 1
      %s897 = scalar_lea.vmem %s16, %s896
      %p898 = scmp.lt.s32.totalorder %s35, 1
      %s899 = scalar_select %p898, %s35, 1
      %s900 = scalar_lea.vmem %s17, %s899
      %p901 = scmp.lt.s32.totalorder %s35, 1
      %s902 = scalar_select %p901, %s35, 1
      %s903 = scalar_lea.vmem %s18, %s902
      %p904 = scmp.lt.s32.totalorder %s34, 1
      %s905 = scalar_select %p904, %s34, 1
      %s906 = smul.addr %s905, 16
      %s907 = smul.addr %s906, 8
      %s908 = scalar_lea.vmem %s19, %s907
      %p910 = scmp.eq.s32.totalorder %s35, 0
      // Predicated region
      $region97: #{tpu_custom_call.1} parent=95 // pred_check
        %p911 = pneg %p910
      $region98: #{tpu_custom_call.1} parent=95 // pred_check_branch
        %913 = sbr.rel (%p911) target = $region100
      $region99: #{tpu_custom_call.1} parent=95 // pred_region
        %v914 = vld [vmem:[%s835] sm:$0xff]
        %v915 = vld [vmem:[%s835 + $0x8] sm:$0xff]
        %v916 = vld [vmem:[%s835 + $0x10] sm:$0xff]
        %v917 = vld [vmem:[%s835 + $0x18] sm:$0xff]
        %v918 = vld [vmem:[%s835 + $0x20] sm:$0xff]
        %v919 = vld [vmem:[%s835 + $0x28] sm:$0xff]
        %v920 = vld [vmem:[%s835 + $0x30] sm:$0xff]
        %v921 = vld [vmem:[%s835 + $0x38] sm:$0xff]
        %v922 = vld [vmem:[%s835 + $0x40] sm:$0xff]
        %v923 = vld [vmem:[%s835 + $0x48] sm:$0xff]
        %v924 = vld [vmem:[%s835 + $0x50] sm:$0xff]
        %v925 = vld [vmem:[%s835 + $0x58] sm:$0xff]
        %v926 = vld [vmem:[%s835 + $0x60] sm:$0xff]
        %v927 = vld [vmem:[%s835 + $0x68] sm:$0xff]
        %v928 = vld [vmem:[%s835 + $0x70] sm:$0xff]
        %v929 = vld [vmem:[%s835 + $0x78] sm:$0xff]
        %vm930 = vcmask 261120
        %931 = vst.msk [vmem:[#allocation2] sm:$0xff] %vm930, %v914
        %932 = vst.msk [vmem:[#allocation2 + $0x8] sm:$0xff] %vm930, %v915
        %933 = vst.msk [vmem:[#allocation2 + $0x10] sm:$0xff] %vm930, %v916
        %934 = vst.msk [vmem:[#allocation2 + $0x18] sm:$0xff] %vm930, %v917
        %935 = vst.msk [vmem:[#allocation2 + $0x20] sm:$0xff] %vm930, %v918
        %936 = vst.msk [vmem:[#allocation2 + $0x28] sm:$0xff] %vm930, %v919
        %937 = vst.msk [vmem:[#allocation2 + $0x30] sm:$0xff] %vm930, %v920
        %938 = vst.msk [vmem:[#allocation2 + $0x38] sm:$0xff] %vm930, %v921
        %939 = vst.msk [vmem:[#allocation2 + $0x40] sm:$0xff] %vm930, %v922
        %940 = vst.msk [vmem:[#allocation2 + $0x48] sm:$0xff] %vm930, %v923
        %941 = vst.msk [vmem:[#allocation2 + $0x50] sm:$0xff] %vm930, %v924
        %942 = vst.msk [vmem:[#allocation2 + $0x58] sm:$0xff] %vm930, %v925
        %943 = vst.msk [vmem:[#allocation2 + $0x60] sm:$0xff] %vm930, %v926
        %944 = vst.msk [vmem:[#allocation2 + $0x68] sm:$0xff] %vm930, %v927
        %945 = vst.msk [vmem:[#allocation2 + $0x70] sm:$0xff] %vm930, %v928
        %946 = vst.msk [vmem:[#allocation2 + $0x78] sm:$0xff] %vm930, %v929
      $region100: #{tpu_custom_call.1} parent=95 // pred_fallthru
        _
      %v947 = vld [vmem:[#allocation2] sm:$0xff]
      %v948 = vld [vmem:[#allocation2 + $0x8] sm:$0xff]
      %v949 = vld [vmem:[#allocation2 + $0x10] sm:$0xff]
      %v950 = vld [vmem:[#allocation2 + $0x18] sm:$0xff]
      %v951 = vld [vmem:[#allocation2 + $0x20] sm:$0xff]
      %v952 = vld [vmem:[#allocation2 + $0x28] sm:$0xff]
      %v953 = vld [vmem:[#allocation2 + $0x30] sm:$0xff]
      %v954 = vld [vmem:[#allocation2 + $0x38] sm:$0xff]
      %v955 = vld [vmem:[#allocation2 + $0x40] sm:$0xff]
      %v956 = vld [vmem:[#allocation2 + $0x48] sm:$0xff]
      %v957 = vld [vmem:[#allocation2 + $0x50] sm:$0xff]
      %v958 = vld [vmem:[#allocation2 + $0x58] sm:$0xff]
      %v959 = vld [vmem:[#allocation2 + $0x60] sm:$0xff]
      %v960 = vld [vmem:[#allocation2 + $0x68] sm:$0xff]
      %v961 = vld [vmem:[#allocation2 + $0x70] sm:$0xff]
      %v962 = vld [vmem:[#allocation2 + $0x78] sm:$0xff]
      %v963 = vld [vmem:[%s840] sm:$0xf]
      %v964 = vld [vmem:[%s840 + $0x4] sm:$0xf]
      %v965 = vld [vmem:[%s840 + $0x8] sm:$0xf]
      %v966 = vld [vmem:[%s840 + $0xc] sm:$0xf]
      %v967 = vld [vmem:[%s840 + $0x10] sm:$0xf]
      %v968 = vld [vmem:[%s840 + $0x14] sm:$0xf]
      %v969 = vld [vmem:[%s840 + $0x18] sm:$0xf]
      %v970 = vld [vmem:[%s840 + $0x1c] sm:$0xf]
      %v971 = vld [vmem:[%s840 + $0x20] sm:$0xf]
      %v972 = vld [vmem:[%s840 + $0x24] sm:$0xf]
      %v973 = vld [vmem:[%s840 + $0x28] sm:$0xf]
      %v974 = vld [vmem:[%s840 + $0x2c] sm:$0xf]
      %v975 = vld [vmem:[%s840 + $0x30] sm:$0xf]
      %v976 = vld [vmem:[%s840 + $0x34] sm:$0xf]
      %v977 = vld [vmem:[%s840 + $0x38] sm:$0xf]
      %v978 = vld [vmem:[%s840 + $0x3c] sm:$0xf]
      %v979 = vunpack.c.l.bf16 %v963
      %v980 = vunpack.c.l.bf16 %v964
      %v981 = vunpack.c.l.bf16 %v965
      %v982 = vunpack.c.l.bf16 %v966
      %v983 = vunpack.c.l.bf16 %v967
      %v984 = vunpack.c.l.bf16 %v968
      %v985 = vunpack.c.l.bf16 %v969
      %v986 = vunpack.c.l.bf16 %v970
      %v987 = vunpack.c.l.bf16 %v971
      %v988 = vunpack.c.l.bf16 %v972
      %v989 = vunpack.c.l.bf16 %v973
      %v990 = vunpack.c.l.bf16 %v974
      %v991 = vunpack.c.l.bf16 %v975
      %v992 = vunpack.c.l.bf16 %v976
      %v993 = vunpack.c.l.bf16 %v977
      %v994 = vunpack.c.l.bf16 %v978
      %v995 = vld [vmem:[%s843] sm:$0x1]
      %v996 = vadd.f32 %v947, %v979
      %v997 = vadd.f32 %v948, %v980
      %v998 = vadd.f32 %v949, %v981
      %v999 = vadd.f32 %v950, %v982
      %v1000 = vadd.f32 %v951, %v983
      %v1001 = vadd.f32 %v952, %v984
      %v1002 = vadd.f32 %v953, %v985
      %v1003 = vadd.f32 %v954, %v986
      %v1004 = vadd.f32 %v955, %v987
      %v1005 = vadd.f32 %v956, %v988
      %v1006 = vadd.f32 %v957, %v989
      %v1007 = vadd.f32 %v958, %v990
      %v1008 = vadd.f32 %v959, %v991
      %v1009 = vadd.f32 %v960, %v992
      %v1010 = vadd.f32 %v961, %v993
      %v1011 = vadd.f32 %v962, %v994
      %v1012 = vpack.c.bf16 %v997, %v996
      %v1013 = vpack.c.bf16 %v999, %v998
      %v1014 = vpack.c.bf16 %v1001, %v1000
      %v1015 = vpack.c.bf16 %v1003, %v1002
      %v1016 = vpack.c.bf16 %v1005, %v1004
      %v1017 = vpack.c.bf16 %v1007, %v1006
      %v1018 = vpack.c.bf16 %v1009, %v1008
      %v1019 = vpack.c.bf16 %v1011, %v1010
      %v1020 = vpack.c.bf16 %v948, %v947
      %v1021 = vpack.c.bf16 %v950, %v949
      %v1022 = vpack.c.bf16 %v952, %v951
      %v1023 = vpack.c.bf16 %v954, %v953
      %v1024 = vpack.c.bf16 %v956, %v955
      %v1025 = vpack.c.bf16 %v958, %v957
      %v1026 = vpack.c.bf16 %v960, %v959
      %v1027 = vpack.c.bf16 %v962, %v961
      %v1028 = vld [vmem:[%s848] sm:$0xf]
      %v1029 = vld [vmem:[%s848 + $0x4] sm:$0xf]
      %v1030 = vld [vmem:[%s848 + $0x8] sm:$0xf]
      %v1031 = vld [vmem:[%s848 + $0xc] sm:$0xf]
      %v1032 = vld [vmem:[%s861] sm:$0x1]
      %v1034 = vlaneseq
      %v1035 = vshrl.u32 %v1034, 7
      %v1036 = vsub.s32 0, %v1035
      %v1037 = vrot.slane %v1032, %v1036
      %v1043 = vunpack.c.l.b16 %v1028
      %v1044 = vunpack.c.l.b16 %v1029
      %v1045 = vunpack.c.l.b16 %v1030
      %v1046 = vunpack.c.l.b16 %v1031
      %v1047 = vpack.c.b16 %v1044, %v1043
      %v1048 = vpack.c.b16 %v1046, %v1045
      %vm1051 = vcmask 261120
      %v1053 = vsel %vm1051, %v1012, 0
      %v1056 = vsel %vm1051, %v1013, 0
      %v1059 = vsel %vm1051, %v1014, 0
      %v1062 = vsel %vm1051, %v1015, 0
      %v1065 = vsel %vm1051, %v1016, 0
      %v1068 = vsel %vm1051, %v1017, 0
      %v1071 = vsel %vm1051, %v1018, 0
      %v1074 = vsel %vm1051, %v1019, 0
      %1076 = vmatprep.subr.bf16.mxu0 0
      %1077 = vmatpush1.bf16.msra.mxu0 0
      %1078 = vmatprep.subr.bf16.mxu0 0
      %1079 = vmatpush1.bf16.msra.mxu0 0
      %1080 = vmatprep.subr.bf16.mxu0 0
      %1081 = vmatpush1.bf16.msra.mxu0 0
      %1082 = vmatprep.subr.bf16.mxu0 0
      %1083 = vmatpush1.bf16.msra.mxu0 0
      %1084 = vmatprep.subr.bf16.mxu0 0
      %1085 = vmatpush1.bf16.msra.mxu0 0
      %1086 = vmatprep.subr.bf16.mxu0 0
      %1087 = vmatpush1.bf16.msra.mxu0 0
      %1088 = vmatprep.subr.bf16.mxu0 0
      %1089 = vmatpush1.bf16.msra.mxu0 %v1048
      %1090 = vmatprep.subr.bf16.mxu0 0
      %1091 = vmatpush1.bf16.msra.mxu0 %v1047
      %1092 = vmatprep.subr.bf16.mxu0 0
      %1093 = vmatpush2.bf16.msra.mxu0 0
      %1094 = vmatprep.subr.bf16.mxu0 0
      %1095 = vmatpush2.bf16.msra.mxu0 0
      %1096 = vmatprep.subr.bf16.mxu0 0
      %1097 = vmatpush2.bf16.msra.mxu0 0
      %1098 = vmatprep.subr.bf16.mxu0 0
      %1099 = vmatpush2.bf16.msra.mxu0 0
      %1100 = vmatprep.subr.bf16.mxu0 0
      %1101 = vmatpush2.bf16.msra.mxu0 0
      %1102 = vmatprep.subr.bf16.mxu0 0
      %1103 = vmatpush2.bf16.msra.mxu0 0
      %1104 = vmatprep.subr.bf16.mxu0 0
      %1105 = vmatpush2.bf16.msra.mxu0 0
      %1106 = vmatprep.subr.bf16.mxu0 0
      %1107 = vmatpush2.bf16.msra.mxu0 0
      %1108 = vmatprep.mubr.bf16.mxu0 0
      %1109 = vmatmul.mubr.bf16.gmra.mxu0 %v1053
      %v1110 = vpop.f32.mrf.mxu0
      %v1111 = vadd.f32 %v1037, %v1110
      %v1112 = vpop.f32.mrf.mxu0
      %v1113 = vpop.f32.mrf.mxu0
      %v1114 = vadd.f32 %v1037, %v1113
      %v1115 = vpop.f32.mrf.mxu0
      %1116 = vmatprep.mubr.bf16.mxu0 0
      %1117 = vmatmul.mubr.bf16.gmra.mxu0 %v1056
      %v1118 = vpop.f32.mrf.mxu0
      %v1119 = vadd.f32 %v1037, %v1118
      %v1120 = vpop.f32.mrf.mxu0
      %v1121 = vpop.f32.mrf.mxu0
      %v1122 = vadd.f32 %v1037, %v1121
      %v1123 = vpop.f32.mrf.mxu0
      %1124 = vmatprep.mubr.bf16.mxu0 0
      %1125 = vmatmul.mubr.bf16.gmra.mxu0 %v1059
      %v1126 = vpop.f32.mrf.mxu0
      %v1127 = vadd.f32 %v1037, %v1126
      %v1128 = vpop.f32.mrf.mxu0
      %v1129 = vpop.f32.mrf.mxu0
      %v1130 = vadd.f32 %v1037, %v1129
      %v1131 = vpop.f32.mrf.mxu0
      %1132 = vmatprep.mubr.bf16.mxu0 0
      %1133 = vmatmul.mubr.bf16.gmra.mxu0 %v1062
      %v1134 = vpop.f32.mrf.mxu0
      %v1135 = vadd.f32 %v1037, %v1134
      %v1136 = vpop.f32.mrf.mxu0
      %v1137 = vpop.f32.mrf.mxu0
      %v1138 = vadd.f32 %v1037, %v1137
      %v1139 = vpop.f32.mrf.mxu0
      %1140 = vmatprep.mubr.bf16.mxu0 0
      %1141 = vmatmul.mubr.bf16.gmra.mxu0 %v1065
      %v1142 = vpop.f32.mrf.mxu0
      %v1143 = vadd.f32 %v1037, %v1142
      %v1144 = vpop.f32.mrf.mxu0
      %v1145 = vpop.f32.mrf.mxu0
      %v1146 = vadd.f32 %v1037, %v1145
      %v1147 = vpop.f32.mrf.mxu0
      %1148 = vmatprep.mubr.bf16.mxu0 0
      %1149 = vmatmul.mubr.bf16.gmra.mxu0 %v1068
      %v1150 = vpop.f32.mrf.mxu0
      %v1151 = vadd.f32 %v1037, %v1150
      %v1152 = vpop.f32.mrf.mxu0
      %v1153 = vpop.f32.mrf.mxu0
      %v1154 = vadd.f32 %v1037, %v1153
      %v1155 = vpop.f32.mrf.mxu0
      %1156 = vmatprep.mubr.bf16.mxu0 0
      %1157 = vmatmul.mubr.bf16.gmra.mxu0 %v1071
      %v1158 = vpop.f32.mrf.mxu0
      %v1159 = vadd.f32 %v1037, %v1158
      %v1160 = vpop.f32.mrf.mxu0
      %v1161 = vpop.f32.mrf.mxu0
      %v1162 = vadd.f32 %v1037, %v1161
      %v1163 = vpop.f32.mrf.mxu0
      %1164 = vmatprep.mubr.bf16.mxu0 0
      %1165 = vmatmul.mubr.bf16.gmra.mxu0 %v1074
      %v1166 = vpop.f32.mrf.mxu0
      %v1167 = vadd.f32 %v1037, %v1166
      %v1168 = vpop.f32.mrf.mxu0
      %v1169 = vpop.f32.mrf.mxu0
      %v1170 = vadd.f32 %v1037, %v1169
      %v1171 = vpop.f32.mrf.mxu0
      %1172 = vdwg.mxu0
      %v1173 = vld [vmem:[%s853] sm:$0xf]
      %v1174 = vld [vmem:[%s853 + $0x4] sm:$0xf]
      %v1175 = vld [vmem:[%s853 + $0x8] sm:$0xf]
      %v1176 = vld [vmem:[%s853 + $0xc] sm:$0xf]
      %v1177 = vld [vmem:[%s864] sm:$0x1]
      %v1179 = vlaneseq
      %v1180 = vshrl.u32 %v1179, 7
      %v1181 = vsub.s32 0, %v1180
      %v1182 = vrot.slane %v1177, %v1181
      %v1188 = vunpack.c.l.b16 %v1173
      %v1189 = vunpack.c.l.b16 %v1174
      %v1190 = vunpack.c.l.b16 %v1175
      %v1191 = vunpack.c.l.b16 %v1176
      %v1192 = vpack.c.b16 %v1189, %v1188
      %v1193 = vpack.c.b16 %v1191, %v1190
      %1196 = vmatprep.subr.bf16.mxu0 0
      %1197 = vmatpush1.bf16.msra.mxu0 0
      %1198 = vmatprep.subr.bf16.mxu0 0
      %1199 = vmatpush1.bf16.msra.mxu0 0
      %1200 = vmatprep.subr.bf16.mxu0 0
      %1201 = vmatpush1.bf16.msra.mxu0 0
      %1202 = vmatprep.subr.bf16.mxu0 0
      %1203 = vmatpush1.bf16.msra.mxu0 0
      %1204 = vmatprep.subr.bf16.mxu0 0
      %1205 = vmatpush1.bf16.msra.mxu0 0
      %1206 = vmatprep.subr.bf16.mxu0 0
      %1207 = vmatpush1.bf16.msra.mxu0 0
      %1208 = vmatprep.subr.bf16.mxu0 0
      %1209 = vmatpush1.bf16.msra.mxu0 %v1193
      %1210 = vmatprep.subr.bf16.mxu0 0
      %1211 = vmatpush1.bf16.msra.mxu0 %v1192
      %1212 = vmatprep.subr.bf16.mxu0 0
      %1213 = vmatpush2.bf16.msra.mxu0 0
      %1214 = vmatprep.subr.bf16.mxu0 0
      %1215 = vmatpush2.bf16.msra.mxu0 0
      %1216 = vmatprep.subr.bf16.mxu0 0
      %1217 = vmatpush2.bf16.msra.mxu0 0
      %1218 = vmatprep.subr.bf16.mxu0 0
      %1219 = vmatpush2.bf16.msra.mxu0 0
      %1220 = vmatprep.subr.bf16.mxu0 0
      %1221 = vmatpush2.bf16.msra.mxu0 0
      %1222 = vmatprep.subr.bf16.mxu0 0
      %1223 = vmatpush2.bf16.msra.mxu0 0
      %1224 = vmatprep.subr.bf16.mxu0 0
      %1225 = vmatpush2.bf16.msra.mxu0 0
      %1226 = vmatprep.subr.bf16.mxu0 0
      %1227 = vmatpush2.bf16.msra.mxu0 0
      %1228 = vmatprep.mubr.bf16.mxu0 0
      %1229 = vmatmul.mubr.bf16.gmra.mxu0 %v1053
      %v1230 = vpop.f32.mrf.mxu0
      %v1231 = vadd.f32 %v1182, %v1230
      %v1232 = vpop.f32.mrf.mxu0
      %v1233 = vpop.f32.mrf.mxu0
      %v1234 = vadd.f32 %v1182, %v1233
      %v1235 = vpop.f32.mrf.mxu0
      %1236 = vmatprep.mubr.bf16.mxu0 0
      %1237 = vmatmul.mubr.bf16.gmra.mxu0 %v1056
      %v1238 = vpop.f32.mrf.mxu0
      %v1239 = vadd.f32 %v1182, %v1238
      %v1240 = vpop.f32.mrf.mxu0
      %v1241 = vpop.f32.mrf.mxu0
      %v1242 = vadd.f32 %v1182, %v1241
      %v1243 = vpop.f32.mrf.mxu0
      %1244 = vmatprep.mubr.bf16.mxu0 0
      %1245 = vmatmul.mubr.bf16.gmra.mxu0 %v1059
      %v1246 = vpop.f32.mrf.mxu0
      %v1247 = vadd.f32 %v1182, %v1246
      %v1248 = vpop.f32.mrf.mxu0
      %v1249 = vpop.f32.mrf.mxu0
      %v1250 = vadd.f32 %v1182, %v1249
      %v1251 = vpop.f32.mrf.mxu0
      %1252 = vmatprep.mubr.bf16.mxu0 0
      %1253 = vmatmul.mubr.bf16.gmra.mxu0 %v1062
      %v1254 = vpop.f32.mrf.mxu0
      %v1255 = vadd.f32 %v1182, %v1254
      %v1256 = vpop.f32.mrf.mxu0
      %v1257 = vpop.f32.mrf.mxu0
      %v1258 = vadd.f32 %v1182, %v1257
      %v1259 = vpop.f32.mrf.mxu0
      %1260 = vmatprep.mubr.bf16.mxu0 0
      %1261 = vmatmul.mubr.bf16.gmra.mxu0 %v1065
      %v1262 = vpop.f32.mrf.mxu0
      %v1263 = vadd.f32 %v1182, %v1262
      %v1264 = vpop.f32.mrf.mxu0
      %v1265 = vpop.f32.mrf.mxu0
      %v1266 = vadd.f32 %v1182, %v1265
      %v1267 = vpop.f32.mrf.mxu0
      %1268 = vmatprep.mubr.bf16.mxu0 0
      %1269 = vmatmul.mubr.bf16.gmra.mxu0 %v1068
      %v1270 = vpop.f32.mrf.mxu0
      %v1271 = vadd.f32 %v1182, %v1270
      %v1272 = vpop.f32.mrf.mxu0
      %v1273 = vpop.f32.mrf.mxu0
      %v1274 = vadd.f32 %v1182, %v1273
      %v1275 = vpop.f32.mrf.mxu0
      %1276 = vmatprep.mubr.bf16.mxu0 0
      %1277 = vmatmul.mubr.bf16.gmra.mxu0 %v1071
      %v1278 = vpop.f32.mrf.mxu0
      %v1279 = vadd.f32 %v1182, %v1278
      %v1280 = vpop.f32.mrf.mxu0
      %v1281 = vpop.f32.mrf.mxu0
      %v1282 = vadd.f32 %v1182, %v1281
      %v1283 = vpop.f32.mrf.mxu0
      %1284 = vmatprep.mubr.bf16.mxu0 0
      %1285 = vmatmul.mubr.bf16.gmra.mxu0 %v1074
      %v1286 = vpop.f32.mrf.mxu0
      %v1287 = vadd.f32 %v1182, %v1286
      %v1288 = vpop.f32.mrf.mxu0
      %v1289 = vpop.f32.mrf.mxu0
      %v1290 = vadd.f32 %v1182, %v1289
      %v1291 = vpop.f32.mrf.mxu0
      %1292 = vdwg.mxu0
      %v1293 = vld [vmem:[%s858] sm:$0xf]
      %v1294 = vld [vmem:[%s858 + $0x4] sm:$0xf]
      %v1295 = vld [vmem:[%s858 + $0x8] sm:$0xf]
      %v1296 = vld [vmem:[%s858 + $0xc] sm:$0xf]
      %v1297 = vld [vmem:[%s867] sm:$0x1]
      %v1299 = vlaneseq
      %v1300 = vshrl.u32 %v1299, 7
      %v1301 = vsub.s32 0, %v1300
      %v1302 = vrot.slane %v1297, %v1301
      %v1308 = vunpack.c.l.b16 %v1293
      %v1309 = vunpack.c.l.b16 %v1294
      %v1310 = vunpack.c.l.b16 %v1295
      %v1311 = vunpack.c.l.b16 %v1296
      %v1312 = vpack.c.b16 %v1309, %v1308
      %v1313 = vpack.c.b16 %v1311, %v1310
      %v1317 = vsel %vm1051, %v1020, 0
      %v1320 = vsel %vm1051, %v1021, 0
      %v1323 = vsel %vm1051, %v1022, 0
      %v1326 = vsel %vm1051, %v1023, 0
      %v1329 = vsel %vm1051, %v1024, 0
      %v1332 = vsel %vm1051, %v1025, 0
      %v1335 = vsel %vm1051, %v1026, 0
      %v1338 = vsel %vm1051, %v1027, 0
      %1340 = vmatprep.subr.bf16.mxu0 0
      %1341 = vmatpush1.bf16.msra.mxu0 0
      %1342 = vmatprep.subr.bf16.mxu0 0
      %1343 = vmatpush1.bf16.msra.mxu0 0
      %1344 = vmatprep.subr.bf16.mxu0 0
      %1345 = vmatpush1.bf16.msra.mxu0 0
      %1346 = vmatprep.subr.bf16.mxu0 0
      %1347 = vmatpush1.bf16.msra.mxu0 0
      %1348 = vmatprep.subr.bf16.mxu0 0
      %1349 = vmatpush1.bf16.msra.mxu0 0
      %1350 = vmatprep.subr.bf16.mxu0 0
      %1351 = vmatpush1.bf16.msra.mxu0 0
      %1352 = vmatprep.subr.bf16.mxu0 0
      %1353 = vmatpush1.bf16.msra.mxu0 %v1313
      %1354 = vmatprep.subr.bf16.mxu0 0
      %1355 = vmatpush1.bf16.msra.mxu0 %v1312
      %1356 = vmatprep.subr.bf16.mxu0 0
      %1357 = vmatpush2.bf16.msra.mxu0 0
      %1358 = vmatprep.subr.bf16.mxu0 0
      %1359 = vmatpush2.bf16.msra.mxu0 0
      %1360 = vmatprep.subr.bf16.mxu0 0
      %1361 = vmatpush2.bf16.msra.mxu0 0
      %1362 = vmatprep.subr.bf16.mxu0 0
      %1363 = vmatpush2.bf16.msra.mxu0 0
      %1364 = vmatprep.subr.bf16.mxu0 0
      %1365 = vmatpush2.bf16.msra.mxu0 0
      %1366 = vmatprep.subr.bf16.mxu0 0
      %1367 = vmatpush2.bf16.msra.mxu0 0
      %1368 = vmatprep.subr.bf16.mxu0 0
      %1369 = vmatpush2.bf16.msra.mxu0 0
      %1370 = vmatprep.subr.bf16.mxu0 0
      %1371 = vmatpush2.bf16.msra.mxu0 0
      %1372 = vmatprep.mubr.bf16.mxu0 0
      %1373 = vmatmul.mubr.bf16.gmra.mxu0 %v1317
      %v1374 = vpop.f32.mrf.mxu0
      %v1375 = vadd.f32 %v1302, %v1374
      %v1376 = vpop.f32.mrf.mxu0
      %v1377 = vpop.f32.mrf.mxu0
      %v1378 = vadd.f32 %v1302, %v1377
      %v1379 = vpop.f32.mrf.mxu0
      %1380 = vmatprep.mubr.bf16.mxu0 0
      %1381 = vmatmul.mubr.bf16.gmra.mxu0 %v1320
      %v1382 = vpop.f32.mrf.mxu0
      %v1383 = vadd.f32 %v1302, %v1382
      %v1384 = vpop.f32.mrf.mxu0
      %v1385 = vpop.f32.mrf.mxu0
      %v1386 = vadd.f32 %v1302, %v1385
      %v1387 = vpop.f32.mrf.mxu0
      %1388 = vmatprep.mubr.bf16.mxu0 0
      %1389 = vmatmul.mubr.bf16.gmra.mxu0 %v1323
      %v1390 = vpop.f32.mrf.mxu0
      %v1391 = vadd.f32 %v1302, %v1390
      %v1392 = vpop.f32.mrf.mxu0
      %v1393 = vpop.f32.mrf.mxu0
      %v1394 = vadd.f32 %v1302, %v1393
      %v1395 = vpop.f32.mrf.mxu0
      %1396 = vmatprep.mubr.bf16.mxu0 0
      %1397 = vmatmul.mubr.bf16.gmra.mxu0 %v1326
      %v1398 = vpop.f32.mrf.mxu0
      %v1399 = vadd.f32 %v1302, %v1398
      %v1400 = vpop.f32.mrf.mxu0
      %v1401 = vpop.f32.mrf.mxu0
      %v1402 = vadd.f32 %v1302, %v1401
      %v1403 = vpop.f32.mrf.mxu0
      %1404 = vmatprep.mubr.bf16.mxu0 0
      %1405 = vmatmul.mubr.bf16.gmra.mxu0 %v1329
      %v1406 = vpop.f32.mrf.mxu0
      %v1407 = vadd.f32 %v1302, %v1406
      %v1408 = vpop.f32.mrf.mxu0
      %v1409 = vpop.f32.mrf.mxu0
      %v1410 = vadd.f32 %v1302, %v1409
      %v1411 = vpop.f32.mrf.mxu0
      %1412 = vmatprep.mubr.bf16.mxu0 0
      %1413 = vmatmul.mubr.bf16.gmra.mxu0 %v1332
      %v1414 = vpop.f32.mrf.mxu0
      %v1415 = vadd.f32 %v1302, %v1414
      %v1416 = vpop.f32.mrf.mxu0
      %v1417 = vpop.f32.mrf.mxu0
      %v1418 = vadd.f32 %v1302, %v1417
      %v1419 = vpop.f32.mrf.mxu0
      %1420 = vmatprep.mubr.bf16.mxu0 0
      %1421 = vmatmul.mubr.bf16.gmra.mxu0 %v1335
      %v1422 = vpop.f32.mrf.mxu0
      %v1423 = vadd.f32 %v1302, %v1422
      %v1424 = vpop.f32.mrf.mxu0
      %v1425 = vpop.f32.mrf.mxu0
      %v1426 = vadd.f32 %v1302, %v1425
      %v1427 = vpop.f32.mrf.mxu0
      %1428 = vmatprep.mubr.bf16.mxu0 0
      %1429 = vmatmul.mubr.bf16.gmra.mxu0 %v1338
      %v1430 = vpop.f32.mrf.mxu0
      %v1431 = vadd.f32 %v1302, %v1430
      %v1432 = vpop.f32.mrf.mxu0
      %v1433 = vpop.f32.mrf.mxu0
      %v1434 = vadd.f32 %v1302, %v1433
      %v1435 = vpop.f32.mrf.mxu0
      %1436 = vdwg.mxu0
      %v1437 = vpack.c.bf16 %v1114, %v1111
      %v1438 = vpack.c.bf16 %v1122, %v1119
      %v1439 = vpack.c.bf16 %v1130, %v1127
      %v1440 = vpack.c.bf16 %v1138, %v1135
      %v1441 = vpack.c.bf16 %v1146, %v1143
      %v1442 = vpack.c.bf16 %v1154, %v1151
      %v1443 = vpack.c.bf16 %v1162, %v1159
      %v1444 = vpack.c.bf16 %v1170, %v1167
      %v1445 = vpack.c.bf16 %v1234, %v1231
      %v1446 = vpack.c.bf16 %v1242, %v1239
      %v1447 = vpack.c.bf16 %v1250, %v1247
      %v1448 = vpack.c.bf16 %v1258, %v1255
      %v1449 = vpack.c.bf16 %v1266, %v1263
      %v1450 = vpack.c.bf16 %v1274, %v1271
      %v1451 = vpack.c.bf16 %v1282, %v1279
      %v1452 = vpack.c.bf16 %v1290, %v1287
      %v1453 = vpack.c.bf16 %v1378, %v1375
      %v1454 = vpack.c.bf16 %v1386, %v1383
      %v1455 = vpack.c.bf16 %v1394, %v1391
      %v1456 = vpack.c.bf16 %v1402, %v1399
      %v1457 = vpack.c.bf16 %v1410, %v1407
      %v1458 = vpack.c.bf16 %v1418, %v1415
      %v1459 = vpack.c.bf16 %v1426, %v1423
      %v1460 = vpack.c.bf16 %v1434, %v1431
      %v1461 = vld [vmem:[%s872] sm:$0xf]
      %v1462 = vld [vmem:[%s872 + $0x4] sm:$0xf]
      %v1463 = vld [vmem:[%s872 + $0x8] sm:$0xf]
      %v1464 = vld [vmem:[%s872 + $0xc] sm:$0xf]
      %v1465 = vld [vmem:[%s886] sm:$0xf]
      %v1466 = vld [vmem:[%s886 + $0x4] sm:$0xf]
      %v1467 = vld [vmem:[%s886 + $0x8] sm:$0xf]
      %v1468 = vld [vmem:[%s886 + $0xc] sm:$0xf]
      %v1469 = vld [vmem:[%s894] sm:$0xf]
      %v1470 = vld [vmem:[%s894 + $0x4] sm:$0xf]
      %v1471 = vld [vmem:[%s894 + $0x8] sm:$0xf]
      %v1472 = vld [vmem:[%s894 + $0xc] sm:$0xf]
      %v1473 = vld [vmem:[%s894 + $0x10] sm:$0xf]
      %v1474 = vld [vmem:[%s894 + $0x14] sm:$0xf]
      %v1475 = vld [vmem:[%s894 + $0x18] sm:$0xf]
      %v1476 = vld [vmem:[%s894 + $0x1c] sm:$0xf]
      %v1478 = vlaneseq
      %v1479 = vshrl.u32 %v1478, 7
      %v1480 = vsub.s32 0, %v1479
      %v1481 = vrot.slane %v995, %v1480
      %vm1483 = vcmask 64512
      %v1485 = vsel %vm1483, %v1437, 0
      %v1488 = vsel %vm1483, %v1438, 0
      %v1491 = vsel %vm1483, %v1439, 0
      %v1494 = vsel %vm1483, %v1440, 0
      %v1497 = vsel %vm1483, %v1441, 0
      %v1500 = vsel %vm1483, %v1442, 0
      %v1503 = vsel %vm1483, %v1443, 0
      %v1506 = vsel %vm1483, %v1444, 0
      %v1509 = vsel %vm1483, %v1445, 0
      %v1512 = vsel %vm1483, %v1446, 0
      %v1515 = vsel %vm1483, %v1447, 0
      %v1518 = vsel %vm1483, %v1448, 0
      %v1521 = vsel %vm1483, %v1449, 0
      %v1524 = vsel %vm1483, %v1450, 0
      %v1527 = vsel %vm1483, %v1451, 0
      %v1530 = vsel %vm1483, %v1452, 0
      %1532 = vmatprep.subr.bf16.mxu0 0
      %1533 = vmatpush1.bf16.xpose.msra.mxu0 %v1530
      %1534 = vmatprep.subr.bf16.mxu0 0
      %1535 = vmatpush1.bf16.xpose.msra.mxu0 %v1527
      %1536 = vmatprep.subr.bf16.mxu0 0
      %1537 = vmatpush1.bf16.xpose.msra.mxu0 %v1524
      %1538 = vmatprep.subr.bf16.mxu0 0
      %1539 = vmatpush1.bf16.xpose.msra.mxu0 %v1521
      %1540 = vmatprep.subr.bf16.mxu0 0
      %1541 = vmatpush1.bf16.xpose.msra.mxu0 %v1518
      %1542 = vmatprep.subr.bf16.mxu0 0
      %1543 = vmatpush1.bf16.xpose.msra.mxu0 %v1515
      %1544 = vmatprep.subr.bf16.mxu0 0
      %1545 = vmatpush1.bf16.xpose.msra.mxu0 %v1512
      %1546 = vmatprep.subr.bf16.mxu0 0
      %1547 = vmatpush1.bf16.xpose.msra.mxu0 %v1509
      %1548 = vmatprep.subr.bf16.mxu0 0
      %1549 = vmatpush2.bf16.xpose.msra.mxu0 0
      %1550 = vmatprep.subr.bf16.mxu0 0
      %1551 = vmatpush2.bf16.xpose.msra.mxu0 0
      %1552 = vmatprep.subr.bf16.mxu0 0
      %1553 = vmatpush2.bf16.xpose.msra.mxu0 0
      %1554 = vmatprep.subr.bf16.mxu0 0
      %1555 = vmatpush2.bf16.xpose.msra.mxu0 0
      %1556 = vmatprep.subr.bf16.mxu0 0
      %1557 = vmatpush2.bf16.xpose.msra.mxu0 0
      %1558 = vmatprep.subr.bf16.mxu0 0
      %1559 = vmatpush2.bf16.xpose.msra.mxu0 0
      %1560 = vmatprep.subr.bf16.mxu0 0
      %1561 = vmatpush2.bf16.xpose.msra.mxu0 0
      %1562 = vmatprep.subr.bf16.mxu0 0
      %1563 = vmatpush2.bf16.xpose.msra.mxu0 0
      %1564 = vmatprep.mubr.bf16.mxu0 0
      %1565 = vmatmul.mubr.bf16.gmra.mxu0 %v1485
      %v1566 = vpop.f32.mrf.mxu0
      %v1567 = vadd.f32 %v1481, %v1566
      %v1568 = vpop.f32.mrf.mxu0
      %v1569 = vpop.f32.mrf.mxu0
      %v1570 = vadd.f32 %v1481, %v1569
      %v1571 = vpop.f32.mrf.mxu0
      %1572 = vmatprep.mubr.bf16.mxu0 0
      %1573 = vmatmul.mubr.bf16.gmra.mxu0 %v1488
      %v1574 = vpop.f32.mrf.mxu0
      %v1575 = vadd.f32 %v1481, %v1574
      %v1576 = vpop.f32.mrf.mxu0
      %v1577 = vpop.f32.mrf.mxu0
      %v1578 = vadd.f32 %v1481, %v1577
      %v1579 = vpop.f32.mrf.mxu0
      %1580 = vmatprep.mubr.bf16.mxu0 0
      %1581 = vmatmul.mubr.bf16.gmra.mxu0 %v1491
      %v1582 = vpop.f32.mrf.mxu0
      %v1583 = vadd.f32 %v1481, %v1582
      %v1584 = vpop.f32.mrf.mxu0
      %v1585 = vpop.f32.mrf.mxu0
      %v1586 = vadd.f32 %v1481, %v1585
      %v1587 = vpop.f32.mrf.mxu0
      %1588 = vmatprep.mubr.bf16.mxu0 0
      %1589 = vmatmul.mubr.bf16.gmra.mxu0 %v1494
      %v1590 = vpop.f32.mrf.mxu0
      %v1591 = vadd.f32 %v1481, %v1590
      %v1592 = vpop.f32.mrf.mxu0
      %v1593 = vpop.f32.mrf.mxu0
      %v1594 = vadd.f32 %v1481, %v1593
      %v1595 = vpop.f32.mrf.mxu0
      %1596 = vmatprep.mubr.bf16.mxu0 0
      %1597 = vmatmul.mubr.bf16.gmra.mxu0 %v1497
      %v1598 = vpop.f32.mrf.mxu0
      %v1599 = vadd.f32 %v1481, %v1598
      %v1600 = vpop.f32.mrf.mxu0
      %v1601 = vpop.f32.mrf.mxu0
      %v1602 = vadd.f32 %v1481, %v1601
      %v1603 = vpop.f32.mrf.mxu0
      %1604 = vmatprep.mubr.bf16.mxu0 0
      %1605 = vmatmul.mubr.bf16.gmra.mxu0 %v1500
      %v1606 = vpop.f32.mrf.mxu0
      %v1607 = vadd.f32 %v1481, %v1606
      %v1608 = vpop.f32.mrf.mxu0
      %v1609 = vpop.f32.mrf.mxu0
      %v1610 = vadd.f32 %v1481, %v1609
      %v1611 = vpop.f32.mrf.mxu0
      %1612 = vmatprep.mubr.bf16.mxu0 0
      %1613 = vmatmul.mubr.bf16.gmra.mxu0 %v1503
      %v1614 = vpop.f32.mrf.mxu0
      %v1615 = vadd.f32 %v1481, %v1614
      %v1616 = vpop.f32.mrf.mxu0
      %v1617 = vpop.f32.mrf.mxu0
      %v1618 = vadd.f32 %v1481, %v1617
      %v1619 = vpop.f32.mrf.mxu0
      %1620 = vmatprep.mubr.bf16.mxu0 0
      %1621 = vmatmul.mubr.bf16.gmra.mxu0 %v1506
      %v1622 = vpop.f32.mrf.mxu0
      %v1623 = vadd.f32 %v1481, %v1622
      %v1624 = vpop.f32.mrf.mxu0
      %v1625 = vpop.f32.mrf.mxu0
      %v1626 = vadd.f32 %v1481, %v1625
      %v1627 = vpop.f32.mrf.mxu0
      %1628 = vdwg.mxu0
      %1629 = vmax.xlane.f32.xlu0 %v1567
      %v1630 = vpop.xlane.xlu0 %1629
      %1631 = vmax.xlane.f32.xlu0 %v1570
      %v1632 = vpop.xlane.xlu0 %1631
      %1633 = vmax.xlane.f32.xlu0 %v1575
      %v1634 = vpop.xlane.xlu0 %1633
      %1635 = vmax.xlane.f32.xlu0 %v1578
      %v1636 = vpop.xlane.xlu0 %1635
      %1637 = vmax.xlane.f32.xlu0 %v1583
      %v1638 = vpop.xlane.xlu0 %1637
      %1639 = vmax.xlane.f32.xlu0 %v1586
      %v1640 = vpop.xlane.xlu0 %1639
      %1641 = vmax.xlane.f32.xlu0 %v1591
      %v1642 = vpop.xlane.xlu0 %1641
      %1643 = vmax.xlane.f32.xlu0 %v1594
      %v1644 = vpop.xlane.xlu0 %1643
      %1645 = vmax.xlane.f32.xlu0 %v1599
      %v1646 = vpop.xlane.xlu0 %1645
      %1647 = vmax.xlane.f32.xlu0 %v1602
      %v1648 = vpop.xlane.xlu0 %1647
      %1649 = vmax.xlane.f32.xlu0 %v1607
      %v1650 = vpop.xlane.xlu0 %1649
      %1651 = vmax.xlane.f32.xlu0 %v1610
      %v1652 = vpop.xlane.xlu0 %1651
      %1653 = vmax.xlane.f32.xlu0 %v1615
      %v1654 = vpop.xlane.xlu0 %1653
      %1655 = vmax.xlane.f32.xlu0 %v1618
      %v1656 = vpop.xlane.xlu0 %1655
      %1657 = vmax.xlane.f32.xlu0 %v1623
      %v1658 = vpop.xlane.xlu0 %1657
      %1659 = vmax.xlane.f32.xlu0 %v1626
      %v1660 = vpop.xlane.xlu0 %1659
      %v1661 = vsub.f32 %v1567, %v1630
      %v1662 = vsub.f32 %v1570, %v1632
      %v1663 = vsub.f32 %v1575, %v1634
      %v1664 = vsub.f32 %v1578, %v1636
      %v1665 = vsub.f32 %v1583, %v1638
      %v1666 = vsub.f32 %v1586, %v1640
      %v1667 = vsub.f32 %v1591, %v1642
      %v1668 = vsub.f32 %v1594, %v1644
      %v1669 = vsub.f32 %v1599, %v1646
      %v1670 = vsub.f32 %v1602, %v1648
      %v1671 = vsub.f32 %v1607, %v1650
      %v1672 = vsub.f32 %v1610, %v1652
      %v1673 = vsub.f32 %v1615, %v1654
      %v1674 = vsub.f32 %v1618, %v1656
      %v1675 = vsub.f32 %v1623, %v1658
      %v1676 = vsub.f32 %v1626, %v1660
      %v1677 = vmul.f32 %v1661, 1.442695
      %v1678 = vpow.pop %v1677
      %v1679 = vmul.f32 %v1662, 1.442695
      %v1680 = vpow.pop %v1679
      %v1681 = vmul.f32 %v1663, 1.442695
      %v1682 = vpow.pop %v1681
      %v1683 = vmul.f32 %v1664, 1.442695
      %v1684 = vpow.pop %v1683
      %v1685 = vmul.f32 %v1665, 1.442695
      %v1686 = vpow.pop %v1685
      %v1687 = vmul.f32 %v1666, 1.442695
      %v1688 = vpow.pop %v1687
      %v1689 = vmul.f32 %v1667, 1.442695
      %v1690 = vpow.pop %v1689
      %v1691 = vmul.f32 %v1668, 1.442695
      %v1692 = vpow.pop %v1691
      %v1693 = vmul.f32 %v1669, 1.442695
      %v1694 = vpow.pop %v1693
      %v1695 = vmul.f32 %v1670, 1.442695
      %v1696 = vpow.pop %v1695
      %v1697 = vmul.f32 %v1671, 1.442695
      %v1698 = vpow.pop %v1697
      %v1699 = vmul.f32 %v1672, 1.442695
      %v1700 = vpow.pop %v1699
      %v1701 = vmul.f32 %v1673, 1.442695
      %v1702 = vpow.pop %v1701
      %v1703 = vmul.f32 %v1674, 1.442695
      %v1704 = vpow.pop %v1703
      %v1705 = vmul.f32 %v1675, 1.442695
      %v1706 = vpow.pop %v1705
      %v1707 = vmul.f32 %v1676, 1.442695
      %v1708 = vpow.pop %v1707
      %1709 = vadd.xlane.f32.xlu0 %v1678
      %v1710 = vpop.xlane.xlu0 %1709
      %1711 = vadd.xlane.f32.xlu0 %v1680
      %v1712 = vpop.xlane.xlu0 %1711
      %1713 = vadd.xlane.f32.xlu0 %v1682
      %v1714 = vpop.xlane.xlu0 %1713
      %1715 = vadd.xlane.f32.xlu0 %v1684
      %v1716 = vpop.xlane.xlu0 %1715
      %1717 = vadd.xlane.f32.xlu0 %v1686
      %v1718 = vpop.xlane.xlu0 %1717
      %1719 = vadd.xlane.f32.xlu0 %v1688
      %v1720 = vpop.xlane.xlu0 %1719
      %1721 = vadd.xlane.f32.xlu0 %v1690
      %v1722 = vpop.xlane.xlu0 %1721
      %1723 = vadd.xlane.f32.xlu0 %v1692
      %v1724 = vpop.xlane.xlu0 %1723
      %1725 = vadd.xlane.f32.xlu0 %v1694
      %v1726 = vpop.xlane.xlu0 %1725
      %1727 = vadd.xlane.f32.xlu0 %v1696
      %v1728 = vpop.xlane.xlu0 %1727
      %1729 = vadd.xlane.f32.xlu0 %v1698
      %v1730 = vpop.xlane.xlu0 %1729
      %1731 = vadd.xlane.f32.xlu0 %v1700
      %v1732 = vpop.xlane.xlu0 %1731
      %1733 = vadd.xlane.f32.xlu0 %v1702
      %v1734 = vpop.xlane.xlu0 %1733
      %1735 = vadd.xlane.f32.xlu0 %v1704
      %v1736 = vpop.xlane.xlu0 %1735
      %1737 = vadd.xlane.f32.xlu0 %v1706
      %v1738 = vpop.xlane.xlu0 %1737
      %1739 = vadd.xlane.f32.xlu0 %v1708
      %v1740 = vpop.xlane.xlu0 %1739
      %v1741 = vrcp.pop %v1710
      %v1742 = vrcp.pop %v1712
      %v1743 = vrcp.pop %v1714
      %v1744 = vrcp.pop %v1716
      %v1745 = vrcp.pop %v1718
      %v1746 = vrcp.pop %v1720
      %v1747 = vrcp.pop %v1722
      %v1748 = vrcp.pop %v1724
      %v1749 = vrcp.pop %v1726
      %v1750 = vrcp.pop %v1728
      %v1751 = vrcp.pop %v1730
      %v1752 = vrcp.pop %v1732
      %v1753 = vrcp.pop %v1734
      %v1754 = vrcp.pop %v1736
      %v1755 = vrcp.pop %v1738
      %v1756 = vrcp.pop %v1740
      %v1757 = vmul.f32 %v1678, %v1741
      %v1758 = vmul.f32 %v1680, %v1742
      %v1759 = vmul.f32 %v1682, %v1743
      %v1760 = vmul.f32 %v1684, %v1744
      %v1761 = vmul.f32 %v1686, %v1745
      %v1762 = vmul.f32 %v1688, %v1746
      %v1763 = vmul.f32 %v1690, %v1747
      %v1764 = vmul.f32 %v1692, %v1748
      %v1765 = vmul.f32 %v1694, %v1749
      %v1766 = vmul.f32 %v1696, %v1750
      %v1767 = vmul.f32 %v1698, %v1751
      %v1768 = vmul.f32 %v1700, %v1752
      %v1769 = vmul.f32 %v1702, %v1753
      %v1770 = vmul.f32 %v1704, %v1754
      %v1771 = vmul.f32 %v1706, %v1755
      %v1772 = vmul.f32 %v1708, %v1756
      %v1773 = vpack.c.bf16 %v1758, %v1757
      %v1774 = vpack.c.bf16 %v1760, %v1759
      %v1775 = vpack.c.bf16 %v1762, %v1761
      %v1776 = vpack.c.bf16 %v1764, %v1763
      %v1777 = vpack.c.bf16 %v1766, %v1765
      %v1778 = vpack.c.bf16 %v1768, %v1767
      %v1779 = vpack.c.bf16 %v1770, %v1769
      %v1780 = vpack.c.bf16 %v1772, %v1771
      %1781 = vmatprep.subr.bf16.mxu0 0
      %1782 = vmatpush1.bf16.msra.mxu0 %v1460
      %1783 = vmatprep.subr.bf16.mxu0 0
      %1784 = vmatpush1.bf16.msra.mxu0 %v1459
      %1785 = vmatprep.subr.bf16.mxu0 0
      %1786 = vmatpush1.bf16.msra.mxu0 %v1458
      %1787 = vmatprep.subr.bf16.mxu0 0
      %1788 = vmatpush1.bf16.msra.mxu0 %v1457
      %1789 = vmatprep.subr.bf16.mxu0 0
      %1790 = vmatpush1.bf16.msra.mxu0 %v1456
      %1791 = vmatprep.subr.bf16.mxu0 0
      %1792 = vmatpush1.bf16.msra.mxu0 %v1455
      %1793 = vmatprep.subr.bf16.mxu0 0
      %1794 = vmatpush1.bf16.msra.mxu0 %v1454
      %1795 = vmatprep.subr.bf16.mxu0 0
      %1796 = vmatpush1.bf16.msra.mxu0 %v1453
      %1797 = vmatprep.subr.bf16.mxu0 0
      %1798 = vmatpush2.bf16.msra.mxu0 0
      %1799 = vmatprep.subr.bf16.mxu0 0
      %1800 = vmatpush2.bf16.msra.mxu0 0
      %1801 = vmatprep.subr.bf16.mxu0 0
      %1802 = vmatpush2.bf16.msra.mxu0 0
      %1803 = vmatprep.subr.bf16.mxu0 0
      %1804 = vmatpush2.bf16.msra.mxu0 0
      %1805 = vmatprep.subr.bf16.mxu0 0
      %1806 = vmatpush2.bf16.msra.mxu0 0
      %1807 = vmatprep.subr.bf16.mxu0 0
      %1808 = vmatpush2.bf16.msra.mxu0 0
      %1809 = vmatprep.subr.bf16.mxu0 0
      %1810 = vmatpush2.bf16.msra.mxu0 0
      %1811 = vmatprep.subr.bf16.mxu0 0
      %1812 = vmatpush2.bf16.msra.mxu0 0
      %1813 = vmatprep.mubr.bf16.mxu0 0
      %1814 = vmatmul.mubr.bf16.gmra.mxu0 %v1773
      %v1815 = vpop.f32.mrf.mxu0
      %v1816 = vadd.f32 0.0, %v1815
      %v1817 = vpop.f32.mrf.mxu0
      %v1818 = vpop.f32.mrf.mxu0
      %v1819 = vadd.f32 0.0, %v1818
      %v1820 = vpop.f32.mrf.mxu0
      %1821 = vmatprep.mubr.bf16.mxu0 0
      %1822 = vmatmul.mubr.bf16.gmra.mxu0 %v1774
      %v1823 = vpop.f32.mrf.mxu0
      %v1824 = vadd.f32 0.0, %v1823
      %v1825 = vpop.f32.mrf.mxu0
      %v1826 = vpop.f32.mrf.mxu0
      %v1827 = vadd.f32 0.0, %v1826
      %v1828 = vpop.f32.mrf.mxu0
      %1829 = vmatprep.mubr.bf16.mxu0 0
      %1830 = vmatmul.mubr.bf16.gmra.mxu0 %v1775
      %v1831 = vpop.f32.mrf.mxu0
      %v1832 = vadd.f32 0.0, %v1831
      %v1833 = vpop.f32.mrf.mxu0
      %v1834 = vpop.f32.mrf.mxu0
      %v1835 = vadd.f32 0.0, %v1834
      %v1836 = vpop.f32.mrf.mxu0
      %1837 = vmatprep.mubr.bf16.mxu0 0
      %1838 = vmatmul.mubr.bf16.gmra.mxu0 %v1776
      %v1839 = vpop.f32.mrf.mxu0
      %v1840 = vadd.f32 0.0, %v1839
      %v1841 = vpop.f32.mrf.mxu0
      %v1842 = vpop.f32.mrf.mxu0
      %v1843 = vadd.f32 0.0, %v1842
      %v1844 = vpop.f32.mrf.mxu0
      %1845 = vmatprep.mubr.bf16.mxu0 0
      %1846 = vmatmul.mubr.bf16.gmra.mxu0 %v1777
      %v1847 = vpop.f32.mrf.mxu0
      %v1848 = vadd.f32 0.0, %v1847
      %v1849 = vpop.f32.mrf.mxu0
      %v1850 = vpop.f32.mrf.mxu0
      %v1851 = vadd.f32 0.0, %v1850
      %v1852 = vpop.f32.mrf.mxu0
      %1853 = vmatprep.mubr.bf16.mxu0 0
      %1854 = vmatmul.mubr.bf16.gmra.mxu0 %v1778
      %v1855 = vpop.f32.mrf.mxu0
      %v1856 = vadd.f32 0.0, %v1855
      %v1857 = vpop.f32.mrf.mxu0
      %v1858 = vpop.f32.mrf.mxu0
      %v1859 = vadd.f32 0.0, %v1858
      %v1860 = vpop.f32.mrf.mxu0
      %1861 = vmatprep.mubr.bf16.mxu0 0
      %1862 = vmatmul.mubr.bf16.gmra.mxu0 %v1779
      %v1863 = vpop.f32.mrf.mxu0
      %v1864 = vadd.f32 0.0, %v1863
      %v1865 = vpop.f32.mrf.mxu0
      %v1866 = vpop.f32.mrf.mxu0
      %v1867 = vadd.f32 0.0, %v1866
      %v1868 = vpop.f32.mrf.mxu0
      %1869 = vmatprep.mubr.bf16.mxu0 0
      %1870 = vmatmul.mubr.bf16.gmra.mxu0 %v1780
      %v1871 = vpop.f32.mrf.mxu0
      %v1872 = vadd.f32 0.0, %v1871
      %v1873 = vpop.f32.mrf.mxu0
      %v1874 = vpop.f32.mrf.mxu0
      %v1875 = vadd.f32 0.0, %v1874
      %v1876 = vpop.f32.mrf.mxu0
      %1877 = vdwg.mxu0
      %1886 = vrot.lane.b32.xlu0 %v1437, 120
      %v1887 = vpop.permute.xlu0 %1886
      %1888 = vrot.lane.b32.xlu0 %v1438, 120
      %v1889 = vpop.permute.xlu0 %1888
      %1890 = vrot.lane.b32.xlu0 %v1439, 120
      %v1891 = vpop.permute.xlu0 %1890
      %1892 = vrot.lane.b32.xlu0 %v1440, 120
      %v1893 = vpop.permute.xlu0 %1892
      %1894 = vrot.lane.b32.xlu0 %v1441, 120
      %v1895 = vpop.permute.xlu0 %1894
      %1896 = vrot.lane.b32.xlu0 %v1442, 120
      %v1897 = vpop.permute.xlu0 %1896
      %1898 = vrot.lane.b32.xlu0 %v1443, 120
      %v1899 = vpop.permute.xlu0 %1898
      %1900 = vrot.lane.b32.xlu0 %v1444, 120
      %v1901 = vpop.permute.xlu0 %1900
      %1910 = vrot.lane.b32.xlu0 %v1445, 120
      %v1911 = vpop.permute.xlu0 %1910
      %1912 = vrot.lane.b32.xlu0 %v1446, 120
      %v1913 = vpop.permute.xlu0 %1912
      %1914 = vrot.lane.b32.xlu0 %v1447, 120
      %v1915 = vpop.permute.xlu0 %1914
      %1916 = vrot.lane.b32.xlu0 %v1448, 120
      %v1917 = vpop.permute.xlu0 %1916
      %1918 = vrot.lane.b32.xlu0 %v1449, 120
      %v1919 = vpop.permute.xlu0 %1918
      %1920 = vrot.lane.b32.xlu0 %v1450, 120
      %v1921 = vpop.permute.xlu0 %1920
      %1922 = vrot.lane.b32.xlu0 %v1451, 120
      %v1923 = vpop.permute.xlu0 %1922
      %1924 = vrot.lane.b32.xlu0 %v1452, 120
      %v1925 = vpop.permute.xlu0 %1924
      %v1927 = vsel %vm1483, %v1887, 0
      %v1930 = vsel %vm1483, %v1889, 0
      %v1933 = vsel %vm1483, %v1891, 0
      %v1936 = vsel %vm1483, %v1893, 0
      %v1939 = vsel %vm1483, %v1895, 0
      %v1942 = vsel %vm1483, %v1897, 0
      %v1945 = vsel %vm1483, %v1899, 0
      %v1948 = vsel %vm1483, %v1901, 0
      %v1951 = vsel %vm1483, %v1911, 0
      %v1954 = vsel %vm1483, %v1913, 0
      %v1957 = vsel %vm1483, %v1915, 0
      %v1960 = vsel %vm1483, %v1917, 0
      %v1963 = vsel %vm1483, %v1919, 0
      %v1966 = vsel %vm1483, %v1921, 0
      %v1969 = vsel %vm1483, %v1923, 0
      %v1972 = vsel %vm1483, %v1925, 0
      %1974 = vmatprep.subr.bf16.mxu0 0
      %1975 = vmatpush1.bf16.xpose.msra.mxu0 %v1972
      %1976 = vmatprep.subr.bf16.mxu0 0
      %1977 = vmatpush1.bf16.xpose.msra.mxu0 %v1969
      %1978 = vmatprep.subr.bf16.mxu0 0
      %1979 = vmatpush1.bf16.xpose.msra.mxu0 %v1966
      %1980 = vmatprep.subr.bf16.mxu0 0
      %1981 = vmatpush1.bf16.xpose.msra.mxu0 %v1963
      %1982 = vmatprep.subr.bf16.mxu0 0
      %1983 = vmatpush1.bf16.xpose.msra.mxu0 %v1960
      %1984 = vmatprep.subr.bf16.mxu0 0
      %1985 = vmatpush1.bf16.xpose.msra.mxu0 %v1957
      %1986 = vmatprep.subr.bf16.mxu0 0
      %1987 = vmatpush1.bf16.xpose.msra.mxu0 %v1954
      %1988 = vmatprep.subr.bf16.mxu0 0
      %1989 = vmatpush1.bf16.xpose.msra.mxu0 %v1951
      %1990 = vmatprep.subr.bf16.mxu0 0
      %1991 = vmatpush2.bf16.xpose.msra.mxu0 0
      %1992 = vmatprep.subr.bf16.mxu0 0
      %1993 = vmatpush2.bf16.xpose.msra.mxu0 0
      %1994 = vmatprep.subr.bf16.mxu0 0
      %1995 = vmatpush2.bf16.xpose.msra.mxu0 0
      %1996 = vmatprep.subr.bf16.mxu0 0
      %1997 = vmatpush2.bf16.xpose.msra.mxu0 0
      %1998 = vmatprep.subr.bf16.mxu0 0
      %1999 = vmatpush2.bf16.xpose.msra.mxu0 0
      %2000 = vmatprep.subr.bf16.mxu0 0
      %2001 = vmatpush2.bf16.xpose.msra.mxu0 0
      %2002 = vmatprep.subr.bf16.mxu0 0
      %2003 = vmatpush2.bf16.xpose.msra.mxu0 0
      %2004 = vmatprep.subr.bf16.mxu0 0
      %2005 = vmatpush2.bf16.xpose.msra.mxu0 0
      %2006 = vmatprep.mubr.bf16.mxu0 0
      %2007 = vmatmul.mubr.bf16.gmra.mxu0 %v1927
      %v2008 = vpop.f32.mrf.mxu0
      %v2009 = vadd.f32 %v1481, %v2008
      %v2010 = vpop.f32.mrf.mxu0
      %v2011 = vpop.f32.mrf.mxu0
      %v2012 = vadd.f32 %v1481, %v2011
      %v2013 = vpop.f32.mrf.mxu0
      %2014 = vmatprep.mubr.bf16.mxu0 0
      %2015 = vmatmul.mubr.bf16.gmra.mxu0 %v1930
      %v2016 = vpop.f32.mrf.mxu0
      %v2017 = vadd.f32 %v1481, %v2016
      %v2018 = vpop.f32.mrf.mxu0
      %v2019 = vpop.f32.mrf.mxu0
      %v2020 = vadd.f32 %v1481, %v2019
      %v2021 = vpop.f32.mrf.mxu0
      %2022 = vmatprep.mubr.bf16.mxu0 0
      %2023 = vmatmul.mubr.bf16.gmra.mxu0 %v1933
      %v2024 = vpop.f32.mrf.mxu0
      %v2025 = vadd.f32 %v1481, %v2024
      %v2026 = vpop.f32.mrf.mxu0
      %v2027 = vpop.f32.mrf.mxu0
      %v2028 = vadd.f32 %v1481, %v2027
      %v2029 = vpop.f32.mrf.mxu0
      %2030 = vmatprep.mubr.bf16.mxu0 0
      %2031 = vmatmul.mubr.bf16.gmra.mxu0 %v1936
      %v2032 = vpop.f32.mrf.mxu0
      %v2033 = vadd.f32 %v1481, %v2032
      %v2034 = vpop.f32.mrf.mxu0
      %v2035 = vpop.f32.mrf.mxu0
      %v2036 = vadd.f32 %v1481, %v2035
      %v2037 = vpop.f32.mrf.mxu0
      %2038 = vmatprep.mubr.bf16.mxu0 0
      %2039 = vmatmul.mubr.bf16.gmra.mxu0 %v1939
      %v2040 = vpop.f32.mrf.mxu0
      %v2041 = vadd.f32 %v1481, %v2040
      %v2042 = vpop.f32.mrf.mxu0
      %v2043 = vpop.f32.mrf.mxu0
      %v2044 = vadd.f32 %v1481, %v2043
      %v2045 = vpop.f32.mrf.mxu0
      %2046 = vmatprep.mubr.bf16.mxu0 0
      %2047 = vmatmul.mubr.bf16.gmra.mxu0 %v1942
      %v2048 = vpop.f32.mrf.mxu0
      %v2049 = vadd.f32 %v1481, %v2048
      %v2050 = vpop.f32.mrf.mxu0
      %v2051 = vpop.f32.mrf.mxu0
      %v2052 = vadd.f32 %v1481, %v2051
      %v2053 = vpop.f32.mrf.mxu0
      %2054 = vmatprep.mubr.bf16.mxu0 0
      %2055 = vmatmul.mubr.bf16.gmra.mxu0 %v1945
      %v2056 = vpop.f32.mrf.mxu0
      %v2057 = vadd.f32 %v1481, %v2056
      %v2058 = vpop.f32.mrf.mxu0
      %v2059 = vpop.f32.mrf.mxu0
      %v2060 = vadd.f32 %v1481, %v2059
      %v2061 = vpop.f32.mrf.mxu0
      %2062 = vmatprep.mubr.bf16.mxu0 0
      %2063 = vmatmul.mubr.bf16.gmra.mxu0 %v1948
      %v2064 = vpop.f32.mrf.mxu0
      %v2065 = vadd.f32 %v1481, %v2064
      %v2066 = vpop.f32.mrf.mxu0
      %v2067 = vpop.f32.mrf.mxu0
      %v2068 = vadd.f32 %v1481, %v2067
      %v2069 = vpop.f32.mrf.mxu0
      %2070 = vdwg.mxu0
      %2071 = vmax.xlane.f32.xlu0 %v2009
      %v2072 = vpop.xlane.xlu0 %2071
      %2073 = vmax.xlane.f32.xlu0 %v2012
      %v2074 = vpop.xlane.xlu0 %2073
      %2075 = vmax.xlane.f32.xlu0 %v2017
      %v2076 = vpop.xlane.xlu0 %2075
      %2077 = vmax.xlane.f32.xlu0 %v2020
      %v2078 = vpop.xlane.xlu0 %2077
      %2079 = vmax.xlane.f32.xlu0 %v2025
      %v2080 = vpop.xlane.xlu0 %2079
      %2081 = vmax.xlane.f32.xlu0 %v2028
      %v2082 = vpop.xlane.xlu0 %2081
      %2083 = vmax.xlane.f32.xlu0 %v2033
      %v2084 = vpop.xlane.xlu0 %2083
      %2085 = vmax.xlane.f32.xlu0 %v2036
      %v2086 = vpop.xlane.xlu0 %2085
      %2087 = vmax.xlane.f32.xlu0 %v2041
      %v2088 = vpop.xlane.xlu0 %2087
      %2089 = vmax.xlane.f32.xlu0 %v2044
      %v2090 = vpop.xlane.xlu0 %2089
      %2091 = vmax.xlane.f32.xlu0 %v2049
      %v2092 = vpop.xlane.xlu0 %2091
      %2093 = vmax.xlane.f32.xlu0 %v2052
      %v2094 = vpop.xlane.xlu0 %2093
      %2095 = vmax.xlane.f32.xlu0 %v2057
      %v2096 = vpop.xlane.xlu0 %2095
      %2097 = vmax.xlane.f32.xlu0 %v2060
      %v2098 = vpop.xlane.xlu0 %2097
      %2099 = vmax.xlane.f32.xlu0 %v2065
      %v2100 = vpop.xlane.xlu0 %2099
      %2101 = vmax.xlane.f32.xlu0 %v2068
      %v2102 = vpop.xlane.xlu0 %2101
      %v2103 = vsub.f32 %v2009, %v2072
      %v2104 = vsub.f32 %v2012, %v2074
      %v2105 = vsub.f32 %v2017, %v2076
      %v2106 = vsub.f32 %v2020, %v2078
      %v2107 = vsub.f32 %v2025, %v2080
      %v2108 = vsub.f32 %v2028, %v2082
      %v2109 = vsub.f32 %v2033, %v2084
      %v2110 = vsub.f32 %v2036, %v2086
      %v2111 = vsub.f32 %v2041, %v2088
      %v2112 = vsub.f32 %v2044, %v2090
      %v2113 = vsub.f32 %v2049, %v2092
      %v2114 = vsub.f32 %v2052, %v2094
      %v2115 = vsub.f32 %v2057, %v2096
      %v2116 = vsub.f32 %v2060, %v2098
      %v2117 = vsub.f32 %v2065, %v2100
      %v2118 = vsub.f32 %v2068, %v2102
      %v2119 = vmul.f32 %v2103, 1.442695
      %v2120 = vpow.pop %v2119
      %v2121 = vmul.f32 %v2104, 1.442695
      %v2122 = vpow.pop %v2121
      %v2123 = vmul.f32 %v2105, 1.442695
      %v2124 = vpow.pop %v2123
      %v2125 = vmul.f32 %v2106, 1.442695
      %v2126 = vpow.pop %v2125
      %v2127 = vmul.f32 %v2107, 1.442695
      %v2128 = vpow.pop %v2127
      %v2129 = vmul.f32 %v2108, 1.442695
      %v2130 = vpow.pop %v2129
      %v2131 = vmul.f32 %v2109, 1.442695
      %v2132 = vpow.pop %v2131
      %v2133 = vmul.f32 %v2110, 1.442695
      %v2134 = vpow.pop %v2133
      %v2135 = vmul.f32 %v2111, 1.442695
      %v2136 = vpow.pop %v2135
      %v2137 = vmul.f32 %v2112, 1.442695
      %v2138 = vpow.pop %v2137
      %v2139 = vmul.f32 %v2113, 1.442695
      %v2140 = vpow.pop %v2139
      %v2141 = vmul.f32 %v2114, 1.442695
      %v2142 = vpow.pop %v2141
      %v2143 = vmul.f32 %v2115, 1.442695
      %v2144 = vpow.pop %v2143
      %v2145 = vmul.f32 %v2116, 1.442695
      %v2146 = vpow.pop %v2145
      %v2147 = vmul.f32 %v2117, 1.442695
      %v2148 = vpow.pop %v2147
      %v2149 = vmul.f32 %v2118, 1.442695
      %v2150 = vpow.pop %v2149
      %2151 = vadd.xlane.f32.xlu0 %v2120
      %v2152 = vpop.xlane.xlu0 %2151
      %2153 = vadd.xlane.f32.xlu0 %v2122
      %v2154 = vpop.xlane.xlu0 %2153
      %2155 = vadd.xlane.f32.xlu0 %v2124
      %v2156 = vpop.xlane.xlu0 %2155
      %2157 = vadd.xlane.f32.xlu0 %v2126
      %v2158 = vpop.xlane.xlu0 %2157
      %2159 = vadd.xlane.f32.xlu0 %v2128
      %v2160 = vpop.xlane.xlu0 %2159
      %2161 = vadd.xlane.f32.xlu0 %v2130
      %v2162 = vpop.xlane.xlu0 %2161
      %2163 = vadd.xlane.f32.xlu0 %v2132
      %v2164 = vpop.xlane.xlu0 %2163
      %2165 = vadd.xlane.f32.xlu0 %v2134
      %v2166 = vpop.xlane.xlu0 %2165
      %2167 = vadd.xlane.f32.xlu0 %v2136
      %v2168 = vpop.xlane.xlu0 %2167
      %2169 = vadd.xlane.f32.xlu0 %v2138
      %v2170 = vpop.xlane.xlu0 %2169
      %2171 = vadd.xlane.f32.xlu0 %v2140
      %v2172 = vpop.xlane.xlu0 %2171
      %2173 = vadd.xlane.f32.xlu0 %v2142
      %v2174 = vpop.xlane.xlu0 %2173
      %2175 = vadd.xlane.f32.xlu0 %v2144
      %v2176 = vpop.xlane.xlu0 %2175
      %2177 = vadd.xlane.f32.xlu0 %v2146
      %v2178 = vpop.xlane.xlu0 %2177
      %2179 = vadd.xlane.f32.xlu0 %v2148
      %v2180 = vpop.xlane.xlu0 %2179
      %2181 = vadd.xlane.f32.xlu0 %v2150
      %v2182 = vpop.xlane.xlu0 %2181
      %v2183 = vrcp.pop %v2152
      %v2184 = vrcp.pop %v2154
      %v2185 = vrcp.pop %v2156
      %v2186 = vrcp.pop %v2158
      %v2187 = vrcp.pop %v2160
      %v2188 = vrcp.pop %v2162
      %v2189 = vrcp.pop %v2164
      %v2190 = vrcp.pop %v2166
      %v2191 = vrcp.pop %v2168
      %v2192 = vrcp.pop %v2170
      %v2193 = vrcp.pop %v2172
      %v2194 = vrcp.pop %v2174
      %v2195 = vrcp.pop %v2176
      %v2196 = vrcp.pop %v2178
      %v2197 = vrcp.pop %v2180
      %v2198 = vrcp.pop %v2182
      %v2199 = vmul.f32 %v2120, %v2183
      %v2200 = vmul.f32 %v2122, %v2184
      %v2201 = vmul.f32 %v2124, %v2185
      %v2202 = vmul.f32 %v2126, %v2186
      %v2203 = vmul.f32 %v2128, %v2187
      %v2204 = vmul.f32 %v2130, %v2188
      %v2205 = vmul.f32 %v2132, %v2189
      %v2206 = vmul.f32 %v2134, %v2190
      %v2207 = vmul.f32 %v2136, %v2191
      %v2208 = vmul.f32 %v2138, %v2192
      %v2209 = vmul.f32 %v2140, %v2193
      %v2210 = vmul.f32 %v2142, %v2194
      %v2211 = vmul.f32 %v2144, %v2195
      %v2212 = vmul.f32 %v2146, %v2196
      %v2213 = vmul.f32 %v2148, %v2197
      %v2214 = vmul.f32 %v2150, %v2198
      %v2215 = vpack.c.bf16 %v2200, %v2199
      %v2216 = vpack.c.bf16 %v2202, %v2201
      %v2217 = vpack.c.bf16 %v2204, %v2203
      %v2218 = vpack.c.bf16 %v2206, %v2205
      %v2219 = vpack.c.bf16 %v2208, %v2207
      %v2220 = vpack.c.bf16 %v2210, %v2209
      %v2221 = vpack.c.bf16 %v2212, %v2211
      %v2222 = vpack.c.bf16 %v2214, %v2213
      %2231 = vrot.lane.b32.xlu0 %v1453, 120
      %v2232 = vpop.permute.xlu0 %2231
      %2233 = vrot.lane.b32.xlu0 %v1454, 120
      %v2234 = vpop.permute.xlu0 %2233
      %2235 = vrot.lane.b32.xlu0 %v1455, 120
      %v2236 = vpop.permute.xlu0 %2235
      %2237 = vrot.lane.b32.xlu0 %v1456, 120
      %v2238 = vpop.permute.xlu0 %2237
      %2239 = vrot.lane.b32.xlu0 %v1457, 120
      %v2240 = vpop.permute.xlu0 %2239
      %2241 = vrot.lane.b32.xlu0 %v1458, 120
      %v2242 = vpop.permute.xlu0 %2241
      %2243 = vrot.lane.b32.xlu0 %v1459, 120
      %v2244 = vpop.permute.xlu0 %2243
      %2245 = vrot.lane.b32.xlu0 %v1460, 120
      %v2246 = vpop.permute.xlu0 %2245
      %2255 = vmatprep.subr.bf16.mxu0 0
      %2256 = vmatpush1.bf16.msra.mxu0 %v2246
      %2257 = vmatprep.subr.bf16.mxu0 0
      %2258 = vmatpush1.bf16.msra.mxu0 %v2244
      %2259 = vmatprep.subr.bf16.mxu0 0
      %2260 = vmatpush1.bf16.msra.mxu0 %v2242
      %2261 = vmatprep.subr.bf16.mxu0 0
      %2262 = vmatpush1.bf16.msra.mxu0 %v2240
      %2263 = vmatprep.subr.bf16.mxu0 0
      %2264 = vmatpush1.bf16.msra.mxu0 %v2238
      %2265 = vmatprep.subr.bf16.mxu0 0
      %2266 = vmatpush1.bf16.msra.mxu0 %v2236
      %2267 = vmatprep.subr.bf16.mxu0 0
      %2268 = vmatpush1.bf16.msra.mxu0 %v2234
      %2269 = vmatprep.subr.bf16.mxu0 0
      %2270 = vmatpush1.bf16.msra.mxu0 %v2232
      %2271 = vmatprep.subr.bf16.mxu0 0
      %2272 = vmatpush2.bf16.msra.mxu0 0
      %2273 = vmatprep.subr.bf16.mxu0 0
      %2274 = vmatpush2.bf16.msra.mxu0 0
      %2275 = vmatprep.subr.bf16.mxu0 0
      %2276 = vmatpush2.bf16.msra.mxu0 0
      %2277 = vmatprep.subr.bf16.mxu0 0
      %2278 = vmatpush2.bf16.msra.mxu0 0
      %2279 = vmatprep.subr.bf16.mxu0 0
      %2280 = vmatpush2.bf16.msra.mxu0 0
      %2281 = vmatprep.subr.bf16.mxu0 0
      %2282 = vmatpush2.bf16.msra.mxu0 0
      %2283 = vmatprep.subr.bf16.mxu0 0
      %2284 = vmatpush2.bf16.msra.mxu0 0
      %2285 = vmatprep.subr.bf16.mxu0 0
      %2286 = vmatpush2.bf16.msra.mxu0 0
      %2287 = vmatprep.mubr.bf16.mxu0 0
      %2288 = vmatmul.mubr.bf16.gmra.mxu0 %v2215
      %v2289 = vpop.f32.mrf.mxu0
      %v2290 = vadd.f32 0.0, %v2289
      %v2291 = vpop.f32.mrf.mxu0
      %v2292 = vpop.f32.mrf.mxu0
      %v2293 = vadd.f32 0.0, %v2292
      %v2294 = vpop.f32.mrf.mxu0
      %2295 = vmatprep.mubr.bf16.mxu0 0
      %2296 = vmatmul.mubr.bf16.gmra.mxu0 %v2216
      %v2297 = vpop.f32.mrf.mxu0
      %v2298 = vadd.f32 0.0, %v2297
      %v2299 = vpop.f32.mrf.mxu0
      %v2300 = vpop.f32.mrf.mxu0
      %v2301 = vadd.f32 0.0, %v2300
      %v2302 = vpop.f32.mrf.mxu0
      %2303 = vmatprep.mubr.bf16.mxu0 0
      %2304 = vmatmul.mubr.bf16.gmra.mxu0 %v2217
      %v2305 = vpop.f32.mrf.mxu0
      %v2306 = vadd.f32 0.0, %v2305
      %v2307 = vpop.f32.mrf.mxu0
      %v2308 = vpop.f32.mrf.mxu0
      %v2309 = vadd.f32 0.0, %v2308
      %v2310 = vpop.f32.mrf.mxu0
      %2311 = vmatprep.mubr.bf16.mxu0 0
      %2312 = vmatmul.mubr.bf16.gmra.mxu0 %v2218
      %v2313 = vpop.f32.mrf.mxu0
      %v2314 = vadd.f32 0.0, %v2313
      %v2315 = vpop.f32.mrf.mxu0
      %v2316 = vpop.f32.mrf.mxu0
      %v2317 = vadd.f32 0.0, %v2316
      %v2318 = vpop.f32.mrf.mxu0
      %2319 = vmatprep.mubr.bf16.mxu0 0
      %2320 = vmatmul.mubr.bf16.gmra.mxu0 %v2219
      %v2321 = vpop.f32.mrf.mxu0
      %v2322 = vadd.f32 0.0, %v2321
      %v2323 = vpop.f32.mrf.mxu0
      %v2324 = vpop.f32.mrf.mxu0
      %v2325 = vadd.f32 0.0, %v2324
      %v2326 = vpop.f32.mrf.mxu0
      %2327 = vmatprep.mubr.bf16.mxu0 0
      %2328 = vmatmul.mubr.bf16.gmra.mxu0 %v2220
      %v2329 = vpop.f32.mrf.mxu0
      %v2330 = vadd.f32 0.0, %v2329
      %v2331 = vpop.f32.mrf.mxu0
      %v2332 = vpop.f32.mrf.mxu0
      %v2333 = vadd.f32 0.0, %v2332
      %v2334 = vpop.f32.mrf.mxu0
      %2335 = vmatprep.mubr.bf16.mxu0 0
      %2336 = vmatmul.mubr.bf16.gmra.mxu0 %v2221
      %v2337 = vpop.f32.mrf.mxu0
      %v2338 = vadd.f32 0.0, %v2337
      %v2339 = vpop.f32.mrf.mxu0
      %v2340 = vpop.f32.mrf.mxu0
      %v2341 = vadd.f32 0.0, %v2340
      %v2342 = vpop.f32.mrf.mxu0
      %2343 = vmatprep.mubr.bf16.mxu0 0
      %2344 = vmatmul.mubr.bf16.gmra.mxu0 %v2222
      %v2345 = vpop.f32.mrf.mxu0
      %v2346 = vadd.f32 0.0, %v2345
      %v2347 = vpop.f32.mrf.mxu0
      %v2348 = vpop.f32.mrf.mxu0
      %v2349 = vadd.f32 0.0, %v2348
      %v2350 = vpop.f32.mrf.mxu0
      %2351 = vdwg.mxu0
      %2352 = vrot.lane.b32.xlu0 %v1437, 112
      %v2353 = vpop.permute.xlu0 %2352
      %2354 = vrot.lane.b32.xlu0 %v1438, 112
      %v2355 = vpop.permute.xlu0 %2354
      %2356 = vrot.lane.b32.xlu0 %v1439, 112
      %v2357 = vpop.permute.xlu0 %2356
      %2358 = vrot.lane.b32.xlu0 %v1440, 112
      %v2359 = vpop.permute.xlu0 %2358
      %2360 = vrot.lane.b32.xlu0 %v1441, 112
      %v2361 = vpop.permute.xlu0 %2360
      %2362 = vrot.lane.b32.xlu0 %v1442, 112
      %v2363 = vpop.permute.xlu0 %2362
      %2364 = vrot.lane.b32.xlu0 %v1443, 112
      %v2365 = vpop.permute.xlu0 %2364
      %2366 = vrot.lane.b32.xlu0 %v1444, 112
      %v2367 = vpop.permute.xlu0 %2366
      %2368 = vrot.lane.b32.xlu0 %v1445, 112
      %v2369 = vpop.permute.xlu0 %2368
      %2370 = vrot.lane.b32.xlu0 %v1446, 112
      %v2371 = vpop.permute.xlu0 %2370
      %2372 = vrot.lane.b32.xlu0 %v1447, 112
      %v2373 = vpop.permute.xlu0 %2372
      %2374 = vrot.lane.b32.xlu0 %v1448, 112
      %v2375 = vpop.permute.xlu0 %2374
      %2376 = vrot.lane.b32.xlu0 %v1449, 112
      %v2377 = vpop.permute.xlu0 %2376
      %2378 = vrot.lane.b32.xlu0 %v1450, 112
      %v2379 = vpop.permute.xlu0 %2378
      %2380 = vrot.lane.b32.xlu0 %v1451, 112
      %v2381 = vpop.permute.xlu0 %2380
      %2382 = vrot.lane.b32.xlu0 %v1452, 112
      %v2383 = vpop.permute.xlu0 %2382
      %v2385 = vsel %vm1483, %v2353, 0
      %v2388 = vsel %vm1483, %v2355, 0
      %v2391 = vsel %vm1483, %v2357, 0
      %v2394 = vsel %vm1483, %v2359, 0
      %v2397 = vsel %vm1483, %v2361, 0
      %v2400 = vsel %vm1483, %v2363, 0
      %v2403 = vsel %vm1483, %v2365, 0
      %v2406 = vsel %vm1483, %v2367, 0
      %v2409 = vsel %vm1483, %v2369, 0
      %v2412 = vsel %vm1483, %v2371, 0
      %v2415 = vsel %vm1483, %v2373, 0
      %v2418 = vsel %vm1483, %v2375, 0
      %v2421 = vsel %vm1483, %v2377, 0
      %v2424 = vsel %vm1483, %v2379, 0
      %v2427 = vsel %vm1483, %v2381, 0
      %v2430 = vsel %vm1483, %v2383, 0
      %2432 = vmatprep.subr.bf16.mxu0 0
      %2433 = vmatpush1.bf16.xpose.msra.mxu0 %v2430
      %2434 = vmatprep.subr.bf16.mxu0 0
      %2435 = vmatpush1.bf16.xpose.msra.mxu0 %v2427
      %2436 = vmatprep.subr.bf16.mxu0 0
      %2437 = vmatpush1.bf16.xpose.msra.mxu0 %v2424
      %2438 = vmatprep.subr.bf16.mxu0 0
      %2439 = vmatpush1.bf16.xpose.msra.mxu0 %v2421
      %2440 = vmatprep.subr.bf16.mxu0 0
      %2441 = vmatpush1.bf16.xpose.msra.mxu0 %v2418
      %2442 = vmatprep.subr.bf16.mxu0 0
      %2443 = vmatpush1.bf16.xpose.msra.mxu0 %v2415
      %2444 = vmatprep.subr.bf16.mxu0 0
      %2445 = vmatpush1.bf16.xpose.msra.mxu0 %v2412
      %2446 = vmatprep.subr.bf16.mxu0 0
      %2447 = vmatpush1.bf16.xpose.msra.mxu0 %v2409
      %2448 = vmatprep.subr.bf16.mxu0 0
      %2449 = vmatpush2.bf16.xpose.msra.mxu0 0
      %2450 = vmatprep.subr.bf16.mxu0 0
      %2451 = vmatpush2.bf16.xpose.msra.mxu0 0
      %2452 = vmatprep.subr.bf16.mxu0 0
      %2453 = vmatpush2.bf16.xpose.msra.mxu0 0
      %2454 = vmatprep.subr.bf16.mxu0 0
      %2455 = vmatpush2.bf16.xpose.msra.mxu0 0
      %2456 = vmatprep.subr.bf16.mxu0 0
      %2457 = vmatpush2.bf16.xpose.msra.mxu0 0
      %2458 = vmatprep.subr.bf16.mxu0 0
      %2459 = vmatpush2.bf16.xpose.msra.mxu0 0
      %2460 = vmatprep.subr.bf16.mxu0 0
      %2461 = vmatpush2.bf16.xpose.msra.mxu0 0
      %2462 = vmatprep.subr.bf16.mxu0 0
      %2463 = vmatpush2.bf16.xpose.msra.mxu0 0
      %2464 = vmatprep.mubr.bf16.mxu0 0
      %2465 = vmatmul.mubr.bf16.gmra.mxu0 %v2385
      %v2466 = vpop.f32.mrf.mxu0
      %v2467 = vadd.f32 %v1481, %v2466
      %v2468 = vpop.f32.mrf.mxu0
      %v2469 = vpop.f32.mrf.mxu0
      %v2470 = vadd.f32 %v1481, %v2469
      %v2471 = vpop.f32.mrf.mxu0
      %2472 = vmatprep.mubr.bf16.mxu0 0
      %2473 = vmatmul.mubr.bf16.gmra.mxu0 %v2388
      %v2474 = vpop.f32.mrf.mxu0
      %v2475 = vadd.f32 %v1481, %v2474
      %v2476 = vpop.f32.mrf.mxu0
      %v2477 = vpop.f32.mrf.mxu0
      %v2478 = vadd.f32 %v1481, %v2477
      %v2479 = vpop.f32.mrf.mxu0
      %2480 = vmatprep.mubr.bf16.mxu0 0
      %2481 = vmatmul.mubr.bf16.gmra.mxu0 %v2391
      %v2482 = vpop.f32.mrf.mxu0
      %v2483 = vadd.f32 %v1481, %v2482
      %v2484 = vpop.f32.mrf.mxu0
      %v2485 = vpop.f32.mrf.mxu0
      %v2486 = vadd.f32 %v1481, %v2485
      %v2487 = vpop.f32.mrf.mxu0
      %2488 = vmatprep.mubr.bf16.mxu0 0
      %2489 = vmatmul.mubr.bf16.gmra.mxu0 %v2394
      %v2490 = vpop.f32.mrf.mxu0
      %v2491 = vadd.f32 %v1481, %v2490
      %v2492 = vpop.f32.mrf.mxu0
      %v2493 = vpop.f32.mrf.mxu0
      %v2494 = vadd.f32 %v1481, %v2493
      %v2495 = vpop.f32.mrf.mxu0
      %2496 = vmatprep.mubr.bf16.mxu0 0
      %2497 = vmatmul.mubr.bf16.gmra.mxu0 %v2397
      %v2498 = vpop.f32.mrf.mxu0
      %v2499 = vadd.f32 %v1481, %v2498
      %v2500 = vpop.f32.mrf.mxu0
      %v2501 = vpop.f32.mrf.mxu0
      %v2502 = vadd.f32 %v1481, %v2501
      %v2503 = vpop.f32.mrf.mxu0
      %2504 = vmatprep.mubr.bf16.mxu0 0
      %2505 = vmatmul.mubr.bf16.gmra.mxu0 %v2400
      %v2506 = vpop.f32.mrf.mxu0
      %v2507 = vadd.f32 %v1481, %v2506
      %v2508 = vpop.f32.mrf.mxu0
      %v2509 = vpop.f32.mrf.mxu0
      %v2510 = vadd.f32 %v1481, %v2509
      %v2511 = vpop.f32.mrf.mxu0
      %2512 = vmatprep.mubr.bf16.mxu0 0
      %2513 = vmatmul.mubr.bf16.gmra.mxu0 %v2403
      %v2514 = vpop.f32.mrf.mxu0
      %v2515 = vadd.f32 %v1481, %v2514
      %v2516 = vpop.f32.mrf.mxu0
      %v2517 = vpop.f32.mrf.mxu0
      %v2518 = vadd.f32 %v1481, %v2517
      %v2519 = vpop.f32.mrf.mxu0
      %2520 = vmatprep.mubr.bf16.mxu0 0
      %2521 = vmatmul.mubr.bf16.gmra.mxu0 %v2406
      %v2522 = vpop.f32.mrf.mxu0
      %v2523 = vadd.f32 %v1481, %v2522
      %v2524 = vpop.f32.mrf.mxu0
      %v2525 = vpop.f32.mrf.mxu0
      %v2526 = vadd.f32 %v1481, %v2525
      %v2527 = vpop.f32.mrf.mxu0
      %2528 = vdwg.mxu0
      %2529 = vmax.xlane.f32.xlu0 %v2467
      %v2530 = vpop.xlane.xlu0 %2529
      %2531 = vmax.xlane.f32.xlu0 %v2470
      %v2532 = vpop.xlane.xlu0 %2531
      %2533 = vmax.xlane.f32.xlu0 %v2475
      %v2534 = vpop.xlane.xlu0 %2533
      %2535 = vmax.xlane.f32.xlu0 %v2478
      %v2536 = vpop.xlane.xlu0 %2535
      %2537 = vmax.xlane.f32.xlu0 %v2483
      %v2538 = vpop.xlane.xlu0 %2537
      %2539 = vmax.xlane.f32.xlu0 %v2486
      %v2540 = vpop.xlane.xlu0 %2539
      %2541 = vmax.xlane.f32.xlu0 %v2491
      %v2542 = vpop.xlane.xlu0 %2541
      %2543 = vmax.xlane.f32.xlu0 %v2494
      %v2544 = vpop.xlane.xlu0 %2543
      %2545 = vmax.xlane.f32.xlu0 %v2499
      %v2546 = vpop.xlane.xlu0 %2545
      %2547 = vmax.xlane.f32.xlu0 %v2502
      %v2548 = vpop.xlane.xlu0 %2547
      %2549 = vmax.xlane.f32.xlu0 %v2507
      %v2550 = vpop.xlane.xlu0 %2549
      %2551 = vmax.xlane.f32.xlu0 %v2510
      %v2552 = vpop.xlane.xlu0 %2551
      %2553 = vmax.xlane.f32.xlu0 %v2515
      %v2554 = vpop.xlane.xlu0 %2553
      %2555 = vmax.xlane.f32.xlu0 %v2518
      %v2556 = vpop.xlane.xlu0 %2555
      %2557 = vmax.xlane.f32.xlu0 %v2523
      %v2558 = vpop.xlane.xlu0 %2557
      %2559 = vmax.xlane.f32.xlu0 %v2526
      %v2560 = vpop.xlane.xlu0 %2559
      %v2561 = vsub.f32 %v2467, %v2530
      %v2562 = vsub.f32 %v2470, %v2532
      %v2563 = vsub.f32 %v2475, %v2534
      %v2564 = vsub.f32 %v2478, %v2536
      %v2565 = vsub.f32 %v2483, %v2538
      %v2566 = vsub.f32 %v2486, %v2540
      %v2567 = vsub.f32 %v2491, %v2542
      %v2568 = vsub.f32 %v2494, %v2544
      %v2569 = vsub.f32 %v2499, %v2546
      %v2570 = vsub.f32 %v2502, %v2548
      %v2571 = vsub.f32 %v2507, %v2550
      %v2572 = vsub.f32 %v2510, %v2552
      %v2573 = vsub.f32 %v2515, %v2554
      %v2574 = vsub.f32 %v2518, %v2556
      %v2575 = vsub.f32 %v2523, %v2558
      %v2576 = vsub.f32 %v2526, %v2560
      %v2577 = vmul.f32 %v2561, 1.442695
      %v2578 = vpow.pop %v2577
      %v2579 = vmul.f32 %v2562, 1.442695
      %v2580 = vpow.pop %v2579
      %v2581 = vmul.f32 %v2563, 1.442695
      %v2582 = vpow.pop %v2581
      %v2583 = vmul.f32 %v2564, 1.442695
      %v2584 = vpow.pop %v2583
      %v2585 = vmul.f32 %v2565, 1.442695
      %v2586 = vpow.pop %v2585
      %v2587 = vmul.f32 %v2566, 1.442695
      %v2588 = vpow.pop %v2587
      %v2589 = vmul.f32 %v2567, 1.442695
      %v2590 = vpow.pop %v2589
      %v2591 = vmul.f32 %v2568, 1.442695
      %v2592 = vpow.pop %v2591
      %v2593 = vmul.f32 %v2569, 1.442695
      %v2594 = vpow.pop %v2593
      %v2595 = vmul.f32 %v2570, 1.442695
      %v2596 = vpow.pop %v2595
      %v2597 = vmul.f32 %v2571, 1.442695
      %v2598 = vpow.pop %v2597
      %v2599 = vmul.f32 %v2572, 1.442695
      %v2600 = vpow.pop %v2599
      %v2601 = vmul.f32 %v2573, 1.442695
      %v2602 = vpow.pop %v2601
      %v2603 = vmul.f32 %v2574, 1.442695
      %v2604 = vpow.pop %v2603
      %v2605 = vmul.f32 %v2575, 1.442695
      %v2606 = vpow.pop %v2605
      %v2607 = vmul.f32 %v2576, 1.442695
      %v2608 = vpow.pop %v2607
      %2609 = vadd.xlane.f32.xlu0 %v2578
      %v2610 = vpop.xlane.xlu0 %2609
      %2611 = vadd.xlane.f32.xlu0 %v2580
      %v2612 = vpop.xlane.xlu0 %2611
      %2613 = vadd.xlane.f32.xlu0 %v2582
      %v2614 = vpop.xlane.xlu0 %2613
      %2615 = vadd.xlane.f32.xlu0 %v2584
      %v2616 = vpop.xlane.xlu0 %2615
      %2617 = vadd.xlane.f32.xlu0 %v2586
      %v2618 = vpop.xlane.xlu0 %2617
      %2619 = vadd.xlane.f32.xlu0 %v2588
      %v2620 = vpop.xlane.xlu0 %2619
      %2621 = vadd.xlane.f32.xlu0 %v2590
      %v2622 = vpop.xlane.xlu0 %2621
      %2623 = vadd.xlane.f32.xlu0 %v2592
      %v2624 = vpop.xlane.xlu0 %2623
      %2625 = vadd.xlane.f32.xlu0 %v2594
      %v2626 = vpop.xlane.xlu0 %2625
      %2627 = vadd.xlane.f32.xlu0 %v2596
      %v2628 = vpop.xlane.xlu0 %2627
      %2629 = vadd.xlane.f32.xlu0 %v2598
      %v2630 = vpop.xlane.xlu0 %2629
      %2631 = vadd.xlane.f32.xlu0 %v2600
      %v2632 = vpop.xlane.xlu0 %2631
      %2633 = vadd.xlane.f32.xlu0 %v2602
      %v2634 = vpop.xlane.xlu0 %2633
      %2635 = vadd.xlane.f32.xlu0 %v2604
      %v2636 = vpop.xlane.xlu0 %2635
      %2637 = vadd.xlane.f32.xlu0 %v2606
      %v2638 = vpop.xlane.xlu0 %2637
      %2639 = vadd.xlane.f32.xlu0 %v2608
      %v2640 = vpop.xlane.xlu0 %2639
      %v2641 = vrcp.pop %v2610
      %v2642 = vrcp.pop %v2612
      %v2643 = vrcp.pop %v2614
      %v2644 = vrcp.pop %v2616
      %v2645 = vrcp.pop %v2618
      %v2646 = vrcp.pop %v2620
      %v2647 = vrcp.pop %v2622
      %v2648 = vrcp.pop %v2624
      %v2649 = vrcp.pop %v2626
      %v2650 = vrcp.pop %v2628
      %v2651 = vrcp.pop %v2630
      %v2652 = vrcp.pop %v2632
      %v2653 = vrcp.pop %v2634
      %v2654 = vrcp.pop %v2636
      %v2655 = vrcp.pop %v2638
      %v2656 = vrcp.pop %v2640
      %v2657 = vmul.f32 %v2578, %v2641
      %v2658 = vmul.f32 %v2580, %v2642
      %v2659 = vmul.f32 %v2582, %v2643
      %v2660 = vmul.f32 %v2584, %v2644
      %v2661 = vmul.f32 %v2586, %v2645
      %v2662 = vmul.f32 %v2588, %v2646
      %v2663 = vmul.f32 %v2590, %v2647
      %v2664 = vmul.f32 %v2592, %v2648
      %v2665 = vmul.f32 %v2594, %v2649
      %v2666 = vmul.f32 %v2596, %v2650
      %v2667 = vmul.f32 %v2598, %v2651
      %v2668 = vmul.f32 %v2600, %v2652
      %v2669 = vmul.f32 %v2602, %v2653
      %v2670 = vmul.f32 %v2604, %v2654
      %v2671 = vmul.f32 %v2606, %v2655
      %v2672 = vmul.f32 %v2608, %v2656
      %v2673 = vpack.c.bf16 %v2658, %v2657
      %v2674 = vpack.c.bf16 %v2660, %v2659
      %v2675 = vpack.c.bf16 %v2662, %v2661
      %v2676 = vpack.c.bf16 %v2664, %v2663
      %v2677 = vpack.c.bf16 %v2666, %v2665
      %v2678 = vpack.c.bf16 %v2668, %v2667
      %v2679 = vpack.c.bf16 %v2670, %v2669
      %v2680 = vpack.c.bf16 %v2672, %v2671
      %2681 = vrot.lane.b32.xlu0 %v1453, 112
      %v2682 = vpop.permute.xlu0 %2681
      %2683 = vrot.lane.b32.xlu0 %v1454, 112
      %v2684 = vpop.permute.xlu0 %2683
      %2685 = vrot.lane.b32.xlu0 %v1455, 112
      %v2686 = vpop.permute.xlu0 %2685
      %2687 = vrot.lane.b32.xlu0 %v1456, 112
      %v2688 = vpop.permute.xlu0 %2687
      %2689 = vrot.lane.b32.xlu0 %v1457, 112
      %v2690 = vpop.permute.xlu0 %2689
      %2691 = vrot.lane.b32.xlu0 %v1458, 112
      %v2692 = vpop.permute.xlu0 %2691
      %2693 = vrot.lane.b32.xlu0 %v1459, 112
      %v2694 = vpop.permute.xlu0 %2693
      %2695 = vrot.lane.b32.xlu0 %v1460, 112
      %v2696 = vpop.permute.xlu0 %2695
      %2705 = vmatprep.subr.bf16.mxu0 0
      %2706 = vmatpush1.bf16.msra.mxu0 %v2696
      %2707 = vmatprep.subr.bf16.mxu0 0
      %2708 = vmatpush1.bf16.msra.mxu0 %v2694
      %2709 = vmatprep.subr.bf16.mxu0 0
      %2710 = vmatpush1.bf16.msra.mxu0 %v2692
      %2711 = vmatprep.subr.bf16.mxu0 0
      %2712 = vmatpush1.bf16.msra.mxu0 %v2690
      %2713 = vmatprep.subr.bf16.mxu0 0
      %2714 = vmatpush1.bf16.msra.mxu0 %v2688
      %2715 = vmatprep.subr.bf16.mxu0 0
      %2716 = vmatpush1.bf16.msra.mxu0 %v2686
      %2717 = vmatprep.subr.bf16.mxu0 0
      %2718 = vmatpush1.bf16.msra.mxu0 %v2684
      %2719 = vmatprep.subr.bf16.mxu0 0
      %2720 = vmatpush1.bf16.msra.mxu0 %v2682
      %2721 = vmatprep.subr.bf16.mxu0 0
      %2722 = vmatpush2.bf16.msra.mxu0 0
      %2723 = vmatprep.subr.bf16.mxu0 0
      %2724 = vmatpush2.bf16.msra.mxu0 0
      %2725 = vmatprep.subr.bf16.mxu0 0
      %2726 = vmatpush2.bf16.msra.mxu0 0
      %2727 = vmatprep.subr.bf16.mxu0 0
      %2728 = vmatpush2.bf16.msra.mxu0 0
      %2729 = vmatprep.subr.bf16.mxu0 0
      %2730 = vmatpush2.bf16.msra.mxu0 0
      %2731 = vmatprep.subr.bf16.mxu0 0
      %2732 = vmatpush2.bf16.msra.mxu0 0
      %2733 = vmatprep.subr.bf16.mxu0 0
      %2734 = vmatpush2.bf16.msra.mxu0 0
      %2735 = vmatprep.subr.bf16.mxu0 0
      %2736 = vmatpush2.bf16.msra.mxu0 0
      %2737 = vmatprep.mubr.bf16.mxu0 0
      %2738 = vmatmul.mubr.bf16.gmra.mxu0 %v2673
      %v2739 = vpop.f32.mrf.mxu0
      %v2740 = vadd.f32 0.0, %v2739
      %v2741 = vpop.f32.mrf.mxu0
      %v2742 = vpop.f32.mrf.mxu0
      %v2743 = vadd.f32 0.0, %v2742
      %v2744 = vpop.f32.mrf.mxu0
      %2745 = vmatprep.mubr.bf16.mxu0 0
      %2746 = vmatmul.mubr.bf16.gmra.mxu0 %v2674
      %v2747 = vpop.f32.mrf.mxu0
      %v2748 = vadd.f32 0.0, %v2747
      %v2749 = vpop.f32.mrf.mxu0
      %v2750 = vpop.f32.mrf.mxu0
      %v2751 = vadd.f32 0.0, %v2750
      %v2752 = vpop.f32.mrf.mxu0
      %2753 = vmatprep.mubr.bf16.mxu0 0
      %2754 = vmatmul.mubr.bf16.gmra.mxu0 %v2675
      %v2755 = vpop.f32.mrf.mxu0
      %v2756 = vadd.f32 0.0, %v2755
      %v2757 = vpop.f32.mrf.mxu0
      %v2758 = vpop.f32.mrf.mxu0
      %v2759 = vadd.f32 0.0, %v2758
      %v2760 = vpop.f32.mrf.mxu0
      %2761 = vmatprep.mubr.bf16.mxu0 0
      %2762 = vmatmul.mubr.bf16.gmra.mxu0 %v2676
      %v2763 = vpop.f32.mrf.mxu0
      %v2764 = vadd.f32 0.0, %v2763
      %v2765 = vpop.f32.mrf.mxu0
      %v2766 = vpop.f32.mrf.mxu0
      %v2767 = vadd.f32 0.0, %v2766
      %v2768 = vpop.f32.mrf.mxu0
      %2769 = vmatprep.mubr.bf16.mxu0 0
      %2770 = vmatmul.mubr.bf16.gmra.mxu0 %v2677
      %v2771 = vpop.f32.mrf.mxu0
      %v2772 = vadd.f32 0.0, %v2771
      %v2773 = vpop.f32.mrf.mxu0
      %v2774 = vpop.f32.mrf.mxu0
      %v2775 = vadd.f32 0.0, %v2774
      %v2776 = vpop.f32.mrf.mxu0
      %2777 = vmatprep.mubr.bf16.mxu0 0
      %2778 = vmatmul.mubr.bf16.gmra.mxu0 %v2678
      %v2779 = vpop.f32.mrf.mxu0
      %v2780 = vadd.f32 0.0, %v2779
      %v2781 = vpop.f32.mrf.mxu0
      %v2782 = vpop.f32.mrf.mxu0
      %v2783 = vadd.f32 0.0, %v2782
      %v2784 = vpop.f32.mrf.mxu0
      %2785 = vmatprep.mubr.bf16.mxu0 0
      %2786 = vmatmul.mubr.bf16.gmra.mxu0 %v2679
      %v2787 = vpop.f32.mrf.mxu0
      %v2788 = vadd.f32 0.0, %v2787
      %v2789 = vpop.f32.mrf.mxu0
      %v2790 = vpop.f32.mrf.mxu0
      %v2791 = vadd.f32 0.0, %v2790
      %v2792 = vpop.f32.mrf.mxu0
      %2793 = vmatprep.mubr.bf16.mxu0 0
      %2794 = vmatmul.mubr.bf16.gmra.mxu0 %v2680
      %v2795 = vpop.f32.mrf.mxu0
      %v2796 = vadd.f32 0.0, %v2795
      %v2797 = vpop.f32.mrf.mxu0
      %v2798 = vpop.f32.mrf.mxu0
      %v2799 = vadd.f32 0.0, %v2798
      %v2800 = vpop.f32.mrf.mxu0
      %2801 = vdwg.mxu0
      %2802 = vrot.lane.b32.xlu0 %v1437, 104
      %v2803 = vpop.permute.xlu0 %2802
      %2804 = vrot.lane.b32.xlu0 %v1438, 104
      %v2805 = vpop.permute.xlu0 %2804
      %2806 = vrot.lane.b32.xlu0 %v1439, 104
      %v2807 = vpop.permute.xlu0 %2806
      %2808 = vrot.lane.b32.xlu0 %v1440, 104
      %v2809 = vpop.permute.xlu0 %2808
      %2810 = vrot.lane.b32.xlu0 %v1441, 104
      %v2811 = vpop.permute.xlu0 %2810
      %2812 = vrot.lane.b32.xlu0 %v1442, 104
      %v2813 = vpop.permute.xlu0 %2812
      %2814 = vrot.lane.b32.xlu0 %v1443, 104
      %v2815 = vpop.permute.xlu0 %2814
      %2816 = vrot.lane.b32.xlu0 %v1444, 104
      %v2817 = vpop.permute.xlu0 %2816
      %2818 = vrot.lane.b32.xlu0 %v1445, 104
      %v2819 = vpop.permute.xlu0 %2818
      %2820 = vrot.lane.b32.xlu0 %v1446, 104
      %v2821 = vpop.permute.xlu0 %2820
      %2822 = vrot.lane.b32.xlu0 %v1447, 104
      %v2823 = vpop.permute.xlu0 %2822
      %2824 = vrot.lane.b32.xlu0 %v1448, 104
      %v2825 = vpop.permute.xlu0 %2824
      %2826 = vrot.lane.b32.xlu0 %v1449, 104
      %v2827 = vpop.permute.xlu0 %2826
      %2828 = vrot.lane.b32.xlu0 %v1450, 104
      %v2829 = vpop.permute.xlu0 %2828
      %2830 = vrot.lane.b32.xlu0 %v1451, 104
      %v2831 = vpop.permute.xlu0 %2830
      %2832 = vrot.lane.b32.xlu0 %v1452, 104
      %v2833 = vpop.permute.xlu0 %2832
      %v2835 = vsel %vm1483, %v2803, 0
      %v2838 = vsel %vm1483, %v2805, 0
      %v2841 = vsel %vm1483, %v2807, 0
      %v2844 = vsel %vm1483, %v2809, 0
      %v2847 = vsel %vm1483, %v2811, 0
      %v2850 = vsel %vm1483, %v2813, 0
      %v2853 = vsel %vm1483, %v2815, 0
      %v2856 = vsel %vm1483, %v2817, 0
      %v2859 = vsel %vm1483, %v2819, 0
      %v2862 = vsel %vm1483, %v2821, 0
      %v2865 = vsel %vm1483, %v2823, 0
      %v2868 = vsel %vm1483, %v2825, 0
      %v2871 = vsel %vm1483, %v2827, 0
      %v2874 = vsel %vm1483, %v2829, 0
      %v2877 = vsel %vm1483, %v2831, 0
      %v2880 = vsel %vm1483, %v2833, 0
      %2882 = vmatprep.subr.bf16.mxu0 0
      %2883 = vmatpush1.bf16.xpose.msra.mxu0 %v2880
      %2884 = vmatprep.subr.bf16.mxu0 0
      %2885 = vmatpush1.bf16.xpose.msra.mxu0 %v2877
      %2886 = vmatprep.subr.bf16.mxu0 0
      %2887 = vmatpush1.bf16.xpose.msra.mxu0 %v2874
      %2888 = vmatprep.subr.bf16.mxu0 0
      %2889 = vmatpush1.bf16.xpose.msra.mxu0 %v2871
      %2890 = vmatprep.subr.bf16.mxu0 0
      %2891 = vmatpush1.bf16.xpose.msra.mxu0 %v2868
      %2892 = vmatprep.subr.bf16.mxu0 0
      %2893 = vmatpush1.bf16.xpose.msra.mxu0 %v2865
      %2894 = vmatprep.subr.bf16.mxu0 0
      %2895 = vmatpush1.bf16.xpose.msra.mxu0 %v2862
      %2896 = vmatprep.subr.bf16.mxu0 0
      %2897 = vmatpush1.bf16.xpose.msra.mxu0 %v2859
      %2898 = vmatprep.subr.bf16.mxu0 0
      %2899 = vmatpush2.bf16.xpose.msra.mxu0 0
      %2900 = vmatprep.subr.bf16.mxu0 0
      %2901 = vmatpush2.bf16.xpose.msra.mxu0 0
      %2902 = vmatprep.subr.bf16.mxu0 0
      %2903 = vmatpush2.bf16.xpose.msra.mxu0 0
      %2904 = vmatprep.subr.bf16.mxu0 0
      %2905 = vmatpush2.bf16.xpose.msra.mxu0 0
      %2906 = vmatprep.subr.bf16.mxu0 0
      %2907 = vmatpush2.bf16.xpose.msra.mxu0 0
      %2908 = vmatprep.subr.bf16.mxu0 0
      %2909 = vmatpush2.bf16.xpose.msra.mxu0 0
      %2910 = vmatprep.subr.bf16.mxu0 0
      %2911 = vmatpush2.bf16.xpose.msra.mxu0 0
      %2912 = vmatprep.subr.bf16.mxu0 0
      %2913 = vmatpush2.bf16.xpose.msra.mxu0 0
      %2914 = vmatprep.mubr.bf16.mxu0 0
      %2915 = vmatmul.mubr.bf16.gmra.mxu0 %v2835
      %v2916 = vpop.f32.mrf.mxu0
      %v2917 = vadd.f32 %v1481, %v2916
      %v2918 = vpop.f32.mrf.mxu0
      %v2919 = vpop.f32.mrf.mxu0
      %v2920 = vadd.f32 %v1481, %v2919
      %v2921 = vpop.f32.mrf.mxu0
      %2922 = vmatprep.mubr.bf16.mxu0 0
      %2923 = vmatmul.mubr.bf16.gmra.mxu0 %v2838
      %v2924 = vpop.f32.mrf.mxu0
      %v2925 = vadd.f32 %v1481, %v2924
      %v2926 = vpop.f32.mrf.mxu0
      %v2927 = vpop.f32.mrf.mxu0
      %v2928 = vadd.f32 %v1481, %v2927
      %v2929 = vpop.f32.mrf.mxu0
      %2930 = vmatprep.mubr.bf16.mxu0 0
      %2931 = vmatmul.mubr.bf16.gmra.mxu0 %v2841
      %v2932 = vpop.f32.mrf.mxu0
      %v2933 = vadd.f32 %v1481, %v2932
      %v2934 = vpop.f32.mrf.mxu0
      %v2935 = vpop.f32.mrf.mxu0
      %v2936 = vadd.f32 %v1481, %v2935
      %v2937 = vpop.f32.mrf.mxu0
      %2938 = vmatprep.mubr.bf16.mxu0 0
      %2939 = vmatmul.mubr.bf16.gmra.mxu0 %v2844
      %v2940 = vpop.f32.mrf.mxu0
      %v2941 = vadd.f32 %v1481, %v2940
      %v2942 = vpop.f32.mrf.mxu0
      %v2943 = vpop.f32.mrf.mxu0
      %v2944 = vadd.f32 %v1481, %v2943
      %v2945 = vpop.f32.mrf.mxu0
      %2946 = vmatprep.mubr.bf16.mxu0 0
      %2947 = vmatmul.mubr.bf16.gmra.mxu0 %v2847
      %v2948 = vpop.f32.mrf.mxu0
      %v2949 = vadd.f32 %v1481, %v2948
      %v2950 = vpop.f32.mrf.mxu0
      %v2951 = vpop.f32.mrf.mxu0
      %v2952 = vadd.f32 %v1481, %v2951
      %v2953 = vpop.f32.mrf.mxu0
      %2954 = vmatprep.mubr.bf16.mxu0 0
      %2955 = vmatmul.mubr.bf16.gmra.mxu0 %v2850
      %v2956 = vpop.f32.mrf.mxu0
      %v2957 = vadd.f32 %v1481, %v2956
      %v2958 = vpop.f32.mrf.mxu0
      %v2959 = vpop.f32.mrf.mxu0
      %v2960 = vadd.f32 %v1481, %v2959
      %v2961 = vpop.f32.mrf.mxu0
      %2962 = vmatprep.mubr.bf16.mxu0 0
      %2963 = vmatmul.mubr.bf16.gmra.mxu0 %v2853
      %v2964 = vpop.f32.mrf.mxu0
      %v2965 = vadd.f32 %v1481, %v2964
      %v2966 = vpop.f32.mrf.mxu0
      %v2967 = vpop.f32.mrf.mxu0
      %v2968 = vadd.f32 %v1481, %v2967
      %v2969 = vpop.f32.mrf.mxu0
      %2970 = vmatprep.mubr.bf16.mxu0 0
      %2971 = vmatmul.mubr.bf16.gmra.mxu0 %v2856
      %v2972 = vpop.f32.mrf.mxu0
      %v2973 = vadd.f32 %v1481, %v2972
      %v2974 = vpop.f32.mrf.mxu0
      %v2975 = vpop.f32.mrf.mxu0
      %v2976 = vadd.f32 %v1481, %v2975
      %v2977 = vpop.f32.mrf.mxu0
      %2978 = vdwg.mxu0
      %2979 = vmax.xlane.f32.xlu0 %v2917
      %v2980 = vpop.xlane.xlu0 %2979
      %2981 = vmax.xlane.f32.xlu0 %v2920
      %v2982 = vpop.xlane.xlu0 %2981
      %2983 = vmax.xlane.f32.xlu0 %v2925
      %v2984 = vpop.xlane.xlu0 %2983
      %2985 = vmax.xlane.f32.xlu0 %v2928
      %v2986 = vpop.xlane.xlu0 %2985
      %2987 = vmax.xlane.f32.xlu0 %v2933
      %v2988 = vpop.xlane.xlu0 %2987
      %2989 = vmax.xlane.f32.xlu0 %v2936
      %v2990 = vpop.xlane.xlu0 %2989
      %2991 = vmax.xlane.f32.xlu0 %v2941
      %v2992 = vpop.xlane.xlu0 %2991
      %2993 = vmax.xlane.f32.xlu0 %v2944
      %v2994 = vpop.xlane.xlu0 %2993
      %2995 = vmax.xlane.f32.xlu0 %v2949
      %v2996 = vpop.xlane.xlu0 %2995
      %2997 = vmax.xlane.f32.xlu0 %v2952
      %v2998 = vpop.xlane.xlu0 %2997
      %2999 = vmax.xlane.f32.xlu0 %v2957
      %v3000 = vpop.xlane.xlu0 %2999
      %3001 = vmax.xlane.f32.xlu0 %v2960
      %v3002 = vpop.xlane.xlu0 %3001
      %3003 = vmax.xlane.f32.xlu0 %v2965
      %v3004 = vpop.xlane.xlu0 %3003
      %3005 = vmax.xlane.f32.xlu0 %v2968
      %v3006 = vpop.xlane.xlu0 %3005
      %3007 = vmax.xlane.f32.xlu0 %v2973
      %v3008 = vpop.xlane.xlu0 %3007
      %3009 = vmax.xlane.f32.xlu0 %v2976
      %v3010 = vpop.xlane.xlu0 %3009
      %v3011 = vsub.f32 %v2917, %v2980
      %v3012 = vsub.f32 %v2920, %v2982
      %v3013 = vsub.f32 %v2925, %v2984
      %v3014 = vsub.f32 %v2928, %v2986
      %v3015 = vsub.f32 %v2933, %v2988
      %v3016 = vsub.f32 %v2936, %v2990
      %v3017 = vsub.f32 %v2941, %v2992
      %v3018 = vsub.f32 %v2944, %v2994
      %v3019 = vsub.f32 %v2949, %v2996
      %v3020 = vsub.f32 %v2952, %v2998
      %v3021 = vsub.f32 %v2957, %v3000
      %v3022 = vsub.f32 %v2960, %v3002
      %v3023 = vsub.f32 %v2965, %v3004
      %v3024 = vsub.f32 %v2968, %v3006
      %v3025 = vsub.f32 %v2973, %v3008
      %v3026 = vsub.f32 %v2976, %v3010
      %v3027 = vmul.f32 %v3011, 1.442695
      %v3028 = vpow.pop %v3027
      %v3029 = vmul.f32 %v3012, 1.442695
      %v3030 = vpow.pop %v3029
      %v3031 = vmul.f32 %v3013, 1.442695
      %v3032 = vpow.pop %v3031
      %v3033 = vmul.f32 %v3014, 1.442695
      %v3034 = vpow.pop %v3033
      %v3035 = vmul.f32 %v3015, 1.442695
      %v3036 = vpow.pop %v3035
      %v3037 = vmul.f32 %v3016, 1.442695
      %v3038 = vpow.pop %v3037
      %v3039 = vmul.f32 %v3017, 1.442695
      %v3040 = vpow.pop %v3039
      %v3041 = vmul.f32 %v3018, 1.442695
      %v3042 = vpow.pop %v3041
      %v3043 = vmul.f32 %v3019, 1.442695
      %v3044 = vpow.pop %v3043
      %v3045 = vmul.f32 %v3020, 1.442695
      %v3046 = vpow.pop %v3045
      %v3047 = vmul.f32 %v3021, 1.442695
      %v3048 = vpow.pop %v3047
      %v3049 = vmul.f32 %v3022, 1.442695
      %v3050 = vpow.pop %v3049
      %v3051 = vmul.f32 %v3023, 1.442695
      %v3052 = vpow.pop %v3051
      %v3053 = vmul.f32 %v3024, 1.442695
      %v3054 = vpow.pop %v3053
      %v3055 = vmul.f32 %v3025, 1.442695
      %v3056 = vpow.pop %v3055
      %v3057 = vmul.f32 %v3026, 1.442695
      %v3058 = vpow.pop %v3057
      %3059 = vadd.xlane.f32.xlu0 %v3028
      %v3060 = vpop.xlane.xlu0 %3059
      %3061 = vadd.xlane.f32.xlu0 %v3030
      %v3062 = vpop.xlane.xlu0 %3061
      %3063 = vadd.xlane.f32.xlu0 %v3032
      %v3064 = vpop.xlane.xlu0 %3063
      %3065 = vadd.xlane.f32.xlu0 %v3034
      %v3066 = vpop.xlane.xlu0 %3065
      %3067 = vadd.xlane.f32.xlu0 %v3036
      %v3068 = vpop.xlane.xlu0 %3067
      %3069 = vadd.xlane.f32.xlu0 %v3038
      %v3070 = vpop.xlane.xlu0 %3069
      %3071 = vadd.xlane.f32.xlu0 %v3040
      %v3072 = vpop.xlane.xlu0 %3071
      %3073 = vadd.xlane.f32.xlu0 %v3042
      %v3074 = vpop.xlane.xlu0 %3073
      %3075 = vadd.xlane.f32.xlu0 %v3044
      %v3076 = vpop.xlane.xlu0 %3075
      %3077 = vadd.xlane.f32.xlu0 %v3046
      %v3078 = vpop.xlane.xlu0 %3077
      %3079 = vadd.xlane.f32.xlu0 %v3048
      %v3080 = vpop.xlane.xlu0 %3079
      %3081 = vadd.xlane.f32.xlu0 %v3050
      %v3082 = vpop.xlane.xlu0 %3081
      %3083 = vadd.xlane.f32.xlu0 %v3052
      %v3084 = vpop.xlane.xlu0 %3083
      %3085 = vadd.xlane.f32.xlu0 %v3054
      %v3086 = vpop.xlane.xlu0 %3085
      %3087 = vadd.xlane.f32.xlu0 %v3056
      %v3088 = vpop.xlane.xlu0 %3087
      %3089 = vadd.xlane.f32.xlu0 %v3058
      %v3090 = vpop.xlane.xlu0 %3089
      %v3091 = vrcp.pop %v3060
      %v3092 = vrcp.pop %v3062
      %v3093 = vrcp.pop %v3064
      %v3094 = vrcp.pop %v3066
      %v3095 = vrcp.pop %v3068
      %v3096 = vrcp.pop %v3070
      %v3097 = vrcp.pop %v3072
      %v3098 = vrcp.pop %v3074
      %v3099 = vrcp.pop %v3076
      %v3100 = vrcp.pop %v3078
      %v3101 = vrcp.pop %v3080
      %v3102 = vrcp.pop %v3082
      %v3103 = vrcp.pop %v3084
      %v3104 = vrcp.pop %v3086
      %v3105 = vrcp.pop %v3088
      %v3106 = vrcp.pop %v3090
      %v3107 = vmul.f32 %v3028, %v3091
      %v3108 = vmul.f32 %v3030, %v3092
      %v3109 = vmul.f32 %v3032, %v3093
      %v3110 = vmul.f32 %v3034, %v3094
      %v3111 = vmul.f32 %v3036, %v3095
      %v3112 = vmul.f32 %v3038, %v3096
      %v3113 = vmul.f32 %v3040, %v3097
      %v3114 = vmul.f32 %v3042, %v3098
      %v3115 = vmul.f32 %v3044, %v3099
      %v3116 = vmul.f32 %v3046, %v3100
      %v3117 = vmul.f32 %v3048, %v3101
      %v3118 = vmul.f32 %v3050, %v3102
      %v3119 = vmul.f32 %v3052, %v3103
      %v3120 = vmul.f32 %v3054, %v3104
      %v3121 = vmul.f32 %v3056, %v3105
      %v3122 = vmul.f32 %v3058, %v3106
      %v3123 = vpack.c.bf16 %v3108, %v3107
      %v3124 = vpack.c.bf16 %v3110, %v3109
      %v3125 = vpack.c.bf16 %v3112, %v3111
      %v3126 = vpack.c.bf16 %v3114, %v3113
      %v3127 = vpack.c.bf16 %v3116, %v3115
      %v3128 = vpack.c.bf16 %v3118, %v3117
      %v3129 = vpack.c.bf16 %v3120, %v3119
      %v3130 = vpack.c.bf16 %v3122, %v3121
      %3131 = vrot.lane.b32.xlu0 %v1453, 104
      %v3132 = vpop.permute.xlu0 %3131
      %3133 = vrot.lane.b32.xlu0 %v1454, 104
      %v3134 = vpop.permute.xlu0 %3133
      %3135 = vrot.lane.b32.xlu0 %v1455, 104
      %v3136 = vpop.permute.xlu0 %3135
      %3137 = vrot.lane.b32.xlu0 %v1456, 104
      %v3138 = vpop.permute.xlu0 %3137
      %3139 = vrot.lane.b32.xlu0 %v1457, 104
      %v3140 = vpop.permute.xlu0 %3139
      %3141 = vrot.lane.b32.xlu0 %v1458, 104
      %v3142 = vpop.permute.xlu0 %3141
      %3143 = vrot.lane.b32.xlu0 %v1459, 104
      %v3144 = vpop.permute.xlu0 %3143
      %3145 = vrot.lane.b32.xlu0 %v1460, 104
      %v3146 = vpop.permute.xlu0 %3145
      %3155 = vmatprep.subr.bf16.mxu0 0
      %3156 = vmatpush1.bf16.msra.mxu0 %v3146
      %3157 = vmatprep.subr.bf16.mxu0 0
      %3158 = vmatpush1.bf16.msra.mxu0 %v3144
      %3159 = vmatprep.subr.bf16.mxu0 0
      %3160 = vmatpush1.bf16.msra.mxu0 %v3142
      %3161 = vmatprep.subr.bf16.mxu0 0
      %3162 = vmatpush1.bf16.msra.mxu0 %v3140
      %3163 = vmatprep.subr.bf16.mxu0 0
      %3164 = vmatpush1.bf16.msra.mxu0 %v3138
      %3165 = vmatprep.subr.bf16.mxu0 0
      %3166 = vmatpush1.bf16.msra.mxu0 %v3136
      %3167 = vmatprep.subr.bf16.mxu0 0
      %3168 = vmatpush1.bf16.msra.mxu0 %v3134
      %3169 = vmatprep.subr.bf16.mxu0 0
      %3170 = vmatpush1.bf16.msra.mxu0 %v3132
      %3171 = vmatprep.subr.bf16.mxu0 0
      %3172 = vmatpush2.bf16.msra.mxu0 0
      %3173 = vmatprep.subr.bf16.mxu0 0
      %3174 = vmatpush2.bf16.msra.mxu0 0
      %3175 = vmatprep.subr.bf16.mxu0 0
      %3176 = vmatpush2.bf16.msra.mxu0 0
      %3177 = vmatprep.subr.bf16.mxu0 0
      %3178 = vmatpush2.bf16.msra.mxu0 0
      %3179 = vmatprep.subr.bf16.mxu0 0
      %3180 = vmatpush2.bf16.msra.mxu0 0
      %3181 = vmatprep.subr.bf16.mxu0 0
      %3182 = vmatpush2.bf16.msra.mxu0 0
      %3183 = vmatprep.subr.bf16.mxu0 0
      %3184 = vmatpush2.bf16.msra.mxu0 0
      %3185 = vmatprep.subr.bf16.mxu0 0
      %3186 = vmatpush2.bf16.msra.mxu0 0
      %3187 = vmatprep.mubr.bf16.mxu0 0
      %3188 = vmatmul.mubr.bf16.gmra.mxu0 %v3123
      %v3189 = vpop.f32.mrf.mxu0
      %v3190 = vadd.f32 0.0, %v3189
      %v3191 = vpop.f32.mrf.mxu0
      %v3192 = vpop.f32.mrf.mxu0
      %v3193 = vadd.f32 0.0, %v3192
      %v3194 = vpop.f32.mrf.mxu0
      %3195 = vmatprep.mubr.bf16.mxu0 0
      %3196 = vmatmul.mubr.bf16.gmra.mxu0 %v3124
      %v3197 = vpop.f32.mrf.mxu0
      %v3198 = vadd.f32 0.0, %v3197
      %v3199 = vpop.f32.mrf.mxu0
      %v3200 = vpop.f32.mrf.mxu0
      %v3201 = vadd.f32 0.0, %v3200
      %v3202 = vpop.f32.mrf.mxu0
      %3203 = vmatprep.mubr.bf16.mxu0 0
      %3204 = vmatmul.mubr.bf16.gmra.mxu0 %v3125
      %v3205 = vpop.f32.mrf.mxu0
      %v3206 = vadd.f32 0.0, %v3205
      %v3207 = vpop.f32.mrf.mxu0
      %v3208 = vpop.f32.mrf.mxu0
      %v3209 = vadd.f32 0.0, %v3208
      %v3210 = vpop.f32.mrf.mxu0
      %3211 = vmatprep.mubr.bf16.mxu0 0
      %3212 = vmatmul.mubr.bf16.gmra.mxu0 %v3126
      %v3213 = vpop.f32.mrf.mxu0
      %v3214 = vadd.f32 0.0, %v3213
      %v3215 = vpop.f32.mrf.mxu0
      %v3216 = vpop.f32.mrf.mxu0
      %v3217 = vadd.f32 0.0, %v3216
      %v3218 = vpop.f32.mrf.mxu0
      %3219 = vmatprep.mubr.bf16.mxu0 0
      %3220 = vmatmul.mubr.bf16.gmra.mxu0 %v3127
      %v3221 = vpop.f32.mrf.mxu0
      %v3222 = vadd.f32 0.0, %v3221
      %v3223 = vpop.f32.mrf.mxu0
      %v3224 = vpop.f32.mrf.mxu0
      %v3225 = vadd.f32 0.0, %v3224
      %v3226 = vpop.f32.mrf.mxu0
      %3227 = vmatprep.mubr.bf16.mxu0 0
      %3228 = vmatmul.mubr.bf16.gmra.mxu0 %v3128
      %v3229 = vpop.f32.mrf.mxu0
      %v3230 = vadd.f32 0.0, %v3229
      %v3231 = vpop.f32.mrf.mxu0
      %v3232 = vpop.f32.mrf.mxu0
      %v3233 = vadd.f32 0.0, %v3232
      %v3234 = vpop.f32.mrf.mxu0
      %3235 = vmatprep.mubr.bf16.mxu0 0
      %3236 = vmatmul.mubr.bf16.gmra.mxu0 %v3129
      %v3237 = vpop.f32.mrf.mxu0
      %v3238 = vadd.f32 0.0, %v3237
      %v3239 = vpop.f32.mrf.mxu0
      %v3240 = vpop.f32.mrf.mxu0
      %v3241 = vadd.f32 0.0, %v3240
      %v3242 = vpop.f32.mrf.mxu0
      %3243 = vmatprep.mubr.bf16.mxu0 0
      %3244 = vmatmul.mubr.bf16.gmra.mxu0 %v3130
      %v3245 = vpop.f32.mrf.mxu0
      %v3246 = vadd.f32 0.0, %v3245
      %v3247 = vpop.f32.mrf.mxu0
      %v3248 = vpop.f32.mrf.mxu0
      %v3249 = vadd.f32 0.0, %v3248
      %v3250 = vpop.f32.mrf.mxu0
      %3251 = vdwg.mxu0
      %3268 = vrot.lane.b32.xlu0 %v2290, 8
      %v3269 = vpop.permute.xlu0 %3268
      %3270 = vrot.lane.b32.xlu0 %v2293, 8
      %v3271 = vpop.permute.xlu0 %3270
      %3272 = vrot.lane.b32.xlu0 %v2298, 8
      %v3273 = vpop.permute.xlu0 %3272
      %3274 = vrot.lane.b32.xlu0 %v2301, 8
      %v3275 = vpop.permute.xlu0 %3274
      %3276 = vrot.lane.b32.xlu0 %v2306, 8
      %v3277 = vpop.permute.xlu0 %3276
      %3278 = vrot.lane.b32.xlu0 %v2309, 8
      %v3279 = vpop.permute.xlu0 %3278
      %3280 = vrot.lane.b32.xlu0 %v2314, 8
      %v3281 = vpop.permute.xlu0 %3280
      %3282 = vrot.lane.b32.xlu0 %v2317, 8
      %v3283 = vpop.permute.xlu0 %3282
      %3284 = vrot.lane.b32.xlu0 %v2322, 8
      %v3285 = vpop.permute.xlu0 %3284
      %3286 = vrot.lane.b32.xlu0 %v2325, 8
      %v3287 = vpop.permute.xlu0 %3286
      %3288 = vrot.lane.b32.xlu0 %v2330, 8
      %v3289 = vpop.permute.xlu0 %3288
      %3290 = vrot.lane.b32.xlu0 %v2333, 8
      %v3291 = vpop.permute.xlu0 %3290
      %3292 = vrot.lane.b32.xlu0 %v2338, 8
      %v3293 = vpop.permute.xlu0 %3292
      %3294 = vrot.lane.b32.xlu0 %v2341, 8
      %v3295 = vpop.permute.xlu0 %3294
      %3296 = vrot.lane.b32.xlu0 %v2346, 8
      %v3297 = vpop.permute.xlu0 %3296
      %3298 = vrot.lane.b32.xlu0 %v2349, 8
      %v3299 = vpop.permute.xlu0 %3298
      %3332 = vrot.lane.b32.xlu0 %v2740, 16
      %v3333 = vpop.permute.xlu0 %3332
      %3334 = vrot.lane.b32.xlu0 %v2743, 16
      %v3335 = vpop.permute.xlu0 %3334
      %3336 = vrot.lane.b32.xlu0 %v2748, 16
      %v3337 = vpop.permute.xlu0 %3336
      %3338 = vrot.lane.b32.xlu0 %v2751, 16
      %v3339 = vpop.permute.xlu0 %3338
      %3340 = vrot.lane.b32.xlu0 %v2756, 16
      %v3341 = vpop.permute.xlu0 %3340
      %3342 = vrot.lane.b32.xlu0 %v2759, 16
      %v3343 = vpop.permute.xlu0 %3342
      %3344 = vrot.lane.b32.xlu0 %v2764, 16
      %v3345 = vpop.permute.xlu0 %3344
      %3346 = vrot.lane.b32.xlu0 %v2767, 16
      %v3347 = vpop.permute.xlu0 %3346
      %3348 = vrot.lane.b32.xlu0 %v2772, 16
      %v3349 = vpop.permute.xlu0 %3348
      %3350 = vrot.lane.b32.xlu0 %v2775, 16
      %v3351 = vpop.permute.xlu0 %3350
      %3352 = vrot.lane.b32.xlu0 %v2780, 16
      %v3353 = vpop.permute.xlu0 %3352
      %3354 = vrot.lane.b32.xlu0 %v2783, 16
      %v3355 = vpop.permute.xlu0 %3354
      %3356 = vrot.lane.b32.xlu0 %v2788, 16
      %v3357 = vpop.permute.xlu0 %3356
      %3358 = vrot.lane.b32.xlu0 %v2791, 16
      %v3359 = vpop.permute.xlu0 %3358
      %3360 = vrot.lane.b32.xlu0 %v2796, 16
      %v3361 = vpop.permute.xlu0 %3360
      %3362 = vrot.lane.b32.xlu0 %v2799, 16
      %v3363 = vpop.permute.xlu0 %3362
      %3396 = vrot.lane.b32.xlu0 %v3190, 24
      %v3397 = vpop.permute.xlu0 %3396
      %3398 = vrot.lane.b32.xlu0 %v3193, 24
      %v3399 = vpop.permute.xlu0 %3398
      %3400 = vrot.lane.b32.xlu0 %v3198, 24
      %v3401 = vpop.permute.xlu0 %3400
      %3402 = vrot.lane.b32.xlu0 %v3201, 24
      %v3403 = vpop.permute.xlu0 %3402
      %3404 = vrot.lane.b32.xlu0 %v3206, 24
      %v3405 = vpop.permute.xlu0 %3404
      %3406 = vrot.lane.b32.xlu0 %v3209, 24
      %v3407 = vpop.permute.xlu0 %3406
      %3408 = vrot.lane.b32.xlu0 %v3214, 24
      %v3409 = vpop.permute.xlu0 %3408
      %3410 = vrot.lane.b32.xlu0 %v3217, 24
      %v3411 = vpop.permute.xlu0 %3410
      %3412 = vrot.lane.b32.xlu0 %v3222, 24
      %v3413 = vpop.permute.xlu0 %3412
      %3414 = vrot.lane.b32.xlu0 %v3225, 24
      %v3415 = vpop.permute.xlu0 %3414
      %3416 = vrot.lane.b32.xlu0 %v3230, 24
      %v3417 = vpop.permute.xlu0 %3416
      %3418 = vrot.lane.b32.xlu0 %v3233, 24
      %v3419 = vpop.permute.xlu0 %3418
      %3420 = vrot.lane.b32.xlu0 %v3238, 24
      %v3421 = vpop.permute.xlu0 %3420
      %3422 = vrot.lane.b32.xlu0 %v3241, 24
      %v3423 = vpop.permute.xlu0 %3422
      %3424 = vrot.lane.b32.xlu0 %v3246, 24
      %v3425 = vpop.permute.xlu0 %3424
      %3426 = vrot.lane.b32.xlu0 %v3249, 24
      %v3427 = vpop.permute.xlu0 %3426
      %v3444 = vsel %vm1483, %v1816, %v3269
      %v3445 = vsel %vm1483, %v1819, %v3271
      %v3446 = vsel %vm1483, %v1824, %v3273
      %v3447 = vsel %vm1483, %v1827, %v3275
      %v3448 = vsel %vm1483, %v1832, %v3277
      %v3449 = vsel %vm1483, %v1835, %v3279
      %v3450 = vsel %vm1483, %v1840, %v3281
      %v3451 = vsel %vm1483, %v1843, %v3283
      %v3452 = vsel %vm1483, %v1848, %v3285
      %v3453 = vsel %vm1483, %v1851, %v3287
      %v3454 = vsel %vm1483, %v1856, %v3289
      %v3455 = vsel %vm1483, %v1859, %v3291
      %v3456 = vsel %vm1483, %v1864, %v3293
      %v3457 = vsel %vm1483, %v1867, %v3295
      %v3458 = vsel %vm1483, %v1872, %v3297
      %v3459 = vsel %vm1483, %v1875, %v3299
      %vm3460 = vcmask 130048
      %v3461 = vsel %vm3460, %v3444, %v3333
      %v3462 = vsel %vm3460, %v3445, %v3335
      %v3463 = vsel %vm3460, %v3446, %v3337
      %v3464 = vsel %vm3460, %v3447, %v3339
      %v3465 = vsel %vm3460, %v3448, %v3341
      %v3466 = vsel %vm3460, %v3449, %v3343
      %v3467 = vsel %vm3460, %v3450, %v3345
      %v3468 = vsel %vm3460, %v3451, %v3347
      %v3469 = vsel %vm3460, %v3452, %v3349
      %v3470 = vsel %vm3460, %v3453, %v3351
      %v3471 = vsel %vm3460, %v3454, %v3353
      %v3472 = vsel %vm3460, %v3455, %v3355
      %v3473 = vsel %vm3460, %v3456, %v3357
      %v3474 = vsel %vm3460, %v3457, %v3359
      %v3475 = vsel %vm3460, %v3458, %v3361
      %v3476 = vsel %vm3460, %v3459, %v3363
      %vm3477 = vcmask 195584
      %v3478 = vsel %vm3477, %v3461, %v3397
      %v3479 = vsel %vm3477, %v3462, %v3399
      %v3480 = vsel %vm3477, %v3463, %v3401
      %v3481 = vsel %vm3477, %v3464, %v3403
      %v3482 = vsel %vm3477, %v3465, %v3405
      %v3483 = vsel %vm3477, %v3466, %v3407
      %v3484 = vsel %vm3477, %v3467, %v3409
      %v3485 = vsel %vm3477, %v3468, %v3411
      %v3486 = vsel %vm3477, %v3469, %v3413
      %v3487 = vsel %vm3477, %v3470, %v3415
      %v3488 = vsel %vm3477, %v3471, %v3417
      %v3489 = vsel %vm3477, %v3472, %v3419
      %v3490 = vsel %vm3477, %v3473, %v3421
      %v3491 = vsel %vm3477, %v3474, %v3423
      %v3492 = vsel %vm3477, %v3475, %v3425
      %v3493 = vsel %vm3477, %v3476, %v3427
      %v3494 = vpack.c.bf16 %v3479, %v3478
      %v3495 = vpack.c.bf16 %v3481, %v3480
      %v3496 = vpack.c.bf16 %v3483, %v3482
      %v3497 = vpack.c.bf16 %v3485, %v3484
      %v3498 = vpack.c.bf16 %v3487, %v3486
      %v3499 = vpack.c.bf16 %v3489, %v3488
      %v3500 = vpack.c.bf16 %v3491, %v3490
      %v3501 = vpack.c.bf16 %v3493, %v3492
      %v3502 = vld [vmem:[%s875] sm:$0x1]
      %v3504 = vlaneseq
      %v3505 = vshrl.u32 %v3504, 7
      %v3506 = vsub.s32 0, %v3505
      %v3507 = vrot.slane %v3502, %v3506
      %v3513 = vunpack.c.l.b16 %v1461
      %v3514 = vunpack.c.l.b16 %v1462
      %v3515 = vunpack.c.l.b16 %v1463
      %v3516 = vunpack.c.l.b16 %v1464
      %v3517 = vpack.c.b16 %v3514, %v3513
      %v3518 = vpack.c.b16 %v3516, %v3515
      %v3522 = vsel %vm1051, %v3494, 0
      %v3525 = vsel %vm1051, %v3495, 0
      %v3528 = vsel %vm1051, %v3496, 0
      %v3531 = vsel %vm1051, %v3497, 0
      %v3534 = vsel %vm1051, %v3498, 0
      %v3537 = vsel %vm1051, %v3499, 0
      %v3540 = vsel %vm1051, %v3500, 0
      %v3543 = vsel %vm1051, %v3501, 0
      %3545 = vmatprep.subr.bf16.mxu0 0
      %3546 = vmatpush1.bf16.msra.mxu0 0
      %3547 = vmatprep.subr.bf16.mxu0 0
      %3548 = vmatpush1.bf16.msra.mxu0 0
      %3549 = vmatprep.subr.bf16.mxu0 0
      %3550 = vmatpush1.bf16.msra.mxu0 0
      %3551 = vmatprep.subr.bf16.mxu0 0
      %3552 = vmatpush1.bf16.msra.mxu0 0
      %3553 = vmatprep.subr.bf16.mxu0 0
      %3554 = vmatpush1.bf16.msra.mxu0 0
      %3555 = vmatprep.subr.bf16.mxu0 0
      %3556 = vmatpush1.bf16.msra.mxu0 0
      %3557 = vmatprep.subr.bf16.mxu0 0
      %3558 = vmatpush1.bf16.msra.mxu0 %v3518
      %3559 = vmatprep.subr.bf16.mxu0 0
      %3560 = vmatpush1.bf16.msra.mxu0 %v3517
      %3561 = vmatprep.subr.bf16.mxu0 0
      %3562 = vmatpush2.bf16.msra.mxu0 0
      %3563 = vmatprep.subr.bf16.mxu0 0
      %3564 = vmatpush2.bf16.msra.mxu0 0
      %3565 = vmatprep.subr.bf16.mxu0 0
      %3566 = vmatpush2.bf16.msra.mxu0 0
      %3567 = vmatprep.subr.bf16.mxu0 0
      %3568 = vmatpush2.bf16.msra.mxu0 0
      %3569 = vmatprep.subr.bf16.mxu0 0
      %3570 = vmatpush2.bf16.msra.mxu0 0
      %3571 = vmatprep.subr.bf16.mxu0 0
      %3572 = vmatpush2.bf16.msra.mxu0 0
      %3573 = vmatprep.subr.bf16.mxu0 0
      %3574 = vmatpush2.bf16.msra.mxu0 0
      %3575 = vmatprep.subr.bf16.mxu0 0
      %3576 = vmatpush2.bf16.msra.mxu0 0
      %3577 = vmatprep.mubr.bf16.mxu0 0
      %3578 = vmatmul.mubr.bf16.gmra.mxu0 %v3522
      %v3579 = vpop.f32.mrf.mxu0
      %v3580 = vadd.f32 %v3507, %v3579
      %v3581 = vpop.f32.mrf.mxu0
      %v3582 = vpop.f32.mrf.mxu0
      %v3583 = vadd.f32 %v3507, %v3582
      %v3584 = vpop.f32.mrf.mxu0
      %3585 = vmatprep.mubr.bf16.mxu0 0
      %3586 = vmatmul.mubr.bf16.gmra.mxu0 %v3525
      %v3587 = vpop.f32.mrf.mxu0
      %v3588 = vadd.f32 %v3507, %v3587
      %v3589 = vpop.f32.mrf.mxu0
      %v3590 = vpop.f32.mrf.mxu0
      %v3591 = vadd.f32 %v3507, %v3590
      %v3592 = vpop.f32.mrf.mxu0
      %3593 = vmatprep.mubr.bf16.mxu0 0
      %3594 = vmatmul.mubr.bf16.gmra.mxu0 %v3528
      %v3595 = vpop.f32.mrf.mxu0
      %v3596 = vadd.f32 %v3507, %v3595
      %v3597 = vpop.f32.mrf.mxu0
      %v3598 = vpop.f32.mrf.mxu0
      %v3599 = vadd.f32 %v3507, %v3598
      %v3600 = vpop.f32.mrf.mxu0
      %3601 = vmatprep.mubr.bf16.mxu0 0
      %3602 = vmatmul.mubr.bf16.gmra.mxu0 %v3531
      %v3603 = vpop.f32.mrf.mxu0
      %v3604 = vadd.f32 %v3507, %v3603
      %v3605 = vpop.f32.mrf.mxu0
      %v3606 = vpop.f32.mrf.mxu0
      %v3607 = vadd.f32 %v3507, %v3606
      %v3608 = vpop.f32.mrf.mxu0
      %3609 = vmatprep.mubr.bf16.mxu0 0
      %3610 = vmatmul.mubr.bf16.gmra.mxu0 %v3534
      %v3611 = vpop.f32.mrf.mxu0
      %v3612 = vadd.f32 %v3507, %v3611
      %v3613 = vpop.f32.mrf.mxu0
      %v3614 = vpop.f32.mrf.mxu0
      %v3615 = vadd.f32 %v3507, %v3614
      %v3616 = vpop.f32.mrf.mxu0
      %3617 = vmatprep.mubr.bf16.mxu0 0
      %3618 = vmatmul.mubr.bf16.gmra.mxu0 %v3537
      %v3619 = vpop.f32.mrf.mxu0
      %v3620 = vadd.f32 %v3507, %v3619
      %v3621 = vpop.f32.mrf.mxu0
      %v3622 = vpop.f32.mrf.mxu0
      %v3623 = vadd.f32 %v3507, %v3622
      %v3624 = vpop.f32.mrf.mxu0
      %3625 = vmatprep.mubr.bf16.mxu0 0
      %3626 = vmatmul.mubr.bf16.gmra.mxu0 %v3540
      %v3627 = vpop.f32.mrf.mxu0
      %v3628 = vadd.f32 %v3507, %v3627
      %v3629 = vpop.f32.mrf.mxu0
      %v3630 = vpop.f32.mrf.mxu0
      %v3631 = vadd.f32 %v3507, %v3630
      %v3632 = vpop.f32.mrf.mxu0
      %3633 = vmatprep.mubr.bf16.mxu0 0
      %3634 = vmatmul.mubr.bf16.gmra.mxu0 %v3543
      %v3635 = vpop.f32.mrf.mxu0
      %v3636 = vadd.f32 %v3507, %v3635
      %v3637 = vpop.f32.mrf.mxu0
      %v3638 = vpop.f32.mrf.mxu0
      %v3639 = vadd.f32 %v3507, %v3638
      %v3640 = vpop.f32.mrf.mxu0
      %3641 = vdwg.mxu0
      %v3642 = vadd.f32 %v947, %v3580
      %v3643 = vadd.f32 %v948, %v3583
      %v3644 = vadd.f32 %v949, %v3588
      %v3645 = vadd.f32 %v950, %v3591
      %v3646 = vadd.f32 %v951, %v3596
      %v3647 = vadd.f32 %v952, %v3599
      %v3648 = vadd.f32 %v953, %v3604
      %v3649 = vadd.f32 %v954, %v3607
      %v3650 = vadd.f32 %v955, %v3612
      %v3651 = vadd.f32 %v956, %v3615
      %v3652 = vadd.f32 %v957, %v3620
      %v3653 = vadd.f32 %v958, %v3623
      %v3654 = vadd.f32 %v959, %v3628
      %v3655 = vadd.f32 %v960, %v3631
      %v3656 = vadd.f32 %v961, %v3636
      %v3657 = vadd.f32 %v962, %v3639
      %v3658 = vld [vmem:[%s878] sm:$0x1]
      %v3659 = vld [vmem:[%s881] sm:$0x1]
      %v3660 = vsel %vm1051, %v3642, 0.0
      %3661 = vadd.xlane.f32.xlu0 %v3660
      %v3662 = vpop.xlane.xlu0 %3661
      %v3663 = vsel %vm1051, %v3643, 0.0
      %3664 = vadd.xlane.f32.xlu0 %v3663
      %v3665 = vpop.xlane.xlu0 %3664
      %v3666 = vsel %vm1051, %v3644, 0.0
      %3667 = vadd.xlane.f32.xlu0 %v3666
      %v3668 = vpop.xlane.xlu0 %3667
      %v3669 = vsel %vm1051, %v3645, 0.0
      %3670 = vadd.xlane.f32.xlu0 %v3669
      %v3671 = vpop.xlane.xlu0 %3670
      %v3672 = vsel %vm1051, %v3646, 0.0
      %3673 = vadd.xlane.f32.xlu0 %v3672
      %v3674 = vpop.xlane.xlu0 %3673
      %v3675 = vsel %vm1051, %v3647, 0.0
      %3676 = vadd.xlane.f32.xlu0 %v3675
      %v3677 = vpop.xlane.xlu0 %3676
      %v3678 = vsel %vm1051, %v3648, 0.0
      %3679 = vadd.xlane.f32.xlu0 %v3678
      %v3680 = vpop.xlane.xlu0 %3679
      %v3681 = vsel %vm1051, %v3649, 0.0
      %3682 = vadd.xlane.f32.xlu0 %v3681
      %v3683 = vpop.xlane.xlu0 %3682
      %v3684 = vsel %vm1051, %v3650, 0.0
      %3685 = vadd.xlane.f32.xlu0 %v3684
      %v3686 = vpop.xlane.xlu0 %3685
      %v3687 = vsel %vm1051, %v3651, 0.0
      %3688 = vadd.xlane.f32.xlu0 %v3687
      %v3689 = vpop.xlane.xlu0 %3688
      %v3690 = vsel %vm1051, %v3652, 0.0
      %3691 = vadd.xlane.f32.xlu0 %v3690
      %v3692 = vpop.xlane.xlu0 %3691
      %v3693 = vsel %vm1051, %v3653, 0.0
      %3694 = vadd.xlane.f32.xlu0 %v3693
      %v3695 = vpop.xlane.xlu0 %3694
      %v3696 = vsel %vm1051, %v3654, 0.0
      %3697 = vadd.xlane.f32.xlu0 %v3696
      %v3698 = vpop.xlane.xlu0 %3697
      %v3699 = vsel %vm1051, %v3655, 0.0
      %3700 = vadd.xlane.f32.xlu0 %v3699
      %v3701 = vpop.xlane.xlu0 %3700
      %v3702 = vsel %vm1051, %v3656, 0.0
      %3703 = vadd.xlane.f32.xlu0 %v3702
      %v3704 = vpop.xlane.xlu0 %3703
      %v3705 = vsel %vm1051, %v3657, 0.0
      %3706 = vadd.xlane.f32.xlu0 %v3705
      %v3707 = vpop.xlane.xlu0 %3706
      %v3708 = vrcp.pop 32.0
      %v3709 = vmul.f32 %v3662, %v3708
      %v3710 = vmul.f32 %v3665, %v3708
      %v3711 = vmul.f32 %v3668, %v3708
      %v3712 = vmul.f32 %v3671, %v3708
      %v3713 = vmul.f32 %v3674, %v3708
      %v3714 = vmul.f32 %v3677, %v3708
      %v3715 = vmul.f32 %v3680, %v3708
      %v3716 = vmul.f32 %v3683, %v3708
      %v3717 = vmul.f32 %v3686, %v3708
      %v3718 = vmul.f32 %v3689, %v3708
      %v3719 = vmul.f32 %v3692, %v3708
      %v3720 = vmul.f32 %v3695, %v3708
      %v3721 = vmul.f32 %v3698, %v3708
      %v3722 = vmul.f32 %v3701, %v3708
      %v3723 = vmul.f32 %v3704, %v3708
      %v3724 = vmul.f32 %v3707, %v3708
      %v3725 = vsub.f32 %v3642, %v3709
      %v3726 = vsub.f32 %v3643, %v3710
      %v3727 = vsub.f32 %v3644, %v3711
      %v3728 = vsub.f32 %v3645, %v3712
      %v3729 = vsub.f32 %v3646, %v3713
      %v3730 = vsub.f32 %v3647, %v3714
      %v3731 = vsub.f32 %v3648, %v3715
      %v3732 = vsub.f32 %v3649, %v3716
      %v3733 = vsub.f32 %v3650, %v3717
      %v3734 = vsub.f32 %v3651, %v3718
      %v3735 = vsub.f32 %v3652, %v3719
      %v3736 = vsub.f32 %v3653, %v3720
      %v3737 = vsub.f32 %v3654, %v3721
      %v3738 = vsub.f32 %v3655, %v3722
      %v3739 = vsub.f32 %v3656, %v3723
      %v3740 = vsub.f32 %v3657, %v3724
      %v3741 = vmul.f32 %v3725, %v3725
      %v3742 = vmul.f32 %v3726, %v3726
      %v3743 = vmul.f32 %v3727, %v3727
      %v3744 = vmul.f32 %v3728, %v3728
      %v3745 = vmul.f32 %v3729, %v3729
      %v3746 = vmul.f32 %v3730, %v3730
      %v3747 = vmul.f32 %v3731, %v3731
      %v3748 = vmul.f32 %v3732, %v3732
      %v3749 = vmul.f32 %v3733, %v3733
      %v3750 = vmul.f32 %v3734, %v3734
      %v3751 = vmul.f32 %v3735, %v3735
      %v3752 = vmul.f32 %v3736, %v3736
      %v3753 = vmul.f32 %v3737, %v3737
      %v3754 = vmul.f32 %v3738, %v3738
      %v3755 = vmul.f32 %v3739, %v3739
      %v3756 = vmul.f32 %v3740, %v3740
      %v3757 = vsel %vm1051, %v3741, 0.0
      %3758 = vadd.xlane.f32.xlu0 %v3757
      %v3759 = vpop.xlane.xlu0 %3758
      %v3760 = vsel %vm1051, %v3742, 0.0
      %3761 = vadd.xlane.f32.xlu0 %v3760
      %v3762 = vpop.xlane.xlu0 %3761
      %v3763 = vsel %vm1051, %v3743, 0.0
      %3764 = vadd.xlane.f32.xlu0 %v3763
      %v3765 = vpop.xlane.xlu0 %3764
      %v3766 = vsel %vm1051, %v3744, 0.0
      %3767 = vadd.xlane.f32.xlu0 %v3766
      %v3768 = vpop.xlane.xlu0 %3767
      %v3769 = vsel %vm1051, %v3745, 0.0
      %3770 = vadd.xlane.f32.xlu0 %v3769
      %v3771 = vpop.xlane.xlu0 %3770
      %v3772 = vsel %vm1051, %v3746, 0.0
      %3773 = vadd.xlane.f32.xlu0 %v3772
      %v3774 = vpop.xlane.xlu0 %3773
      %v3775 = vsel %vm1051, %v3747, 0.0
      %3776 = vadd.xlane.f32.xlu0 %v3775
      %v3777 = vpop.xlane.xlu0 %3776
      %v3778 = vsel %vm1051, %v3748, 0.0
      %3779 = vadd.xlane.f32.xlu0 %v3778
      %v3780 = vpop.xlane.xlu0 %3779
      %v3781 = vsel %vm1051, %v3749, 0.0
      %3782 = vadd.xlane.f32.xlu0 %v3781
      %v3783 = vpop.xlane.xlu0 %3782
      %v3784 = vsel %vm1051, %v3750, 0.0
      %3785 = vadd.xlane.f32.xlu0 %v3784
      %v3786 = vpop.xlane.xlu0 %3785
      %v3787 = vsel %vm1051, %v3751, 0.0
      %3788 = vadd.xlane.f32.xlu0 %v3787
      %v3789 = vpop.xlane.xlu0 %3788
      %v3790 = vsel %vm1051, %v3752, 0.0
      %3791 = vadd.xlane.f32.xlu0 %v3790
      %v3792 = vpop.xlane.xlu0 %3791
      %v3793 = vsel %vm1051, %v3753, 0.0
      %3794 = vadd.xlane.f32.xlu0 %v3793
      %v3795 = vpop.xlane.xlu0 %3794
      %v3796 = vsel %vm1051, %v3754, 0.0
      %3797 = vadd.xlane.f32.xlu0 %v3796
      %v3798 = vpop.xlane.xlu0 %3797
      %v3799 = vsel %vm1051, %v3755, 0.0
      %3800 = vadd.xlane.f32.xlu0 %v3799
      %v3801 = vpop.xlane.xlu0 %3800
      %v3802 = vsel %vm1051, %v3756, 0.0
      %3803 = vadd.xlane.f32.xlu0 %v3802
      %v3804 = vpop.xlane.xlu0 %3803
      %v3805 = vmul.f32 %v3759, %v3708
      %v3806 = vmul.f32 %v3762, %v3708
      %v3807 = vmul.f32 %v3765, %v3708
      %v3808 = vmul.f32 %v3768, %v3708
      %v3809 = vmul.f32 %v3771, %v3708
      %v3810 = vmul.f32 %v3774, %v3708
      %v3811 = vmul.f32 %v3777, %v3708
      %v3812 = vmul.f32 %v3780, %v3708
      %v3813 = vmul.f32 %v3783, %v3708
      %v3814 = vmul.f32 %v3786, %v3708
      %v3815 = vmul.f32 %v3789, %v3708
      %v3816 = vmul.f32 %v3792, %v3708
      %v3817 = vmul.f32 %v3795, %v3708
      %v3818 = vmul.f32 %v3798, %v3708
      %v3819 = vmul.f32 %v3801, %v3708
      %v3820 = vmul.f32 %v3804, %v3708
      %v3821 = vadd.f32 %v3805, 1e-05
      %v3822 = vadd.f32 %v3806, 1e-05
      %v3823 = vadd.f32 %v3807, 1e-05
      %v3824 = vadd.f32 %v3808, 1e-05
      %v3825 = vadd.f32 %v3809, 1e-05
      %v3826 = vadd.f32 %v3810, 1e-05
      %v3827 = vadd.f32 %v3811, 1e-05
      %v3828 = vadd.f32 %v3812, 1e-05
      %v3829 = vadd.f32 %v3813, 1e-05
      %v3830 = vadd.f32 %v3814, 1e-05
      %v3831 = vadd.f32 %v3815, 1e-05
      %v3832 = vadd.f32 %v3816, 1e-05
      %v3833 = vadd.f32 %v3817, 1e-05
      %v3834 = vadd.f32 %v3818, 1e-05
      %v3835 = vadd.f32 %v3819, 1e-05
      %v3836 = vadd.f32 %v3820, 1e-05
      %v3837 = vrsqrt.pop %v3821
      %v3838 = vrsqrt.pop %v3822
      %v3839 = vrsqrt.pop %v3823
      %v3840 = vrsqrt.pop %v3824
      %v3841 = vrsqrt.pop %v3825
      %v3842 = vrsqrt.pop %v3826
      %v3843 = vrsqrt.pop %v3827
      %v3844 = vrsqrt.pop %v3828
      %v3845 = vrsqrt.pop %v3829
      %v3846 = vrsqrt.pop %v3830
      %v3847 = vrsqrt.pop %v3831
      %v3848 = vrsqrt.pop %v3832
      %v3849 = vrsqrt.pop %v3833
      %v3850 = vrsqrt.pop %v3834
      %v3851 = vrsqrt.pop %v3835
      %v3852 = vrsqrt.pop %v3836
      %v3853 = vmul.f32 %v3725, %v3837
      %v3854 = vmul.f32 %v3726, %v3838
      %v3855 = vmul.f32 %v3727, %v3839
      %v3856 = vmul.f32 %v3728, %v3840
      %v3857 = vmul.f32 %v3729, %v3841
      %v3858 = vmul.f32 %v3730, %v3842
      %v3859 = vmul.f32 %v3731, %v3843
      %v3860 = vmul.f32 %v3732, %v3844
      %v3861 = vmul.f32 %v3733, %v3845
      %v3862 = vmul.f32 %v3734, %v3846
      %v3863 = vmul.f32 %v3735, %v3847
      %v3864 = vmul.f32 %v3736, %v3848
      %v3865 = vmul.f32 %v3737, %v3849
      %v3866 = vmul.f32 %v3738, %v3850
      %v3867 = vmul.f32 %v3739, %v3851
      %v3868 = vmul.f32 %v3740, %v3852
      %v3870 = vlaneseq
      %v3871 = vshrl.u32 %v3870, 7
      %v3872 = vsub.s32 0, %v3871
      %v3873 = vrot.slane %v3658, %v3872
      %v3875 = vmul.f32 %v3853, %v3873
      %v3876 = vmul.f32 %v3854, %v3873
      %v3877 = vmul.f32 %v3855, %v3873
      %v3878 = vmul.f32 %v3856, %v3873
      %v3879 = vmul.f32 %v3857, %v3873
      %v3880 = vmul.f32 %v3858, %v3873
      %v3881 = vmul.f32 %v3859, %v3873
      %v3882 = vmul.f32 %v3860, %v3873
      %v3883 = vmul.f32 %v3861, %v3873
      %v3884 = vmul.f32 %v3862, %v3873
      %v3885 = vmul.f32 %v3863, %v3873
      %v3886 = vmul.f32 %v3864, %v3873
      %v3887 = vmul.f32 %v3865, %v3873
      %v3888 = vmul.f32 %v3866, %v3873
      %v3889 = vmul.f32 %v3867, %v3873
      %v3890 = vmul.f32 %v3868, %v3873
      %v3892 = vlaneseq
      %v3893 = vshrl.u32 %v3892, 7
      %v3894 = vsub.s32 0, %v3893
      %v3895 = vrot.slane %v3659, %v3894
      %v3897 = vadd.f32 %v3875, %v3895
      %v3898 = vadd.f32 %v3876, %v3895
      %v3899 = vadd.f32 %v3877, %v3895
      %v3900 = vadd.f32 %v3878, %v3895
      %v3901 = vadd.f32 %v3879, %v3895
      %v3902 = vadd.f32 %v3880, %v3895
      %v3903 = vadd.f32 %v3881, %v3895
      %v3904 = vadd.f32 %v3882, %v3895
      %v3905 = vadd.f32 %v3883, %v3895
      %v3906 = vadd.f32 %v3884, %v3895
      %v3907 = vadd.f32 %v3885, %v3895
      %v3908 = vadd.f32 %v3886, %v3895
      %v3909 = vadd.f32 %v3887, %v3895
      %v3910 = vadd.f32 %v3888, %v3895
      %v3911 = vadd.f32 %v3889, %v3895
      %v3912 = vadd.f32 %v3890, %v3895
      %v3913 = vpack.c.bf16 %v3898, %v3897
      %v3914 = vpack.c.bf16 %v3900, %v3899
      %v3915 = vpack.c.bf16 %v3902, %v3901
      %v3916 = vpack.c.bf16 %v3904, %v3903
      %v3917 = vpack.c.bf16 %v3906, %v3905
      %v3918 = vpack.c.bf16 %v3908, %v3907
      %v3919 = vpack.c.bf16 %v3910, %v3909
      %v3920 = vpack.c.bf16 %v3912, %v3911
      %v3921 = vld [vmem:[%s889] sm:$0x1]
      %v3923 = vlaneseq
      %v3924 = vshrl.u32 %v3923, 7
      %v3925 = vsub.s32 0, %v3924
      %v3926 = vrot.slane %v3921, %v3925
      %v3932 = vunpack.c.l.b16 %v1465
      %v3933 = vunpack.c.l.b16 %v1466
      %v3934 = vunpack.c.l.b16 %v1467
      %v3935 = vunpack.c.l.b16 %v1468
      %v3936 = vpack.c.b16 %v3933, %v3932
      %v3937 = vpack.c.b16 %v3935, %v3934
      %v3941 = vsel %vm1051, %v3913, 0
      %v3944 = vsel %vm1051, %v3914, 0
      %v3947 = vsel %vm1051, %v3915, 0
      %v3950 = vsel %vm1051, %v3916, 0
      %v3953 = vsel %vm1051, %v3917, 0
      %v3956 = vsel %vm1051, %v3918, 0
      %v3959 = vsel %vm1051, %v3919, 0
      %v3962 = vsel %vm1051, %v3920, 0
      %3964 = vmatprep.subr.bf16.mxu0 0
      %3965 = vmatpush1.bf16.msra.mxu0 0
      %3966 = vmatprep.subr.bf16.mxu0 0
      %3967 = vmatpush1.bf16.msra.mxu0 0
      %3968 = vmatprep.subr.bf16.mxu0 0
      %3969 = vmatpush1.bf16.msra.mxu0 0
      %3970 = vmatprep.subr.bf16.mxu0 0
      %3971 = vmatpush1.bf16.msra.mxu0 0
      %3972 = vmatprep.subr.bf16.mxu0 0
      %3973 = vmatpush1.bf16.msra.mxu0 0
      %3974 = vmatprep.subr.bf16.mxu0 0
      %3975 = vmatpush1.bf16.msra.mxu0 0
      %3976 = vmatprep.subr.bf16.mxu0 0
      %3977 = vmatpush1.bf16.msra.mxu0 %v3937
      %3978 = vmatprep.subr.bf16.mxu0 0
      %3979 = vmatpush1.bf16.msra.mxu0 %v3936
      %3980 = vmatprep.subr.bf16.mxu0 0
      %3981 = vmatpush2.bf16.msra.mxu0 0
      %3982 = vmatprep.subr.bf16.mxu0 0
      %3983 = vmatpush2.bf16.msra.mxu0 0
      %3984 = vmatprep.subr.bf16.mxu0 0
      %3985 = vmatpush2.bf16.msra.mxu0 0
      %3986 = vmatprep.subr.bf16.mxu0 0
      %3987 = vmatpush2.bf16.msra.mxu0 0
      %3988 = vmatprep.subr.bf16.mxu0 0
      %3989 = vmatpush2.bf16.msra.mxu0 0
      %3990 = vmatprep.subr.bf16.mxu0 0
      %3991 = vmatpush2.bf16.msra.mxu0 0
      %3992 = vmatprep.subr.bf16.mxu0 0
      %3993 = vmatpush2.bf16.msra.mxu0 0
      %3994 = vmatprep.subr.bf16.mxu0 0
      %3995 = vmatpush2.bf16.msra.mxu0 0
      %3996 = vmatprep.mubr.bf16.mxu0 0
      %3997 = vmatmul.mubr.bf16.gmra.mxu0 %v3941
      %v3998 = vpop.f32.mrf.mxu0
      %v3999 = vadd.f32 %v3926, %v3998
      %v4000 = vpop.f32.mrf.mxu0
      %v4001 = vpop.f32.mrf.mxu0
      %v4002 = vadd.f32 %v3926, %v4001
      %v4003 = vpop.f32.mrf.mxu0
      %4004 = vmatprep.mubr.bf16.mxu0 0
      %4005 = vmatmul.mubr.bf16.gmra.mxu0 %v3944
      %v4006 = vpop.f32.mrf.mxu0
      %v4007 = vadd.f32 %v3926, %v4006
      %v4008 = vpop.f32.mrf.mxu0
      %v4009 = vpop.f32.mrf.mxu0
      %v4010 = vadd.f32 %v3926, %v4009
      %v4011 = vpop.f32.mrf.mxu0
      %4012 = vmatprep.mubr.bf16.mxu0 0
      %4013 = vmatmul.mubr.bf16.gmra.mxu0 %v3947
      %v4014 = vpop.f32.mrf.mxu0
      %v4015 = vadd.f32 %v3926, %v4014
      %v4016 = vpop.f32.mrf.mxu0
      %v4017 = vpop.f32.mrf.mxu0
      %v4018 = vadd.f32 %v3926, %v4017
      %v4019 = vpop.f32.mrf.mxu0
      %4020 = vmatprep.mubr.bf16.mxu0 0
      %4021 = vmatmul.mubr.bf16.gmra.mxu0 %v3950
      %v4022 = vpop.f32.mrf.mxu0
      %v4023 = vadd.f32 %v3926, %v4022
      %v4024 = vpop.f32.mrf.mxu0
      %v4025 = vpop.f32.mrf.mxu0
      %v4026 = vadd.f32 %v3926, %v4025
      %v4027 = vpop.f32.mrf.mxu0
      %4028 = vmatprep.mubr.bf16.mxu0 0
      %4029 = vmatmul.mubr.bf16.gmra.mxu0 %v3953
      %v4030 = vpop.f32.mrf.mxu0
      %v4031 = vadd.f32 %v3926, %v4030
      %v4032 = vpop.f32.mrf.mxu0
      %v4033 = vpop.f32.mrf.mxu0
      %v4034 = vadd.f32 %v3926, %v4033
      %v4035 = vpop.f32.mrf.mxu0
      %4036 = vmatprep.mubr.bf16.mxu0 0
      %4037 = vmatmul.mubr.bf16.gmra.mxu0 %v3956
      %v4038 = vpop.f32.mrf.mxu0
      %v4039 = vadd.f32 %v3926, %v4038
      %v4040 = vpop.f32.mrf.mxu0
      %v4041 = vpop.f32.mrf.mxu0
      %v4042 = vadd.f32 %v3926, %v4041
      %v4043 = vpop.f32.mrf.mxu0
      %4044 = vmatprep.mubr.bf16.mxu0 0
      %4045 = vmatmul.mubr.bf16.gmra.mxu0 %v3959
      %v4046 = vpop.f32.mrf.mxu0
      %v4047 = vadd.f32 %v3926, %v4046
      %v4048 = vpop.f32.mrf.mxu0
      %v4049 = vpop.f32.mrf.mxu0
      %v4050 = vadd.f32 %v3926, %v4049
      %v4051 = vpop.f32.mrf.mxu0
      %4052 = vmatprep.mubr.bf16.mxu0 0
      %4053 = vmatmul.mubr.bf16.gmra.mxu0 %v3962
      %v4054 = vpop.f32.mrf.mxu0
      %v4055 = vadd.f32 %v3926, %v4054
      %v4056 = vpop.f32.mrf.mxu0
      %v4057 = vpop.f32.mrf.mxu0
      %v4058 = vadd.f32 %v3926, %v4057
      %v4059 = vpop.f32.mrf.mxu0
      %4060 = vdwg.mxu0
      %v4061 = vmax.f32 %v3999, 0.0
      %v4062 = vmax.f32 %v4002, 0.0
      %v4063 = vmax.f32 %v4007, 0.0
      %v4064 = vmax.f32 %v4010, 0.0
      %v4065 = vmax.f32 %v4015, 0.0
      %v4066 = vmax.f32 %v4018, 0.0
      %v4067 = vmax.f32 %v4023, 0.0
      %v4068 = vmax.f32 %v4026, 0.0
      %v4069 = vmax.f32 %v4031, 0.0
      %v4070 = vmax.f32 %v4034, 0.0
      %v4071 = vmax.f32 %v4039, 0.0
      %v4072 = vmax.f32 %v4042, 0.0
      %v4073 = vmax.f32 %v4047, 0.0
      %v4074 = vmax.f32 %v4050, 0.0
      %v4075 = vmax.f32 %v4055, 0.0
      %v4076 = vmax.f32 %v4058, 0.0
      %v4077 = vpack.c.bf16 %v4062, %v4061
      %v4078 = vpack.c.bf16 %v4064, %v4063
      %v4079 = vpack.c.bf16 %v4066, %v4065
      %v4080 = vpack.c.bf16 %v4068, %v4067
      %v4081 = vpack.c.bf16 %v4070, %v4069
      %v4082 = vpack.c.bf16 %v4072, %v4071
      %v4083 = vpack.c.bf16 %v4074, %v4073
      %v4084 = vpack.c.bf16 %v4076, %v4075
      %v4085 = vld [vmem:[%s897] sm:$0x1]
      %v4087 = vlaneseq
      %v4088 = vshrl.u32 %v4087, 7
      %v4089 = vsub.s32 0, %v4088
      %v4090 = vrot.slane %v4085, %v4089
      %v4100 = vunpack.c.l.b16 %v1469
      %v4101 = vunpack.c.l.b16 %v1470
      %v4102 = vunpack.c.l.b16 %v1471
      %v4103 = vunpack.c.l.b16 %v1472
      %v4104 = vunpack.c.l.b16 %v1473
      %v4105 = vunpack.c.l.b16 %v1474
      %v4106 = vunpack.c.l.b16 %v1475
      %v4107 = vunpack.c.l.b16 %v1476
      %v4108 = vpack.c.b16 %v4101, %v4100
      %v4109 = vpack.c.b16 %v4103, %v4102
      %v4110 = vpack.c.b16 %v4105, %v4104
      %v4111 = vpack.c.b16 %v4107, %v4106
      %vm4116 = vcmask 523264
      %v4118 = vsel %vm4116, %v4077, 0
      %v4121 = vsel %vm4116, %v4078, 0
      %v4124 = vsel %vm4116, %v4079, 0
      %v4127 = vsel %vm4116, %v4080, 0
      %v4130 = vsel %vm4116, %v4081, 0
      %v4133 = vsel %vm4116, %v4082, 0
      %v4136 = vsel %vm4116, %v4083, 0
      %v4139 = vsel %vm4116, %v4084, 0
      %4141 = vmatprep.subr.bf16.mxu0 0
      %4142 = vmatpush1.bf16.msra.mxu0 0
      %4143 = vmatprep.subr.bf16.mxu0 0
      %4144 = vmatpush1.bf16.msra.mxu0 0
      %4145 = vmatprep.subr.bf16.mxu0 0
      %4146 = vmatpush1.bf16.msra.mxu0 0
      %4147 = vmatprep.subr.bf16.mxu0 0
      %4148 = vmatpush1.bf16.msra.mxu0 0
      %4149 = vmatprep.subr.bf16.mxu0 0
      %4150 = vmatpush1.bf16.msra.mxu0 %v4111
      %4151 = vmatprep.subr.bf16.mxu0 0
      %4152 = vmatpush1.bf16.msra.mxu0 %v4110
      %4153 = vmatprep.subr.bf16.mxu0 0
      %4154 = vmatpush1.bf16.msra.mxu0 %v4109
      %4155 = vmatprep.subr.bf16.mxu0 0
      %4156 = vmatpush1.bf16.msra.mxu0 %v4108
      %4157 = vmatprep.subr.bf16.mxu0 0
      %4158 = vmatpush2.bf16.msra.mxu0 0
      %4159 = vmatprep.subr.bf16.mxu0 0
      %4160 = vmatpush2.bf16.msra.mxu0 0
      %4161 = vmatprep.subr.bf16.mxu0 0
      %4162 = vmatpush2.bf16.msra.mxu0 0
      %4163 = vmatprep.subr.bf16.mxu0 0
      %4164 = vmatpush2.bf16.msra.mxu0 0
      %4165 = vmatprep.subr.bf16.mxu0 0
      %4166 = vmatpush2.bf16.msra.mxu0 0
      %4167 = vmatprep.subr.bf16.mxu0 0
      %4168 = vmatpush2.bf16.msra.mxu0 0
      %4169 = vmatprep.subr.bf16.mxu0 0
      %4170 = vmatpush2.bf16.msra.mxu0 0
      %4171 = vmatprep.subr.bf16.mxu0 0
      %4172 = vmatpush2.bf16.msra.mxu0 0
      %4173 = vmatprep.mubr.bf16.mxu0 0
      %4174 = vmatmul.mubr.bf16.gmra.mxu0 %v4118
      %v4175 = vpop.f32.mrf.mxu0
      %v4176 = vadd.f32 %v4090, %v4175
      %v4177 = vpop.f32.mrf.mxu0
      %v4178 = vpop.f32.mrf.mxu0
      %v4179 = vadd.f32 %v4090, %v4178
      %v4180 = vpop.f32.mrf.mxu0
      %4181 = vmatprep.mubr.bf16.mxu0 0
      %4182 = vmatmul.mubr.bf16.gmra.mxu0 %v4121
      %v4183 = vpop.f32.mrf.mxu0
      %v4184 = vadd.f32 %v4090, %v4183
      %v4185 = vpop.f32.mrf.mxu0
      %v4186 = vpop.f32.mrf.mxu0
      %v4187 = vadd.f32 %v4090, %v4186
      %v4188 = vpop.f32.mrf.mxu0
      %4189 = vmatprep.mubr.bf16.mxu0 0
      %4190 = vmatmul.mubr.bf16.gmra.mxu0 %v4124
      %v4191 = vpop.f32.mrf.mxu0
      %v4192 = vadd.f32 %v4090, %v4191
      %v4193 = vpop.f32.mrf.mxu0
      %v4194 = vpop.f32.mrf.mxu0
      %v4195 = vadd.f32 %v4090, %v4194
      %v4196 = vpop.f32.mrf.mxu0
      %4197 = vmatprep.mubr.bf16.mxu0 0
      %4198 = vmatmul.mubr.bf16.gmra.mxu0 %v4127
      %v4199 = vpop.f32.mrf.mxu0
      %v4200 = vadd.f32 %v4090, %v4199
      %v4201 = vpop.f32.mrf.mxu0
      %v4202 = vpop.f32.mrf.mxu0
      %v4203 = vadd.f32 %v4090, %v4202
      %v4204 = vpop.f32.mrf.mxu0
      %4205 = vmatprep.mubr.bf16.mxu0 0
      %4206 = vmatmul.mubr.bf16.gmra.mxu0 %v4130
      %v4207 = vpop.f32.mrf.mxu0
      %v4208 = vadd.f32 %v4090, %v4207
      %v4209 = vpop.f32.mrf.mxu0
      %v4210 = vpop.f32.mrf.mxu0
      %v4211 = vadd.f32 %v4090, %v4210
      %v4212 = vpop.f32.mrf.mxu0
      %4213 = vmatprep.mubr.bf16.mxu0 0
      %4214 = vmatmul.mubr.bf16.gmra.mxu0 %v4133
      %v4215 = vpop.f32.mrf.mxu0
      %v4216 = vadd.f32 %v4090, %v4215
      %v4217 = vpop.f32.mrf.mxu0
      %v4218 = vpop.f32.mrf.mxu0
      %v4219 = vadd.f32 %v4090, %v4218
      %v4220 = vpop.f32.mrf.mxu0
      %4221 = vmatprep.mubr.bf16.mxu0 0
      %4222 = vmatmul.mubr.bf16.gmra.mxu0 %v4136
      %v4223 = vpop.f32.mrf.mxu0
      %v4224 = vadd.f32 %v4090, %v4223
      %v4225 = vpop.f32.mrf.mxu0
      %v4226 = vpop.f32.mrf.mxu0
      %v4227 = vadd.f32 %v4090, %v4226
      %v4228 = vpop.f32.mrf.mxu0
      %4229 = vmatprep.mubr.bf16.mxu0 0
      %4230 = vmatmul.mubr.bf16.gmra.mxu0 %v4139
      %v4231 = vpop.f32.mrf.mxu0
      %v4232 = vadd.f32 %v4090, %v4231
      %v4233 = vpop.f32.mrf.mxu0
      %v4234 = vpop.f32.mrf.mxu0
      %v4235 = vadd.f32 %v4090, %v4234
      %v4236 = vpop.f32.mrf.mxu0
      %4237 = vdwg.mxu0
      %v4238 = vadd.f32 %v3897, %v4176
      %v4239 = vadd.f32 %v3898, %v4179
      %v4240 = vadd.f32 %v3899, %v4184
      %v4241 = vadd.f32 %v3900, %v4187
      %v4242 = vadd.f32 %v3901, %v4192
      %v4243 = vadd.f32 %v3902, %v4195
      %v4244 = vadd.f32 %v3903, %v4200
      %v4245 = vadd.f32 %v3904, %v4203
      %v4246 = vadd.f32 %v3905, %v4208
      %v4247 = vadd.f32 %v3906, %v4211
      %v4248 = vadd.f32 %v3907, %v4216
      %v4249 = vadd.f32 %v3908, %v4219
      %v4250 = vadd.f32 %v3909, %v4224
      %v4251 = vadd.f32 %v3910, %v4227
      %v4252 = vadd.f32 %v3911, %v4232
      %v4253 = vadd.f32 %v3912, %v4235
      %v4254 = vld [vmem:[%s900] sm:$0x1]
      %v4255 = vld [vmem:[%s903] sm:$0x1]
      %v4256 = vsel %vm1051, %v4238, 0.0
      %4257 = vadd.xlane.f32.xlu0 %v4256
      %v4258 = vpop.xlane.xlu0 %4257
      %v4259 = vsel %vm1051, %v4239, 0.0
      %4260 = vadd.xlane.f32.xlu0 %v4259
      %v4261 = vpop.xlane.xlu0 %4260
      %v4262 = vsel %vm1051, %v4240, 0.0
      %4263 = vadd.xlane.f32.xlu0 %v4262
      %v4264 = vpop.xlane.xlu0 %4263
      %v4265 = vsel %vm1051, %v4241, 0.0
      %4266 = vadd.xlane.f32.xlu0 %v4265
      %v4267 = vpop.xlane.xlu0 %4266
      %v4268 = vsel %vm1051, %v4242, 0.0
      %4269 = vadd.xlane.f32.xlu0 %v4268
      %v4270 = vpop.xlane.xlu0 %4269
      %v4271 = vsel %vm1051, %v4243, 0.0
      %4272 = vadd.xlane.f32.xlu0 %v4271
      %v4273 = vpop.xlane.xlu0 %4272
      %v4274 = vsel %vm1051, %v4244, 0.0
      %4275 = vadd.xlane.f32.xlu0 %v4274
      %v4276 = vpop.xlane.xlu0 %4275
      %v4277 = vsel %vm1051, %v4245, 0.0
      %4278 = vadd.xlane.f32.xlu0 %v4277
      %v4279 = vpop.xlane.xlu0 %4278
      %v4280 = vsel %vm1051, %v4246, 0.0
      %4281 = vadd.xlane.f32.xlu0 %v4280
      %v4282 = vpop.xlane.xlu0 %4281
      %v4283 = vsel %vm1051, %v4247, 0.0
      %4284 = vadd.xlane.f32.xlu0 %v4283
      %v4285 = vpop.xlane.xlu0 %4284
      %v4286 = vsel %vm1051, %v4248, 0.0
      %4287 = vadd.xlane.f32.xlu0 %v4286
      %v4288 = vpop.xlane.xlu0 %4287
      %v4289 = vsel %vm1051, %v4249, 0.0
      %4290 = vadd.xlane.f32.xlu0 %v4289
      %v4291 = vpop.xlane.xlu0 %4290
      %v4292 = vsel %vm1051, %v4250, 0.0
      %4293 = vadd.xlane.f32.xlu0 %v4292
      %v4294 = vpop.xlane.xlu0 %4293
      %v4295 = vsel %vm1051, %v4251, 0.0
      %4296 = vadd.xlane.f32.xlu0 %v4295
      %v4297 = vpop.xlane.xlu0 %4296
      %v4298 = vsel %vm1051, %v4252, 0.0
      %4299 = vadd.xlane.f32.xlu0 %v4298
      %v4300 = vpop.xlane.xlu0 %4299
      %v4301 = vsel %vm1051, %v4253, 0.0
      %4302 = vadd.xlane.f32.xlu0 %v4301
      %v4303 = vpop.xlane.xlu0 %4302
      %v4304 = vmul.f32 %v4258, %v3708
      %v4305 = vmul.f32 %v4261, %v3708
      %v4306 = vmul.f32 %v4264, %v3708
      %v4307 = vmul.f32 %v4267, %v3708
      %v4308 = vmul.f32 %v4270, %v3708
      %v4309 = vmul.f32 %v4273, %v3708
      %v4310 = vmul.f32 %v4276, %v3708
      %v4311 = vmul.f32 %v4279, %v3708
      %v4312 = vmul.f32 %v4282, %v3708
      %v4313 = vmul.f32 %v4285, %v3708
      %v4314 = vmul.f32 %v4288, %v3708
      %v4315 = vmul.f32 %v4291, %v3708
      %v4316 = vmul.f32 %v4294, %v3708
      %v4317 = vmul.f32 %v4297, %v3708
      %v4318 = vmul.f32 %v4300, %v3708
      %v4319 = vmul.f32 %v4303, %v3708
      %v4320 = vsub.f32 %v4238, %v4304
      %v4321 = vsub.f32 %v4239, %v4305
      %v4322 = vsub.f32 %v4240, %v4306
      %v4323 = vsub.f32 %v4241, %v4307
      %v4324 = vsub.f32 %v4242, %v4308
      %v4325 = vsub.f32 %v4243, %v4309
      %v4326 = vsub.f32 %v4244, %v4310
      %v4327 = vsub.f32 %v4245, %v4311
      %v4328 = vsub.f32 %v4246, %v4312
      %v4329 = vsub.f32 %v4247, %v4313
      %v4330 = vsub.f32 %v4248, %v4314
      %v4331 = vsub.f32 %v4249, %v4315
      %v4332 = vsub.f32 %v4250, %v4316
      %v4333 = vsub.f32 %v4251, %v4317
      %v4334 = vsub.f32 %v4252, %v4318
      %v4335 = vsub.f32 %v4253, %v4319
      %v4336 = vmul.f32 %v4320, %v4320
      %v4337 = vmul.f32 %v4321, %v4321
      %v4338 = vmul.f32 %v4322, %v4322
      %v4339 = vmul.f32 %v4323, %v4323
      %v4340 = vmul.f32 %v4324, %v4324
      %v4341 = vmul.f32 %v4325, %v4325
      %v4342 = vmul.f32 %v4326, %v4326
      %v4343 = vmul.f32 %v4327, %v4327
      %v4344 = vmul.f32 %v4328, %v4328
      %v4345 = vmul.f32 %v4329, %v4329
      %v4346 = vmul.f32 %v4330, %v4330
      %v4347 = vmul.f32 %v4331, %v4331
      %v4348 = vmul.f32 %v4332, %v4332
      %v4349 = vmul.f32 %v4333, %v4333
      %v4350 = vmul.f32 %v4334, %v4334
      %v4351 = vmul.f32 %v4335, %v4335
      %v4352 = vsel %vm1051, %v4336, 0.0
      %4353 = vadd.xlane.f32.xlu0 %v4352
      %v4354 = vpop.xlane.xlu0 %4353
      %v4355 = vsel %vm1051, %v4337, 0.0
      %4356 = vadd.xlane.f32.xlu0 %v4355
      %v4357 = vpop.xlane.xlu0 %4356
      %v4358 = vsel %vm1051, %v4338, 0.0
      %4359 = vadd.xlane.f32.xlu0 %v4358
      %v4360 = vpop.xlane.xlu0 %4359
      %v4361 = vsel %vm1051, %v4339, 0.0
      %4362 = vadd.xlane.f32.xlu0 %v4361
      %v4363 = vpop.xlane.xlu0 %4362
      %v4364 = vsel %vm1051, %v4340, 0.0
      %4365 = vadd.xlane.f32.xlu0 %v4364
      %v4366 = vpop.xlane.xlu0 %4365
      %v4367 = vsel %vm1051, %v4341, 0.0
      %4368 = vadd.xlane.f32.xlu0 %v4367
      %v4369 = vpop.xlane.xlu0 %4368
      %v4370 = vsel %vm1051, %v4342, 0.0
      %4371 = vadd.xlane.f32.xlu0 %v4370
      %v4372 = vpop.xlane.xlu0 %4371
      %v4373 = vsel %vm1051, %v4343, 0.0
      %4374 = vadd.xlane.f32.xlu0 %v4373
      %v4375 = vpop.xlane.xlu0 %4374
      %v4376 = vsel %vm1051, %v4344, 0.0
      %4377 = vadd.xlane.f32.xlu0 %v4376
      %v4378 = vpop.xlane.xlu0 %4377
      %v4379 = vsel %vm1051, %v4345, 0.0
      %4380 = vadd.xlane.f32.xlu0 %v4379
      %v4381 = vpop.xlane.xlu0 %4380
      %v4382 = vsel %vm1051, %v4346, 0.0
      %4383 = vadd.xlane.f32.xlu0 %v4382
      %v4384 = vpop.xlane.xlu0 %4383
      %v4385 = vsel %vm1051, %v4347, 0.0
      %4386 = vadd.xlane.f32.xlu0 %v4385
      %v4387 = vpop.xlane.xlu0 %4386
      %v4388 = vsel %vm1051, %v4348, 0.0
      %4389 = vadd.xlane.f32.xlu0 %v4388
      %v4390 = vpop.xlane.xlu0 %4389
      %v4391 = vsel %vm1051, %v4349, 0.0
      %4392 = vadd.xlane.f32.xlu0 %v4391
      %v4393 = vpop.xlane.xlu0 %4392
      %v4394 = vsel %vm1051, %v4350, 0.0
      %4395 = vadd.xlane.f32.xlu0 %v4394
      %v4396 = vpop.xlane.xlu0 %4395
      %v4397 = vsel %vm1051, %v4351, 0.0
      %4398 = vadd.xlane.f32.xlu0 %v4397
      %v4399 = vpop.xlane.xlu0 %4398
      %v4400 = vmul.f32 %v4354, %v3708
      %v4401 = vmul.f32 %v4357, %v3708
      %v4402 = vmul.f32 %v4360, %v3708
      %v4403 = vmul.f32 %v4363, %v3708
      %v4404 = vmul.f32 %v4366, %v3708
      %v4405 = vmul.f32 %v4369, %v3708
      %v4406 = vmul.f32 %v4372, %v3708
      %v4407 = vmul.f32 %v4375, %v3708
      %v4408 = vmul.f32 %v4378, %v3708
      %v4409 = vmul.f32 %v4381, %v3708
      %v4410 = vmul.f32 %v4384, %v3708
      %v4411 = vmul.f32 %v4387, %v3708
      %v4412 = vmul.f32 %v4390, %v3708
      %v4413 = vmul.f32 %v4393, %v3708
      %v4414 = vmul.f32 %v4396, %v3708
      %v4415 = vmul.f32 %v4399, %v3708
      %v4416 = vadd.f32 %v4400, 1e-05
      %v4417 = vadd.f32 %v4401, 1e-05
      %v4418 = vadd.f32 %v4402, 1e-05
      %v4419 = vadd.f32 %v4403, 1e-05
      %v4420 = vadd.f32 %v4404, 1e-05
      %v4421 = vadd.f32 %v4405, 1e-05
      %v4422 = vadd.f32 %v4406, 1e-05
      %v4423 = vadd.f32 %v4407, 1e-05
      %v4424 = vadd.f32 %v4408, 1e-05
      %v4425 = vadd.f32 %v4409, 1e-05
      %v4426 = vadd.f32 %v4410, 1e-05
      %v4427 = vadd.f32 %v4411, 1e-05
      %v4428 = vadd.f32 %v4412, 1e-05
      %v4429 = vadd.f32 %v4413, 1e-05
      %v4430 = vadd.f32 %v4414, 1e-05
      %v4431 = vadd.f32 %v4415, 1e-05
      %v4432 = vrsqrt.pop %v4416
      %v4433 = vrsqrt.pop %v4417
      %v4434 = vrsqrt.pop %v4418
      %v4435 = vrsqrt.pop %v4419
      %v4436 = vrsqrt.pop %v4420
      %v4437 = vrsqrt.pop %v4421
      %v4438 = vrsqrt.pop %v4422
      %v4439 = vrsqrt.pop %v4423
      %v4440 = vrsqrt.pop %v4424
      %v4441 = vrsqrt.pop %v4425
      %v4442 = vrsqrt.pop %v4426
      %v4443 = vrsqrt.pop %v4427
      %v4444 = vrsqrt.pop %v4428
      %v4445 = vrsqrt.pop %v4429
      %v4446 = vrsqrt.pop %v4430
      %v4447 = vrsqrt.pop %v4431
      %v4448 = vmul.f32 %v4320, %v4432
      %v4449 = vmul.f32 %v4321, %v4433
      %v4450 = vmul.f32 %v4322, %v4434
      %v4451 = vmul.f32 %v4323, %v4435
      %v4452 = vmul.f32 %v4324, %v4436
      %v4453 = vmul.f32 %v4325, %v4437
      %v4454 = vmul.f32 %v4326, %v4438
      %v4455 = vmul.f32 %v4327, %v4439
      %v4456 = vmul.f32 %v4328, %v4440
      %v4457 = vmul.f32 %v4329, %v4441
      %v4458 = vmul.f32 %v4330, %v4442
      %v4459 = vmul.f32 %v4331, %v4443
      %v4460 = vmul.f32 %v4332, %v4444
      %v4461 = vmul.f32 %v4333, %v4445
      %v4462 = vmul.f32 %v4334, %v4446
      %v4463 = vmul.f32 %v4335, %v4447
      %v4465 = vlaneseq
      %v4466 = vshrl.u32 %v4465, 7
      %v4467 = vsub.s32 0, %v4466
      %v4468 = vrot.slane %v4254, %v4467
      %v4470 = vmul.f32 %v4448, %v4468
      %v4471 = vmul.f32 %v4449, %v4468
      %v4472 = vmul.f32 %v4450, %v4468
      %v4473 = vmul.f32 %v4451, %v4468
      %v4474 = vmul.f32 %v4452, %v4468
      %v4475 = vmul.f32 %v4453, %v4468
      %v4476 = vmul.f32 %v4454, %v4468
      %v4477 = vmul.f32 %v4455, %v4468
      %v4478 = vmul.f32 %v4456, %v4468
      %v4479 = vmul.f32 %v4457, %v4468
      %v4480 = vmul.f32 %v4458, %v4468
      %v4481 = vmul.f32 %v4459, %v4468
      %v4482 = vmul.f32 %v4460, %v4468
      %v4483 = vmul.f32 %v4461, %v4468
      %v4484 = vmul.f32 %v4462, %v4468
      %v4485 = vmul.f32 %v4463, %v4468
      %v4487 = vlaneseq
      %v4488 = vshrl.u32 %v4487, 7
      %v4489 = vsub.s32 0, %v4488
      %v4490 = vrot.slane %v4255, %v4489
      %v4492 = vadd.f32 %v4470, %v4490
      %v4493 = vadd.f32 %v4471, %v4490
      %v4494 = vadd.f32 %v4472, %v4490
      %v4495 = vadd.f32 %v4473, %v4490
      %v4496 = vadd.f32 %v4474, %v4490
      %v4497 = vadd.f32 %v4475, %v4490
      %v4498 = vadd.f32 %v4476, %v4490
      %v4499 = vadd.f32 %v4477, %v4490
      %v4500 = vadd.f32 %v4478, %v4490
      %v4501 = vadd.f32 %v4479, %v4490
      %v4502 = vadd.f32 %v4480, %v4490
      %v4503 = vadd.f32 %v4481, %v4490
      %v4504 = vadd.f32 %v4482, %v4490
      %v4505 = vadd.f32 %v4483, %v4490
      %v4506 = vadd.f32 %v4484, %v4490
      %v4507 = vadd.f32 %v4485, %v4490
      %4508 = vst.msk [vmem:[#allocation2] sm:$0xff] %vm1051, %v4492
      %4509 = vst.msk [vmem:[#allocation2 + $0x8] sm:$0xff] %vm1051, %v4493
      %4510 = vst.msk [vmem:[#allocation2 + $0x10] sm:$0xff] %vm1051, %v4494
      %4511 = vst.msk [vmem:[#allocation2 + $0x18] sm:$0xff] %vm1051, %v4495
      %4512 = vst.msk [vmem:[#allocation2 + $0x20] sm:$0xff] %vm1051, %v4496
      %4513 = vst.msk [vmem:[#allocation2 + $0x28] sm:$0xff] %vm1051, %v4497
      %4514 = vst.msk [vmem:[#allocation2 + $0x30] sm:$0xff] %vm1051, %v4498
      %4515 = vst.msk [vmem:[#allocation2 + $0x38] sm:$0xff] %vm1051, %v4499
      %4516 = vst.msk [vmem:[#allocation2 + $0x40] sm:$0xff] %vm1051, %v4500
      %4517 = vst.msk [vmem:[#allocation2 + $0x48] sm:$0xff] %vm1051, %v4501
      %4518 = vst.msk [vmem:[#allocation2 + $0x50] sm:$0xff] %vm1051, %v4502
      %4519 = vst.msk [vmem:[#allocation2 + $0x58] sm:$0xff] %vm1051, %v4503
      %4520 = vst.msk [vmem:[#allocation2 + $0x60] sm:$0xff] %vm1051, %v4504
      %4521 = vst.msk [vmem:[#allocation2 + $0x68] sm:$0xff] %vm1051, %v4505
      %4522 = vst.msk [vmem:[#allocation2 + $0x70] sm:$0xff] %vm1051, %v4506
      %4523 = vst.msk [vmem:[#allocation2 + $0x78] sm:$0xff] %vm1051, %v4507
      %p4524 = scmp.eq.s32.totalorder %s35, 1
      // Predicated region
      $region101: #{tpu_custom_call.1} parent=95 // pred_check
        %p4525 = pneg %p4524
      $region102: #{tpu_custom_call.1} parent=95 // pred_check_branch
        %4527 = sbr.rel (%p4525) target = $region104
      $region103: #{tpu_custom_call.1} parent=95 // pred_region
        %v4528 = vld [vmem:[#allocation2] sm:$0xff]
        %v4529 = vld [vmem:[#allocation2 + $0x8] sm:$0xff]
        %v4530 = vld [vmem:[#allocation2 + $0x10] sm:$0xff]
        %v4531 = vld [vmem:[#allocation2 + $0x18] sm:$0xff]
        %v4532 = vld [vmem:[#allocation2 + $0x20] sm:$0xff]
        %v4533 = vld [vmem:[#allocation2 + $0x28] sm:$0xff]
        %v4534 = vld [vmem:[#allocation2 + $0x30] sm:$0xff]
        %v4535 = vld [vmem:[#allocation2 + $0x38] sm:$0xff]
        %v4536 = vld [vmem:[#allocation2 + $0x40] sm:$0xff]
        %v4537 = vld [vmem:[#allocation2 + $0x48] sm:$0xff]
        %v4538 = vld [vmem:[#allocation2 + $0x50] sm:$0xff]
        %v4539 = vld [vmem:[#allocation2 + $0x58] sm:$0xff]
        %v4540 = vld [vmem:[#allocation2 + $0x60] sm:$0xff]
        %v4541 = vld [vmem:[#allocation2 + $0x68] sm:$0xff]
        %v4542 = vld [vmem:[#allocation2 + $0x70] sm:$0xff]
        %v4543 = vld [vmem:[#allocation2 + $0x78] sm:$0xff]
        %4544 = vst.msk [vmem:[%s908] sm:$0xff] %vm1051, %v4528
        %4545 = vst.msk [vmem:[%s908 + $0x8] sm:$0xff] %vm1051, %v4529
        %4546 = vst.msk [vmem:[%s908 + $0x10] sm:$0xff] %vm1051, %v4530
        %4547 = vst.msk [vmem:[%s908 + $0x18] sm:$0xff] %vm1051, %v4531
        %4548 = vst.msk [vmem:[%s908 + $0x20] sm:$0xff] %vm1051, %v4532
        %4549 = vst.msk [vmem:[%s908 + $0x28] sm:$0xff] %vm1051, %v4533
        %4550 = vst.msk [vmem:[%s908 + $0x30] sm:$0xff] %vm1051, %v4534
        %4551 = vst.msk [vmem:[%s908 + $0x38] sm:$0xff] %vm1051, %v4535
        %4552 = vst.msk [vmem:[%s908 + $0x40] sm:$0xff] %vm1051, %v4536
        %4553 = vst.msk [vmem:[%s908 + $0x48] sm:$0xff] %vm1051, %v4537
        %4554 = vst.msk [vmem:[%s908 + $0x50] sm:$0xff] %vm1051, %v4538
        %4555 = vst.msk [vmem:[%s908 + $0x58] sm:$0xff] %vm1051, %v4539
        %4556 = vst.msk [vmem:[%s908 + $0x60] sm:$0xff] %vm1051, %v4540
        %4557 = vst.msk [vmem:[%s908 + $0x68] sm:$0xff] %vm1051, %v4541
        %4558 = vst.msk [vmem:[%s908 + $0x70] sm:$0xff] %vm1051, %v4542
        %4559 = vst.msk [vmem:[%s908 + $0x78] sm:$0xff] %vm1051, %v4543
      $region104: #{tpu_custom_call.1} parent=95 // pred_fallthru
        _
      %p4560 = scmp.lt.s32.totalorder %s34, 1
      %s4561 = scalar_select %p4560, %s34, 1
      %s4562 = smul.addr %s4561, 16
      %s4563 = smul.addr %s4562, 8
      %s4564 = scalar_lea.vmem %s19, %s4563
      // Predicated region
      $region105: #{tpu_custom_call.1} parent=95 // pred_check
        %p4565 = pneg %p554
      $region106: #{tpu_custom_call.1} parent=95 // pred_check_branch
        %4567 = sbr.rel (%p4565) target = $region108
      $region107: #{tpu_custom_call.1} parent=95 // pred_region
        _
      $region108: #{tpu_custom_call.1} parent=95 // pred_fallthru
        _
    $region96: #{tpu_custom_call.1} parent=5 // pred_fallthru
      _
    %p4568 = scmp.le.s32.totalorder 2, %s25
    // Predicated region
    $region109: #{tpu_custom_call.1} parent=5 // pred_check
      %p4569 = pneg %p4568
    $region110: #{tpu_custom_call.1} parent=5 // pred_check_branch
      %4571 = sbr.rel (%p4569) target = $region112
    $region111: #{tpu_custom_call.1} parent=5 // pred_region
      %s4572 = ssub.s32 %s25, 2
      // Predicated region
      $region113: #{tpu_custom_call.1} parent=111 // pred_check
        %p4573 = pneg %p560
      $region114: #{tpu_custom_call.1} parent=111 // pred_check_branch
        %4575 = sbr.rel (%p4573) target = $region116
      $region115: #{tpu_custom_call.1} parent=111 // pred_region
        %p4576 = scmp.lt.s32.totalorder %s36, 1
        %s4577 = scalar_select %p4576, %s36, 1
        %s4578 = smul.addr %s4577, 16
        %s4579 = smul.addr %s4578, 8
        %s4580 = scalar_lea.vmem %s19, %s4579
      $region116: #{tpu_custom_call.1} parent=111 // pred_fallthru
        _
    $region112: #{tpu_custom_call.1} parent=5 // pred_fallthru
      _
  $region6: #{tpu_custom_call.1} parent=0 // loop_footer
    %s29 = sadd.s32 1, %s25
  $region7: #{tpu_custom_call.1} parent=0 // loop_footer_branch
    %24 = sbr.rel target = $region3
  $region8: #{tpu_custom_call.1} parent=0 // loop_exit
    _

</llo_original>
